<compile_context>
chip_gen: v7x
topology: tpu7x:2x2x1
jax: 0.10.0
libtpu: 0.0.40
codegen_flags: <defaults>
</compile_context>

<pallas_src>
import numpy as np
import jax
import jax.numpy as jnp
from jax.experimental import pallas as pl
from jax.experimental.pallas import tpu as pltpu


# ---------------------------------------------------------------------------
# Geometry constants (input 32x32, implied by fc1 = Linear(16*6*6, 120)).
#   conv1 out: 30x30 on the stride-32 flat grid       -> width _L1  = 29*32+30 = 958
#   pool1 window-max kept on stride (64, 2)           -> width _M1W = 925
#   conv2 out (only positions pool2 reads, h2,w2<=11) -> width _L2  = 64*11+2*11+1 = 727
#   pool2 window-max kept on stride (128, 4)          -> width _M2W = 128*5+4*5+1 = 661
# ---------------------------------------------------------------------------
_L1 = 958
_M1W = 925
_L2 = 727
_M2W = 661


def _pool2_selection():
    """One-hot (661, 36): picks column 128*a + 4*b -> 6*a + b (PyTorch CHW order)."""
    s = np.zeros((_M2W, 36), np.float32)
    for a in range(6):
        for b in range(6):
            s[128 * a + 4 * b, 6 * a + b] = 1.0
    return s


_POOL2_SEL = _pool2_selection()


# ---------------------------------------------------------------------------
# The fused kernel: one grid step == one sample.
# ---------------------------------------------------------------------------
def _lenet_kernel(x_ref, w1_ref, b1_ref, w2_ref, b2_ref,
                  f1_ref, fb1_ref, f2_ref, fb2_ref, f3_ref, fb3_ref,
                  sel_ref, o_ref):
    f32 = jnp.float32
    x = x_ref[0]                                     # (1, 1024): 32x32, row stride 32

    # ---- conv1 (1->6, 3x3, valid) + ReLU: one GEMM on 9 shifted lane-slices ----
    p1 = jnp.concatenate(
        [x[:, 32 * i + j: 32 * i + j + _L1] for i in range(3) for j in range(3)],
        axis=0)                                      # (9, 958), row = 3i + j
    a1 = jnp.dot(w1_ref[...], p1, preferred_element_type=f32) + b1_ref[...]
    a1 = jnp.maximum(a1, 0.0)                        # (6, 958); (h, w) -> col 32h + w

    # ---- maxpool1 2x2/2: window max only; pooled (a, b) lives at col 64a + 2b ----
    m1 = jnp.maximum(jnp.maximum(a1[:, 0:_M1W], a1[:, 1:1 + _M1W]),
                     jnp.maximum(a1[:, 32:32 + _M1W], a1[:, 33:33 + _M1W]))  # (6, 925)

    # ---- conv2 (6->16, 3x3) + ReLU: one GEMM on 9 shifted (6, 727) slices of m1 ----
    # rows ordered tap-major / channel-minor: row = (3i + j)*6 + c, matching the
    # pack-time-permuted conv2 weight columns (no per-channel slicing in the kernel).
    p2 = jnp.concatenate(
        [m1[:, 64 * i + 2 * j: 64 * i + 2 * j + _L2]
         for i in range(3) for j in range(3)],
        axis=0)                                      # (54, 727)
    a2 = jnp.dot(w2_ref[...], p2, preferred_element_type=f32) + b2_ref[...]
    a2 = jnp.maximum(a2, 0.0)                        # (16, 727); (h2,w2) -> col 64h2+2w2

    # ---- maxpool2 2x2/2: window max, then compact the 36 valid columns ----
    m2 = jnp.maximum(jnp.maximum(a2[:, 0:_M2W], a2[:, 2:2 + _M2W]),
                     jnp.maximum(a2[:, 64:64 + _M2W], a2[:, 66:66 + _M2W]))  # (16, 661)
    pooled = jnp.dot(m2, sel_ref[...], preferred_element_type=f32)           # (16, 36)

    # ---- fc1 (576 -> 120) + ReLU: (channel, spatial) contraction as 16 GEMMs ----
    y = fb1_ref[...]                                 # (1, 120)
    for c in range(16):
        y = y + jnp.dot(pooled[c:c + 1, :], f1_ref[c], preferred_element_type=f32)
    y = jnp.maximum(y, 0.0)

    # ---- fc2 (120 -> 84) + ReLU, fc3 (84 -> 10) ----
    y = jnp.maximum(jnp.dot(y, f2_ref[...], preferred_element_type=f32) + fb2_ref[...],
                    0.0)
    y = jnp.dot(y, f3_ref[...], preferred_element_type=f32) + fb3_ref[...]
    o_ref[0] = y                                     # (1, 10)


# ---------------------------------------------------------------------------
# Wrapper
# ---------------------------------------------------------------------------
def net_forward(packed, x):
    """x: (N, 1, 32, 32) float32 -> logits (N, 10)."""
    n = x.shape[0]
    x2 = x.reshape(n, 1, 32 * 32).astype(jnp.float32)

    out = pl.pallas_call(
        _lenet_kernel,
        out_shape=jax.ShapeDtypeStruct((n, 1, 10), jnp.float32),
        grid=(n,),
        in_specs=[
            pl.BlockSpec((1, 1, 1024), lambda i: (i, 0, 0)),       # x (per sample)
            pl.BlockSpec((6, 9), lambda i: (0, 0)),                # conv1 w
            pl.BlockSpec((6, 1), lambda i: (0, 0)),                # conv1 b
            pl.BlockSpec((16, 54), lambda i: (0, 0)),              # conv2 w (permuted)
            pl.BlockSpec((16, 1), lambda i: (0, 0)),               # conv2 b
            pl.BlockSpec((16, 36, 120), lambda i: (0, 0, 0)),      # fc1 w (c, s, out)
            pl.BlockSpec((1, 120), lambda i: (0, 0)),              # fc1 b
            pl.BlockSpec((120, 84), lambda i: (0, 0)),             # fc2 w^T
            pl.BlockSpec((1, 84), lambda i: (0, 0)),               # fc2 b
            pl.BlockSpec((84, 10), lambda i: (0, 0)),              # fc3 w^T
            pl.BlockSpec((1, 10), lambda i: (0, 0)),               # fc3 b
            pl.BlockSpec((_M2W, 36), lambda i: (0, 0)),            # pool2 selection
        ],
        out_specs=pl.BlockSpec((1, 1, 10), lambda i: (i, 0, 0)),
        compiler_params=pltpu.CompilerParams(
            dimension_semantics=("parallel",)),                    # megacore on v7x
    )(x2, packed["w1"], packed["b1"], packed["w2"], packed["b2"],
      packed["f1"], packed["fb1"], packed["f2"], packed["fb2"],
      packed["f3"], packed["fb3"], packed["psel"])
    return out.reshape(n, 10)


# ---------------------------------------------------------------------------
# Parameters (deterministic, PyTorch-like uniform init) + one-time packing.
# ---------------------------------------------------------------------------
def init_params(key):
    ks = jax.random.split(key, 10)

    def u(k, shape, fan_in):
        bound = 1.0 / jnp.sqrt(jnp.float32(fan_in))
        return jax.random.uniform(k, shape, jnp.float32, -bound, bound)

    return {
        "conv1_w": u(ks[0], (6, 1, 3, 3), 1 * 3 * 3),
        "conv1_b": u(ks[1], (6,), 1 * 3 * 3),
        "conv2_w": u(ks[2], (16, 6, 3, 3), 6 * 3 * 3),
        "conv2_b": u(ks[3], (16,), 6 * 3 * 3),
        "fc1_w": u(ks[4], (120, 16 * 6 * 6), 16 * 6 * 6),
        "fc1_b": u(ks[5], (120,), 16 * 6 * 6),
        "fc2_w": u(ks[6], (84, 120), 120),
        "fc2_b": u(ks[7], (84,), 120),
        "fc3_w": u(ks[8], (10, 84), 84),
        "fc3_b": u(ks[9], (10,), 84),
    }


def pack_params(params):
    """Pre-arrange weights for the kernel once (no .T / reshape in the hot path)."""
    return {
        "w1": params["conv1_w"].reshape(6, 9),                       # col = 3i + j
        "b1": params["conv1_b"].reshape(6, 1),
        # conv2: tap-major / channel-minor columns -> col = (3i + j)*6 + c, matching
        # the kernel's 9x (6, 727) im2col stacking.
        "w2": params["conv2_w"].transpose(0, 2, 3, 1).reshape(16, 54),
        "b2": params["conv2_b"].reshape(16, 1),
        "f1": params["fc1_w"].T.reshape(16, 36, 120),                # [c, 6a+b, out]
        "fb1": params["fc1_b"].reshape(1, 120),
        "f2": params["fc2_w"].T,                                     # (120, 84)
        "fb2": params["fc2_b"].reshape(1, 84),
        "f3": params["fc3_w"].T,                                     # (84, 10)
        "fb3": params["fc3_b"].reshape(1, 10),
        "psel": jnp.asarray(_POOL2_SEL),                             # (661, 36) one-hot
    }


# ---------------------------------------------------------------------------
# Pure-JAX reference (mirrors the PyTorch module) for a correctness check.
# ---------------------------------------------------------------------------
def net_reference(params, x):
    hi = jax.lax.Precision.HIGHEST
    dn = ("NCHW", "OIHW", "NCHW")
    y = jax.lax.conv_general_dilated(x, params["conv1_w"], (1, 1), "VALID",
                                     dimension_numbers=dn, precision=hi)
    y = jax.nn.relu(y + params["conv1_b"].reshape(1, 6, 1, 1))
    y = jax.lax.reduce_window(y, -jnp.inf, jax.lax.max,
                              (1, 1, 2, 2), (1, 1, 2, 2), "VALID")
    y = jax.lax.conv_general_dilated(y, params["conv2_w"], (1, 1), "VALID",
                                     dimension_numbers=dn, precision=hi)
    y = jax.nn.relu(y + params["conv2_b"].reshape(1, 16, 1, 1))
    y = jax.lax.reduce_window(y, -jnp.inf, jax.lax.max,
                              (1, 1, 2, 2), (1, 1, 2, 2), "VALID")
    y = y.reshape(y.shape[0], -1)                                    # (N, 576)
    y = jax.nn.relu(jnp.dot(y, params["fc1_w"].T, precision=hi) + params["fc1_b"])
    y = jax.nn.relu(jnp.dot(y, params["fc2_w"].T, precision=hi) + params["fc2_b"])
    y = jnp.dot(y, params["fc3_w"].T, precision=hi) + params["fc3_b"]
    return y


if __name__ == "__main__":
    key = jax.random.PRNGKey(0)
    pkey, xkey = jax.random.split(key)
    params = init_params(pkey)
    packed = pack_params(params)

    x = jax.random.normal(xkey, (2, 1, 32, 32), jnp.float32)

    fwd = jax.jit(net_forward)
    out = fwd(packed, x)
    out = jax.block_until_ready(out)

    assert out.shape == (2, 10) and out.dtype == jnp.float32
    assert bool(jnp.all(jnp.isfinite(out)))

    ref = jax.block_until_ready(net_reference(params, x))
    np.testing.assert_allclose(np.asarray(out), np.asarray(ref), rtol=2e-3, atol=2e-3)

    print("KERNEL_OK")
</pallas_src>

<mosaic_0001>
module attributes {stable_mosaic.version = 11 : i64} {
  func.func @_lenet_kernel(%arg0: i32, %arg1: memref<1x1x1024xf32, #tpu.memory_space<vmem>>, %arg2: memref<6x9xf32, #tpu.memory_space<vmem>>, %arg3: memref<6x1xf32, #tpu.memory_space<vmem>>, %arg4: memref<16x54xf32, #tpu.memory_space<vmem>>, %arg5: memref<16x1xf32, #tpu.memory_space<vmem>>, %arg6: memref<16x36x120xf32, #tpu.memory_space<vmem>>, %arg7: memref<1x120xf32, #tpu.memory_space<vmem>>, %arg8: memref<120x84xf32, #tpu.memory_space<vmem>>, %arg9: memref<1x84xf32, #tpu.memory_space<vmem>>, %arg10: memref<84x10xf32, #tpu.memory_space<vmem>>, %arg11: memref<1x10xf32, #tpu.memory_space<vmem>>, %arg12: memref<661x36xf32, #tpu.memory_space<vmem>>, %arg13: memref<1x1x10xf32, #tpu.memory_space<vmem>>) attributes {dimension_semantics = [#tpu.dimension_semantics<parallel>], iteration_bounds = array<i64: 2>, scalar_prefetch = 0 : i64, scratch_operands = 0 : i64, tpu.core_type = #tpu.core_type<tc>, window_params = [{transform_indices = @transform_0, window_bounds = array<i64: 1, 1, 1024>}, {pipeline_mode = #tpu.pipeline_mode<synchronous>, transform_indices = @transform_1, window_bounds = array<i64: 6, 9>}, {pipeline_mode = #tpu.pipeline_mode<synchronous>, transform_indices = @transform_2, window_bounds = array<i64: 6, 1>}, {pipeline_mode = #tpu.pipeline_mode<synchronous>, transform_indices = @transform_3, window_bounds = array<i64: 16, 54>}, {pipeline_mode = #tpu.pipeline_mode<synchronous>, transform_indices = @transform_4, window_bounds = array<i64: 16, 1>}, {pipeline_mode = #tpu.pipeline_mode<synchronous>, transform_indices = @transform_5, window_bounds = array<i64: 16, 36, 120>}, {pipeline_mode = #tpu.pipeline_mode<synchronous>, transform_indices = @transform_6, window_bounds = array<i64: 1, 120>}, {pipeline_mode = #tpu.pipeline_mode<synchronous>, transform_indices = @transform_7, window_bounds = array<i64: 120, 84>}, {pipeline_mode = #tpu.pipeline_mode<synchronous>, transform_indices = @transform_8, window_bounds = array<i64: 1, 84>}, {pipeline_mode = #tpu.pipeline_mode<synchronous>, transform_indices = @transform_9, window_bounds = array<i64: 84, 10>}, {pipeline_mode = #tpu.pipeline_mode<synchronous>, transform_indices = @transform_10, window_bounds = array<i64: 1, 10>}, {pipeline_mode = #tpu.pipeline_mode<synchronous>, transform_indices = @transform_11, window_bounds = array<i64: 661, 36>}, {transform_indices = @transform_12, window_bounds = array<i64: 1, 1, 10>}]} {
    %c0 = arith.constant 0 : index
    %c0_0 = arith.constant 0 : index
    %c0_1 = arith.constant 0 : index
    %0 = vector.load %arg1[%c0, %c0_0, %c0_1] : memref<1x1x1024xf32, #tpu.memory_space<vmem>>, vector<1x1x1024xf32>
    %1 = vector.shape_cast %0 : vector<1x1x1024xf32> to vector<1x1024xf32>
    %2 = vector.extract_strided_slice %1 {offsets = [0, 0], sizes = [1, 958], strides = [1, 1]} : vector<1x1024xf32> to vector<1x958xf32>
    %3 = vector.extract_strided_slice %1 {offsets = [0, 1], sizes = [1, 958], strides = [1, 1]} : vector<1x1024xf32> to vector<1x958xf32>
    %4 = vector.extract_strided_slice %1 {offsets = [0, 2], sizes = [1, 958], strides = [1, 1]} : vector<1x1024xf32> to vector<1x958xf32>
    %5 = vector.extract_strided_slice %1 {offsets = [0, 32], sizes = [1, 958], strides = [1, 1]} : vector<1x1024xf32> to vector<1x958xf32>
    %6 = vector.extract_strided_slice %1 {offsets = [0, 33], sizes = [1, 958], strides = [1, 1]} : vector<1x1024xf32> to vector<1x958xf32>
    %7 = vector.extract_strided_slice %1 {offsets = [0, 34], sizes = [1, 958], strides = [1, 1]} : vector<1x1024xf32> to vector<1x958xf32>
    %8 = vector.extract_strided_slice %1 {offsets = [0, 64], sizes = [1, 958], strides = [1, 1]} : vector<1x1024xf32> to vector<1x958xf32>
    %9 = vector.extract_strided_slice %1 {offsets = [0, 65], sizes = [1, 958], strides = [1, 1]} : vector<1x1024xf32> to vector<1x958xf32>
    %10 = vector.extract_strided_slice %1 {offsets = [0, 66], sizes = [1, 958], strides = [1, 1]} : vector<1x1024xf32> to vector<1x958xf32>
    %11 = tpu.concatenate %2, %3, %4, %5, %6, %7, %8, %9, %10 in 0 : vector<1x958xf32>, vector<1x958xf32>, vector<1x958xf32>, vector<1x958xf32>, vector<1x958xf32>, vector<1x958xf32>, vector<1x958xf32>, vector<1x958xf32>, vector<1x958xf32> -> vector<9x958xf32>
    %c0_2 = arith.constant 0 : index
    %c0_3 = arith.constant 0 : index
    %12 = vector.load %arg2[%c0_2, %c0_3] : memref<6x9xf32, #tpu.memory_space<vmem>>, vector<6x9xf32>
    %cst = arith.constant dense<0.000000e+00> : vector<6x958xf32>
    %13 = tpu.matmul %12, %11, %cst {dimension_numbers = #tpu.dot_dimension_numbers<[1], [0], [0], [1], [0, 0, 1, 1], [], []>} : vector<6x9xf32>, vector<9x958xf32>, vector<6x958xf32> -> vector<6x958xf32>
    %c0_4 = arith.constant 0 : index
    %c0_5 = arith.constant 0 : index
    %14 = vector.load %arg3[%c0_4, %c0_5] : memref<6x1xf32, #tpu.memory_space<vmem>>, vector<6x1xf32>
    %15 = vector.broadcast %14 : vector<6x1xf32> to vector<6x958xf32>
    %16 = arith.addf %13, %15 : vector<6x958xf32>
    %cst_6 = arith.constant 0.000000e+00 : f32
    %17 = vector.broadcast %cst_6 : f32 to vector<6x958xf32>
    %18 = arith.maximumf %16, %17 : vector<6x958xf32>
    %19 = vector.extract_strided_slice %18 {offsets = [0, 0], sizes = [6, 925], strides = [1, 1]} : vector<6x958xf32> to vector<6x925xf32>
    %20 = vector.extract_strided_slice %18 {offsets = [0, 1], sizes = [6, 925], strides = [1, 1]} : vector<6x958xf32> to vector<6x925xf32>
    %21 = arith.maximumf %19, %20 : vector<6x925xf32>
    %22 = vector.extract_strided_slice %18 {offsets = [0, 32], sizes = [6, 925], strides = [1, 1]} : vector<6x958xf32> to vector<6x925xf32>
    %23 = vector.extract_strided_slice %18 {offsets = [0, 33], sizes = [6, 925], strides = [1, 1]} : vector<6x958xf32> to vector<6x925xf32>
    %24 = arith.maximumf %22, %23 : vector<6x925xf32>
    %25 = arith.maximumf %21, %24 : vector<6x925xf32>
    %26 = vector.extract_strided_slice %25 {offsets = [0, 0], sizes = [6, 727], strides = [1, 1]} : vector<6x925xf32> to vector<6x727xf32>
    %27 = vector.extract_strided_slice %25 {offsets = [0, 2], sizes = [6, 727], strides = [1, 1]} : vector<6x925xf32> to vector<6x727xf32>
    %28 = vector.extract_strided_slice %25 {offsets = [0, 4], sizes = [6, 727], strides = [1, 1]} : vector<6x925xf32> to vector<6x727xf32>
    %29 = vector.extract_strided_slice %25 {offsets = [0, 64], sizes = [6, 727], strides = [1, 1]} : vector<6x925xf32> to vector<6x727xf32>
    %30 = vector.extract_strided_slice %25 {offsets = [0, 66], sizes = [6, 727], strides = [1, 1]} : vector<6x925xf32> to vector<6x727xf32>
    %31 = vector.extract_strided_slice %25 {offsets = [0, 68], sizes = [6, 727], strides = [1, 1]} : vector<6x925xf32> to vector<6x727xf32>
    %32 = vector.extract_strided_slice %25 {offsets = [0, 128], sizes = [6, 727], strides = [1, 1]} : vector<6x925xf32> to vector<6x727xf32>
    %33 = vector.extract_strided_slice %25 {offsets = [0, 130], sizes = [6, 727], strides = [1, 1]} : vector<6x925xf32> to vector<6x727xf32>
    %34 = vector.extract_strided_slice %25 {offsets = [0, 132], sizes = [6, 727], strides = [1, 1]} : vector<6x925xf32> to vector<6x727xf32>
    %35 = tpu.concatenate %26, %27, %28, %29, %30, %31, %32, %33, %34 in 0 : vector<6x727xf32>, vector<6x727xf32>, vector<6x727xf32>, vector<6x727xf32>, vector<6x727xf32>, vector<6x727xf32>, vector<6x727xf32>, vector<6x727xf32>, vector<6x727xf32> -> vector<54x727xf32>
    %c0_7 = arith.constant 0 : index
    %c0_8 = arith.constant 0 : index
    %36 = vector.load %arg4[%c0_7, %c0_8] : memref<16x54xf32, #tpu.memory_space<vmem>>, vector<16x54xf32>
    %cst_9 = arith.constant dense<0.000000e+00> : vector<16x727xf32>
    %37 = tpu.matmul %36, %35, %cst_9 {dimension_numbers = #tpu.dot_dimension_numbers<[1], [0], [0], [1], [0, 0, 1, 1], [], []>} : vector<16x54xf32>, vector<54x727xf32>, vector<16x727xf32> -> vector<16x727xf32>
    %c0_10 = arith.constant 0 : index
    %c0_11 = arith.constant 0 : index
    %38 = vector.load %arg5[%c0_10, %c0_11] : memref<16x1xf32, #tpu.memory_space<vmem>>, vector<16x1xf32>
    %39 = vector.broadcast %38 : vector<16x1xf32> to vector<16x727xf32>
    %40 = arith.addf %37, %39 : vector<16x727xf32>
    %cst_12 = arith.constant 0.000000e+00 : f32
    %41 = vector.broadcast %cst_12 : f32 to vector<16x727xf32>
    %42 = arith.maximumf %40, %41 : vector<16x727xf32>
    %43 = vector.extract_strided_slice %42 {offsets = [0, 0], sizes = [16, 661], strides = [1, 1]} : vector<16x727xf32> to vector<16x661xf32>
    %44 = vector.extract_strided_slice %42 {offsets = [0, 2], sizes = [16, 661], strides = [1, 1]} : vector<16x727xf32> to vector<16x661xf32>
    %45 = arith.maximumf %43, %44 : vector<16x661xf32>
    %46 = vector.extract_strided_slice %42 {offsets = [0, 64], sizes = [16, 661], strides = [1, 1]} : vector<16x727xf32> to vector<16x661xf32>
    %47 = vector.extract_strided_slice %42 {offsets = [0, 66], sizes = [16, 661], strides = [1, 1]} : vector<16x727xf32> to vector<16x661xf32>
    %48 = arith.maximumf %46, %47 : vector<16x661xf32>
    %49 = arith.maximumf %45, %48 : vector<16x661xf32>
    %c0_13 = arith.constant 0 : index
    %c0_14 = arith.constant 0 : index
    %50 = vector.load %arg12[%c0_13, %c0_14] : memref<661x36xf32, #tpu.memory_space<vmem>>, vector<661x36xf32>
    %cst_15 = arith.constant dense<0.000000e+00> : vector<16x36xf32>
    %51 = tpu.matmul %49, %50, %cst_15 {dimension_numbers = #tpu.dot_dimension_numbers<[1], [0], [0], [1], [0, 0, 1, 1], [], []>} : vector<16x661xf32>, vector<661x36xf32>, vector<16x36xf32> -> vector<16x36xf32>
    %c0_16 = arith.constant 0 : index
    %c0_17 = arith.constant 0 : index
    %52 = vector.load %arg7[%c0_16, %c0_17] : memref<1x120xf32, #tpu.memory_space<vmem>>, vector<1x120xf32>
    %53 = vector.extract_strided_slice %51 {offsets = [0, 0], sizes = [1, 36], strides = [1, 1]} : vector<16x36xf32> to vector<1x36xf32>
    %c0_18 = arith.constant 0 : index
    %c0_19 = arith.constant 0 : index
    %c0_20 = arith.constant 0 : index
    %54 = vector.load %arg6[%c0_18, %c0_19, %c0_20] : memref<16x36x120xf32, #tpu.memory_space<vmem>>, vector<1x36x120xf32>
    %55 = vector.shape_cast %54 : vector<1x36x120xf32> to vector<36x120xf32>
    %cst_21 = arith.constant dense<0.000000e+00> : vector<1x120xf32>
    %56 = tpu.matmul %53, %55, %cst_21 {dimension_numbers = #tpu.dot_dimension_numbers<[1], [0], [0], [1], [0, 0, 1, 1], [], []>} : vector<1x36xf32>, vector<36x120xf32>, vector<1x120xf32> -> vector<1x120xf32>
    %57 = arith.addf %52, %56 : vector<1x120xf32>
    %58 = vector.extract_strided_slice %51 {offsets = [1, 0], sizes = [1, 36], strides = [1, 1]} : vector<16x36xf32> to vector<1x36xf32>
    %c1 = arith.constant 1 : index
    %c0_22 = arith.constant 0 : index
    %c0_23 = arith.constant 0 : index
    %59 = vector.load %arg6[%c1, %c0_22, %c0_23] : memref<16x36x120xf32, #tpu.memory_space<vmem>>, vector<1x36x120xf32>
    %60 = vector.shape_cast %59 : vector<1x36x120xf32> to vector<36x120xf32>
    %cst_24 = arith.constant dense<0.000000e+00> : vector<1x120xf32>
    %61 = tpu.matmul %58, %60, %cst_24 {dimension_numbers = #tpu.dot_dimension_numbers<[1], [0], [0], [1], [0, 0, 1, 1], [], []>} : vector<1x36xf32>, vector<36x120xf32>, vector<1x120xf32> -> vector<1x120xf32>
    %62 = arith.addf %57, %61 : vector<1x120xf32>
    %63 = vector.extract_strided_slice %51 {offsets = [2, 0], sizes = [1, 36], strides = [1, 1]} : vector<16x36xf32> to vector<1x36xf32>
    %c2 = arith.constant 2 : index
    %c0_25 = arith.constant 0 : index
    %c0_26 = arith.constant 0 : index
    %64 = vector.load %arg6[%c2, %c0_25, %c0_26] : memref<16x36x120xf32, #tpu.memory_space<vmem>>, vector<1x36x120xf32>
    %65 = vector.shape_cast %64 : vector<1x36x120xf32> to vector<36x120xf32>
    %cst_27 = arith.constant dense<0.000000e+00> : vector<1x120xf32>
    %66 = tpu.matmul %63, %65, %cst_27 {dimension_numbers = #tpu.dot_dimension_numbers<[1], [0], [0], [1], [0, 0, 1, 1], [], []>} : vector<1x36xf32>, vector<36x120xf32>, vector<1x120xf32> -> vector<1x120xf32>
    %67 = arith.addf %62, %66 : vector<1x120xf32>
    %68 = vector.extract_strided_slice %51 {offsets = [3, 0], sizes = [1, 36], strides = [1, 1]} : vector<16x36xf32> to vector<1x36xf32>
    %c3 = arith.constant 3 : index
    %c0_28 = arith.constant 0 : index
    %c0_29 = arith.constant 0 : index
    %69 = vector.load %arg6[%c3, %c0_28, %c0_29] : memref<16x36x120xf32, #tpu.memory_space<vmem>>, vector<1x36x120xf32>
    %70 = vector.shape_cast %69 : vector<1x36x120xf32> to vector<36x120xf32>
    %cst_30 = arith.constant dense<0.000000e+00> : vector<1x120xf32>
    %71 = tpu.matmul %68, %70, %cst_30 {dimension_numbers = #tpu.dot_dimension_numbers<[1], [0], [0], [1], [0, 0, 1, 1], [], []>} : vector<1x36xf32>, vector<36x120xf32>, vector<1x120xf32> -> vector<1x120xf32>
    %72 = arith.addf %67, %71 : vector<1x120xf32>
    %73 = vector.extract_strided_slice %51 {offsets = [4, 0], sizes = [1, 36], strides = [1, 1]} : vector<16x36xf32> to vector<1x36xf32>
    %c4 = arith.constant 4 : index
    %c0_31 = arith.constant 0 : index
    %c0_32 = arith.constant 0 : index
    %74 = vector.load %arg6[%c4, %c0_31, %c0_32] : memref<16x36x120xf32, #tpu.memory_space<vmem>>, vector<1x36x120xf32>
    %75 = vector.shape_cast %74 : vector<1x36x120xf32> to vector<36x120xf32>
    %cst_33 = arith.constant dense<0.000000e+00> : vector<1x120xf32>
    %76 = tpu.matmul %73, %75, %cst_33 {dimension_numbers = #tpu.dot_dimension_numbers<[1], [0], [0], [1], [0, 0, 1, 1], [], []>} : vector<1x36xf32>, vector<36x120xf32>, vector<1x120xf32> -> vector<1x120xf32>
    %77 = arith.addf %72, %76 : vector<1x120xf32>
    %78 = vector.extract_strided_slice %51 {offsets = [5, 0], sizes = [1, 36], strides = [1, 1]} : vector<16x36xf32> to vector<1x36xf32>
    %c5 = arith.constant 5 : index
    %c0_34 = arith.constant 0 : index
    %c0_35 = arith.constant 0 : index
    %79 = vector.load %arg6[%c5, %c0_34, %c0_35] : memref<16x36x120xf32, #tpu.memory_space<vmem>>, vector<1x36x120xf32>
    %80 = vector.shape_cast %79 : vector<1x36x120xf32> to vector<36x120xf32>
    %cst_36 = arith.constant dense<0.000000e+00> : vector<1x120xf32>
    %81 = tpu.matmul %78, %80, %cst_36 {dimension_numbers = #tpu.dot_dimension_numbers<[1], [0], [0], [1], [0, 0, 1, 1], [], []>} : vector<1x36xf32>, vector<36x120xf32>, vector<1x120xf32> -> vector<1x120xf32>
    %82 = arith.addf %77, %81 : vector<1x120xf32>
    %83 = vector.extract_strided_slice %51 {offsets = [6, 0], sizes = [1, 36], strides = [1, 1]} : vector<16x36xf32> to vector<1x36xf32>
    %c6 = arith.constant 6 : index
    %c0_37 = arith.constant 0 : index
    %c0_38 = arith.constant 0 : index
    %84 = vector.load %arg6[%c6, %c0_37, %c0_38] : memref<16x36x120xf32, #tpu.memory_space<vmem>>, vector<1x36x120xf32>
    %85 = vector.shape_cast %84 : vector<1x36x120xf32> to vector<36x120xf32>
    %cst_39 = arith.constant dense<0.000000e+00> : vector<1x120xf32>
    %86 = tpu.matmul %83, %85, %cst_39 {dimension_numbers = #tpu.dot_dimension_numbers<[1], [0], [0], [1], [0, 0, 1, 1], [], []>} : vector<1x36xf32>, vector<36x120xf32>, vector<1x120xf32> -> vector<1x120xf32>
    %87 = arith.addf %82, %86 : vector<1x120xf32>
    %88 = vector.extract_strided_slice %51 {offsets = [7, 0], sizes = [1, 36], strides = [1, 1]} : vector<16x36xf32> to vector<1x36xf32>
    %c7 = arith.constant 7 : index
    %c0_40 = arith.constant 0 : index
    %c0_41 = arith.constant 0 : index
    %89 = vector.load %arg6[%c7, %c0_40, %c0_41] : memref<16x36x120xf32, #tpu.memory_space<vmem>>, vector<1x36x120xf32>
    %90 = vector.shape_cast %89 : vector<1x36x120xf32> to vector<36x120xf32>
    %cst_42 = arith.constant dense<0.000000e+00> : vector<1x120xf32>
    %91 = tpu.matmul %88, %90, %cst_42 {dimension_numbers = #tpu.dot_dimension_numbers<[1], [0], [0], [1], [0, 0, 1, 1], [], []>} : vector<1x36xf32>, vector<36x120xf32>, vector<1x120xf32> -> vector<1x120xf32>
    %92 = arith.addf %87, %91 : vector<1x120xf32>
    %93 = vector.extract_strided_slice %51 {offsets = [8, 0], sizes = [1, 36], strides = [1, 1]} : vector<16x36xf32> to vector<1x36xf32>
    %c8 = arith.constant 8 : index
    %c0_43 = arith.constant 0 : index
    %c0_44 = arith.constant 0 : index
    %94 = vector.load %arg6[%c8, %c0_43, %c0_44] : memref<16x36x120xf32, #tpu.memory_space<vmem>>, vector<1x36x120xf32>
    %95 = vector.shape_cast %94 : vector<1x36x120xf32> to vector<36x120xf32>
    %cst_45 = arith.constant dense<0.000000e+00> : vector<1x120xf32>
    %96 = tpu.matmul %93, %95, %cst_45 {dimension_numbers = #tpu.dot_dimension_numbers<[1], [0], [0], [1], [0, 0, 1, 1], [], []>} : vector<1x36xf32>, vector<36x120xf32>, vector<1x120xf32> -> vector<1x120xf32>
    %97 = arith.addf %92, %96 : vector<1x120xf32>
    %98 = vector.extract_strided_slice %51 {offsets = [9, 0], sizes = [1, 36], strides = [1, 1]} : vector<16x36xf32> to vector<1x36xf32>
    %c9 = arith.constant 9 : index
    %c0_46 = arith.constant 0 : index
    %c0_47 = arith.constant 0 : index
    %99 = vector.load %arg6[%c9, %c0_46, %c0_47] : memref<16x36x120xf32, #tpu.memory_space<vmem>>, vector<1x36x120xf32>
    %100 = vector.shape_cast %99 : vector<1x36x120xf32> to vector<36x120xf32>
    %cst_48 = arith.constant dense<0.000000e+00> : vector<1x120xf32>
    %101 = tpu.matmul %98, %100, %cst_48 {dimension_numbers = #tpu.dot_dimension_numbers<[1], [0], [0], [1], [0, 0, 1, 1], [], []>} : vector<1x36xf32>, vector<36x120xf32>, vector<1x120xf32> -> vector<1x120xf32>
    %102 = arith.addf %97, %101 : vector<1x120xf32>
    %103 = vector.extract_strided_slice %51 {offsets = [10, 0], sizes = [1, 36], strides = [1, 1]} : vector<16x36xf32> to vector<1x36xf32>
    %c10 = arith.constant 10 : index
    %c0_49 = arith.constant 0 : index
    %c0_50 = arith.constant 0 : index
    %104 = vector.load %arg6[%c10, %c0_49, %c0_50] : memref<16x36x120xf32, #tpu.memory_space<vmem>>, vector<1x36x120xf32>
    %105 = vector.shape_cast %104 : vector<1x36x120xf32> to vector<36x120xf32>
    %cst_51 = arith.constant dense<0.000000e+00> : vector<1x120xf32>
    %106 = tpu.matmul %103, %105, %cst_51 {dimension_numbers = #tpu.dot_dimension_numbers<[1], [0], [0], [1], [0, 0, 1, 1], [], []>} : vector<1x36xf32>, vector<36x120xf32>, vector<1x120xf32> -> vector<1x120xf32>
    %107 = arith.addf %102, %106 : vector<1x120xf32>
    %108 = vector.extract_strided_slice %51 {offsets = [11, 0], sizes = [1, 36], strides = [1, 1]} : vector<16x36xf32> to vector<1x36xf32>
    %c11 = arith.constant 11 : index
    %c0_52 = arith.constant 0 : index
    %c0_53 = arith.constant 0 : index
    %109 = vector.load %arg6[%c11, %c0_52, %c0_53] : memref<16x36x120xf32, #tpu.memory_space<vmem>>, vector<1x36x120xf32>
    %110 = vector.shape_cast %109 : vector<1x36x120xf32> to vector<36x120xf32>
    %cst_54 = arith.constant dense<0.000000e+00> : vector<1x120xf32>
    %111 = tpu.matmul %108, %110, %cst_54 {dimension_numbers = #tpu.dot_dimension_numbers<[1], [0], [0], [1], [0, 0, 1, 1], [], []>} : vector<1x36xf32>, vector<36x120xf32>, vector<1x120xf32> -> vector<1x120xf32>
    %112 = arith.addf %107, %111 : vector<1x120xf32>
    %113 = vector.extract_strided_slice %51 {offsets = [12, 0], sizes = [1, 36], strides = [1, 1]} : vector<16x36xf32> to vector<1x36xf32>
    %c12 = arith.constant 12 : index
    %c0_55 = arith.constant 0 : index
    %c0_56 = arith.constant 0 : index
    %114 = vector.load %arg6[%c12, %c0_55, %c0_56] : memref<16x36x120xf32, #tpu.memory_space<vmem>>, vector<1x36x120xf32>
    %115 = vector.shape_cast %114 : vector<1x36x120xf32> to vector<36x120xf32>
    %cst_57 = arith.constant dense<0.000000e+00> : vector<1x120xf32>
    %116 = tpu.matmul %113, %115, %cst_57 {dimension_numbers = #tpu.dot_dimension_numbers<[1], [0], [0], [1], [0, 0, 1, 1], [], []>} : vector<1x36xf32>, vector<36x120xf32>, vector<1x120xf32> -> vector<1x120xf32>
    %117 = arith.addf %112, %116 : vector<1x120xf32>
    %118 = vector.extract_strided_slice %51 {offsets = [13, 0], sizes = [1, 36], strides = [1, 1]} : vector<16x36xf32> to vector<1x36xf32>
    %c13 = arith.constant 13 : index
    %c0_58 = arith.constant 0 : index
    %c0_59 = arith.constant 0 : index
    %119 = vector.load %arg6[%c13, %c0_58, %c0_59] : memref<16x36x120xf32, #tpu.memory_space<vmem>>, vector<1x36x120xf32>
    %120 = vector.shape_cast %119 : vector<1x36x120xf32> to vector<36x120xf32>
    %cst_60 = arith.constant dense<0.000000e+00> : vector<1x120xf32>
    %121 = tpu.matmul %118, %120, %cst_60 {dimension_numbers = #tpu.dot_dimension_numbers<[1], [0], [0], [1], [0, 0, 1, 1], [], []>} : vector<1x36xf32>, vector<36x120xf32>, vector<1x120xf32> -> vector<1x120xf32>
    %122 = arith.addf %117, %121 : vector<1x120xf32>
    %123 = vector.extract_strided_slice %51 {offsets = [14, 0], sizes = [1, 36], strides = [1, 1]} : vector<16x36xf32> to vector<1x36xf32>
    %c14 = arith.constant 14 : index
    %c0_61 = arith.constant 0 : index
    %c0_62 = arith.constant 0 : index
    %124 = vector.load %arg6[%c14, %c0_61, %c0_62] : memref<16x36x120xf32, #tpu.memory_space<vmem>>, vector<1x36x120xf32>
    %125 = vector.shape_cast %124 : vector<1x36x120xf32> to vector<36x120xf32>
    %cst_63 = arith.constant dense<0.000000e+00> : vector<1x120xf32>
    %126 = tpu.matmul %123, %125, %cst_63 {dimension_numbers = #tpu.dot_dimension_numbers<[1], [0], [0], [1], [0, 0, 1, 1], [], []>} : vector<1x36xf32>, vector<36x120xf32>, vector<1x120xf32> -> vector<1x120xf32>
    %127 = arith.addf %122, %126 : vector<1x120xf32>
    %128 = vector.extract_strided_slice %51 {offsets = [15, 0], sizes = [1, 36], strides = [1, 1]} : vector<16x36xf32> to vector<1x36xf32>
    %c15 = arith.constant 15 : index
    %c0_64 = arith.constant 0 : index
    %c0_65 = arith.constant 0 : index
    %129 = vector.load %arg6[%c15, %c0_64, %c0_65] : memref<16x36x120xf32, #tpu.memory_space<vmem>>, vector<1x36x120xf32>
    %130 = vector.shape_cast %129 : vector<1x36x120xf32> to vector<36x120xf32>
    %cst_66 = arith.constant dense<0.000000e+00> : vector<1x120xf32>
    %131 = tpu.matmul %128, %130, %cst_66 {dimension_numbers = #tpu.dot_dimension_numbers<[1], [0], [0], [1], [0, 0, 1, 1], [], []>} : vector<1x36xf32>, vector<36x120xf32>, vector<1x120xf32> -> vector<1x120xf32>
    %132 = arith.addf %127, %131 : vector<1x120xf32>
    %cst_67 = arith.constant 0.000000e+00 : f32
    %133 = vector.broadcast %cst_67 : f32 to vector<1x120xf32>
    %134 = arith.maximumf %132, %133 : vector<1x120xf32>
    %c0_68 = arith.constant 0 : index
    %c0_69 = arith.constant 0 : index
    %135 = vector.load %arg8[%c0_68, %c0_69] : memref<120x84xf32, #tpu.memory_space<vmem>>, vector<120x84xf32>
    %cst_70 = arith.constant dense<0.000000e+00> : vector<1x84xf32>
    %136 = tpu.matmul %134, %135, %cst_70 {dimension_numbers = #tpu.dot_dimension_numbers<[1], [0], [0], [1], [0, 0, 1, 1], [], []>} : vector<1x120xf32>, vector<120x84xf32>, vector<1x84xf32> -> vector<1x84xf32>
    %c0_71 = arith.constant 0 : index
    %c0_72 = arith.constant 0 : index
    %137 = vector.load %arg9[%c0_71, %c0_72] : memref<1x84xf32, #tpu.memory_space<vmem>>, vector<1x84xf32>
    %138 = arith.addf %136, %137 : vector<1x84xf32>
    %cst_73 = arith.constant 0.000000e+00 : f32
    %139 = vector.broadcast %cst_73 : f32 to vector<1x84xf32>
    %140 = arith.maximumf %138, %139 : vector<1x84xf32>
    %c0_74 = arith.constant 0 : index
    %c0_75 = arith.constant 0 : index
    %141 = vector.load %arg10[%c0_74, %c0_75] : memref<84x10xf32, #tpu.memory_space<vmem>>, vector<84x10xf32>
    %cst_76 = arith.constant dense<0.000000e+00> : vector<1x10xf32>
    %142 = tpu.matmul %140, %141, %cst_76 {dimension_numbers = #tpu.dot_dimension_numbers<[1], [0], [0], [1], [0, 0, 1, 1], [], []>} : vector<1x84xf32>, vector<84x10xf32>, vector<1x10xf32> -> vector<1x10xf32>
    %c0_77 = arith.constant 0 : index
    %c0_78 = arith.constant 0 : index
    %143 = vector.load %arg11[%c0_77, %c0_78] : memref<1x10xf32, #tpu.memory_space<vmem>>, vector<1x10xf32>
    %144 = arith.addf %142, %143 : vector<1x10xf32>
    %c0_79 = arith.constant 0 : index
    %c0_80 = arith.constant 0 : index
    %c0_81 = arith.constant 0 : index
    %145 = vector.load %arg13[%c0_79, %c0_80, %c0_81] : memref<1x1x10xf32, #tpu.memory_space<vmem>>, vector<1x1x10xf32>
    %146 = vector.shape_cast %145 : vector<1x1x10xf32> to vector<1x10xf32>
    %147 = vector.shape_cast %144 : vector<1x10xf32> to vector<1x1x10xf32>
    tpu.vector_store %arg13[%c0_79, %c0_80, %c0_81], %147 {strides = array<i32>} : memref<1x1x10xf32, #tpu.memory_space<vmem>>, vector<1x1x10xf32>,
    return
  }
  func.func @transform_0(%arg0: i32) -> (i32, i32, i32) {
    %c0_i32 = arith.constant 0 : i32
    %c0_i32_0 = arith.constant 0 : i32
    %c0_i32_1 = arith.constant 0 : i32
    return %arg0, %c0_i32, %c0_i32_0 : i32, i32, i32
  }
  func.func @transform_1(%arg0: i32) -> (i32, i32) {
    %c0_i32 = arith.constant 0 : i32
    %c0_i32_0 = arith.constant 0 : i32
    %c0_i32_1 = arith.constant 0 : i32
    return %c0_i32, %c0_i32_0 : i32, i32
  }
  func.func @transform_2(%arg0: i32) -> (i32, i32) {
    %c0_i32 = arith.constant 0 : i32
    %c0_i32_0 = arith.constant 0 : i32
    %c0_i32_1 = arith.constant 0 : i32
    return %c0_i32, %c0_i32_0 : i32, i32
  }
  func.func @transform_3(%arg0: i32) -> (i32, i32) {
    %c0_i32 = arith.constant 0 : i32
    %c0_i32_0 = arith.constant 0 : i32
    %c0_i32_1 = arith.constant 0 : i32
    return %c0_i32, %c0_i32_0 : i32, i32
  }
  func.func @transform_4(%arg0: i32) -> (i32, i32) {
    %c0_i32 = arith.constant 0 : i32
    %c0_i32_0 = arith.constant 0 : i32
    %c0_i32_1 = arith.constant 0 : i32
    return %c0_i32, %c0_i32_0 : i32, i32
  }
  func.func @transform_5(%arg0: i32) -> (i32, i32, i32) {
    %c0_i32 = arith.constant 0 : i32
    %c0_i32_0 = arith.constant 0 : i32
    %c0_i32_1 = arith.constant 0 : i32
    %c0_i32_2 = arith.constant 0 : i32
    return %c0_i32, %c0_i32_0, %c0_i32_1 : i32, i32, i32
  }
  func.func @transform_6(%arg0: i32) -> (i32, i32) {
    %c0_i32 = arith.constant 0 : i32
    %c0_i32_0 = arith.constant 0 : i32
    %c0_i32_1 = arith.constant 0 : i32
    return %c0_i32, %c0_i32_0 : i32, i32
  }
  func.func @transform_7(%arg0: i32) -> (i32, i32) {
    %c0_i32 = arith.constant 0 : i32
    %c0_i32_0 = arith.constant 0 : i32
    %c0_i32_1 = arith.constant 0 : i32
    return %c0_i32, %c0_i32_0 : i32, i32
  }
  func.func @transform_8(%arg0: i32) -> (i32, i32) {
    %c0_i32 = arith.constant 0 : i32
    %c0_i32_0 = arith.constant 0 : i32
    %c0_i32_1 = arith.constant 0 : i32
    return %c0_i32, %c0_i32_0 : i32, i32
  }
  func.func @transform_9(%arg0: i32) -> (i32, i32) {
    %c0_i32 = arith.constant 0 : i32
    %c0_i32_0 = arith.constant 0 : i32
    %c0_i32_1 = arith.constant 0 : i32
    return %c0_i32, %c0_i32_0 : i32, i32
  }
  func.func @transform_10(%arg0: i32) -> (i32, i32) {
    %c0_i32 = arith.constant 0 : i32
    %c0_i32_0 = arith.constant 0 : i32
    %c0_i32_1 = arith.constant 0 : i32
    return %c0_i32, %c0_i32_0 : i32, i32
  }
  func.func @transform_11(%arg0: i32) -> (i32, i32) {
    %c0_i32 = arith.constant 0 : i32
    %c0_i32_0 = arith.constant 0 : i32
    %c0_i32_1 = arith.constant 0 : i32
    return %c0_i32, %c0_i32_0 : i32, i32
  }
  func.func @transform_12(%arg0: i32) -> (i32, i32, i32) {
    %c0_i32 = arith.constant 0 : i32
    %c0_i32_0 = arith.constant 0 : i32
    %c0_i32_1 = arith.constant 0 : i32
    return %arg0, %c0_i32, %c0_i32_0 : i32, i32, i32
  }
}

</mosaic_0001>

<llo_original>
// kernel: net_forward.1
$region0: #{net_forward.1}
  #allocation0 [shape = 'u32[]', space=smem, size = 0x4, offset = 0x4, fixed_abs, tag = 'smem constant byte address 0x4 - core index']
  #allocation1 [shape = 'u32[144,128]{1,0:T(1,128)}', space=vmem, size = 0x12000, scoped, tag = 'internal scratch']
  %s0 = inlined_call_operand.vmem [shape: f32[2,1,1024], index: 0, kind: input, shape index: {}]
  %s1 = inlined_call_operand.vmem [shape: f32[6,9], index: 1, kind: input, shape index: {}]
  %s2 = inlined_call_operand.vmem [shape: f32[6,1], index: 2, kind: input, shape index: {}]
  %s3 = inlined_call_operand.vmem [shape: f32[16,54], index: 3, kind: input, shape index: {}]
  %s4 = inlined_call_operand.vmem [shape: f32[16,1], index: 4, kind: input, shape index: {}]
  %s5 = inlined_call_operand.vmem [shape: f32[16,36,120], index: 5, kind: input, shape index: {}]
  %s6 = inlined_call_operand.vmem [shape: f32[1,120], index: 6, kind: input, shape index: {}]
  %s7 = inlined_call_operand.vmem [shape: f32[120,84], index: 7, kind: input, shape index: {}]
  %s8 = inlined_call_operand.vmem [shape: f32[1,84], index: 8, kind: input, shape index: {}]
  %s9 = inlined_call_operand.vmem [shape: f32[84,10], index: 9, kind: input, shape index: {}]
  %s10 = inlined_call_operand.vmem [shape: f32[1,10], index: 10, kind: input, shape index: {}]
  %s11 = inlined_call_operand.vmem [shape: f32[661,36], index: 11, kind: input, shape index: {}]
  %s12 = inlined_call_operand.hbm [shape: f32[2,1,10], index: 12, kind: output, shape index: {}]
  %s13 = sld [smem:[#allocation0]]
  $region81: #{net_forward.1} parent=0
    _
  %s15 = ssub.s32 1, %s13
  %s16 = scalar_select 0, %s15, %s13
  $region1: #{net_forward.1} parent=0
    #allocation2 [shape = 'u8[1024]{0}', space=vmem, size = 0x400, scoped, tag = 'output window, operand 0']
    #allocation3 [shape = 's32[2]{0}', space=sflag, size = 0x8, scoped, tag = 'scoped memory for net_forward.1']
    %17 = vsyncpa [#allocation3], 0
    %s18 = scalar_lea.sflag [#allocation3], 1
    %19 = vsyncpa %s18, 0
    loop: start=0, step=1, limit=4
    $region2: #{net_forward.1} parent=1 // loop_pre_header
      _
    $region3: #{net_forward.1} parent=1 // loop_header
      %s21 = sphi 0, %s25
      %p22 = scmp.ge.s32.totalorder %s21, 4
      %s31 = sphi 0, %s33
      %s34 = sphi 0, %s31
      %s35 = sphi 0, %s34
      %s51 = sphi 0, %s35
      %s55 = sphi 0, %s55
      %s57 = sphi 0, %s55
      %s58 = sphi 0, %s57
      %s72 = sphi 0, %s58
      %s76 = sphi 0, %s76
      %s78 = sphi 0, %s76
      %s79 = sphi 0, %s78
      %s93 = sphi 0, %s79
      %s97 = sphi 0, %s97
      %s99 = sphi 0, %s97
      %s100 = sphi 0, %s99
      %s114 = sphi 0, %s100
      %s118 = sphi 0, %s118
      %s120 = sphi 0, %s118
      %s121 = sphi 0, %s120
      %s135 = sphi 0, %s121
      %s139 = sphi 0, %s139
      %s141 = sphi 0, %s139
      %s142 = sphi 0, %s141
      %s156 = sphi 0, %s142
      %s160 = sphi 0, %s160
      %s162 = sphi 0, %s160
      %s163 = sphi 0, %s162
      %s177 = sphi 0, %s163
      %s181 = sphi 0, %s181
      %s183 = sphi 0, %s181
      %s184 = sphi 0, %s183
      %s198 = sphi 0, %s184
      %s202 = sphi 0, %s202
      %s204 = sphi 0, %s202
      %s205 = sphi 0, %s204
      %s219 = sphi 0, %s205
      %s223 = sphi 0, %s223
      %s225 = sphi 0, %s223
      %s226 = sphi 0, %s225
      %s240 = sphi 0, %s226
      %s244 = sphi 0, %s244
      %s246 = sphi 0, %s244
      %s247 = sphi 0, %s246
      %s261 = sphi 0, %s247
      %s265 = sphi 0, %s265
      %s267 = sphi 0, %s265
      %s268 = sphi 0, %s267
      %s282 = sphi 0, %s268
      %s288 = sphi 0, %s290
      %s291 = sphi 0, %s288
      %s292 = sphi 0, %s291
      %s308 = sphi 0, %s292
    $region4: #{net_forward.1} parent=1 // loop_header_branch
      %24 = sbr.rel (%p22) target = $region8
    $region5: #{net_forward.1} parent=1 // loop_body
      %s26 = ssub.s32 %s21, 1
      %s27 = ssub.s32 %s21, 2
      %s28 = sadd.s32 %s21, 1
      %s29 = ssub.s32 %s21, %s28
      %p30 = scmp.eq.s32.totalorder %s29, 0
      %s32 = sadd.s32 %s31, 1
      %s33 = scalar_select %p30, %s31, %s32
      %p36 = pneg %p30
      %p37 = scmp.eq.s32.totalorder %s21, 1
      %p38 = por %p36, %p37
      %p39 = scmp.ne.s32.totalorder %s31, %s34
      %p40 = scmp.eq.s32.totalorder %s21, 0
      %p41 = por %p39, %p40
      %p42 = scmp.ne.s32.totalorder %s31, %s34
      %p43 = scmp.eq.s32.totalorder %s26, 1
      %p44 = por %p42, %p43
      %p45 = scmp.ne.s32.totalorder %s34, %s35
      %p46 = scmp.eq.s32.totalorder %s26, 0
      %p47 = por %p45, %p46
      %p48 = scmp.ne.s32.totalorder %s34, %s35
      %p49 = scmp.eq.s32.totalorder %s27, 1
      %p50 = por %p48, %p49
      %p52 = scmp.ne.s32.totalorder %s35, %s51
      %p53 = scmp.eq.s32.totalorder %s27, 0
      %p54 = por %p52, %p53
      %s56 = sadd.s32 %s55, 1
      %p59 = scmp.eq.s32.totalorder %s21, 1
      %p60 = scmp.ne.s32.totalorder %s55, %s57
      %p61 = scmp.eq.s32.totalorder %s21, 0
      %p62 = por %p60, %p61
      %p63 = scmp.ne.s32.totalorder %s55, %s57
      %p64 = scmp.eq.s32.totalorder %s26, 1
      %p65 = por %p63, %p64
      %p66 = scmp.ne.s32.totalorder %s57, %s58
      %p67 = scmp.eq.s32.totalorder %s26, 0
      %p68 = por %p66, %p67
      %p69 = scmp.ne.s32.totalorder %s57, %s58
      %p70 = scmp.eq.s32.totalorder %s27, 1
      %p71 = por %p69, %p70
      %p73 = scmp.ne.s32.totalorder %s58, %s72
      %p74 = scmp.eq.s32.totalorder %s27, 0
      %p75 = por %p73, %p74
      %s77 = sadd.s32 %s76, 1
      %p80 = scmp.eq.s32.totalorder %s21, 1
      %p81 = scmp.ne.s32.totalorder %s76, %s78
      %p82 = scmp.eq.s32.totalorder %s21, 0
      %p83 = por %p81, %p82
      %p84 = scmp.ne.s32.totalorder %s76, %s78
      %p85 = scmp.eq.s32.totalorder %s26, 1
      %p86 = por %p84, %p85
      %p87 = scmp.ne.s32.totalorder %s78, %s79
      %p88 = scmp.eq.s32.totalorder %s26, 0
      %p89 = por %p87, %p88
      %p90 = scmp.ne.s32.totalorder %s78, %s79
      %p91 = scmp.eq.s32.totalorder %s27, 1
      %p92 = por %p90, %p91
      %p94 = scmp.ne.s32.totalorder %s79, %s93
      %p95 = scmp.eq.s32.totalorder %s27, 0
      %p96 = por %p94, %p95
      %s98 = sadd.s32 %s97, 1
      %p101 = scmp.eq.s32.totalorder %s21, 1
      %p102 = scmp.ne.s32.totalorder %s97, %s99
      %p103 = scmp.eq.s32.totalorder %s21, 0
      %p104 = por %p102, %p103
      %p105 = scmp.ne.s32.totalorder %s97, %s99
      %p106 = scmp.eq.s32.totalorder %s26, 1
      %p107 = por %p105, %p106
      %p108 = scmp.ne.s32.totalorder %s99, %s100
      %p109 = scmp.eq.s32.totalorder %s26, 0
      %p110 = por %p108, %p109
      %p111 = scmp.ne.s32.totalorder %s99, %s100
      %p112 = scmp.eq.s32.totalorder %s27, 1
      %p113 = por %p111, %p112
      %p115 = scmp.ne.s32.totalorder %s100, %s114
      %p116 = scmp.eq.s32.totalorder %s27, 0
      %p117 = por %p115, %p116
      %s119 = sadd.s32 %s118, 1
      %p122 = scmp.eq.s32.totalorder %s21, 1
      %p123 = scmp.ne.s32.totalorder %s118, %s120
      %p124 = scmp.eq.s32.totalorder %s21, 0
      %p125 = por %p123, %p124
      %p126 = scmp.ne.s32.totalorder %s118, %s120
      %p127 = scmp.eq.s32.totalorder %s26, 1
      %p128 = por %p126, %p127
      %p129 = scmp.ne.s32.totalorder %s120, %s121
      %p130 = scmp.eq.s32.totalorder %s26, 0
      %p131 = por %p129, %p130
      %p132 = scmp.ne.s32.totalorder %s120, %s121
      %p133 = scmp.eq.s32.totalorder %s27, 1
      %p134 = por %p132, %p133
      %p136 = scmp.ne.s32.totalorder %s121, %s135
      %p137 = scmp.eq.s32.totalorder %s27, 0
      %p138 = por %p136, %p137
      %s140 = sadd.s32 %s139, 1
      %p143 = scmp.eq.s32.totalorder %s21, 1
      %p144 = scmp.ne.s32.totalorder %s139, %s141
      %p145 = scmp.eq.s32.totalorder %s21, 0
      %p146 = por %p144, %p145
      %p147 = scmp.ne.s32.totalorder %s139, %s141
      %p148 = scmp.eq.s32.totalorder %s26, 1
      %p149 = por %p147, %p148
      %p150 = scmp.ne.s32.totalorder %s141, %s142
      %p151 = scmp.eq.s32.totalorder %s26, 0
      %p152 = por %p150, %p151
      %p153 = scmp.ne.s32.totalorder %s141, %s142
      %p154 = scmp.eq.s32.totalorder %s27, 1
      %p155 = por %p153, %p154
      %p157 = scmp.ne.s32.totalorder %s142, %s156
      %p158 = scmp.eq.s32.totalorder %s27, 0
      %p159 = por %p157, %p158
      %s161 = sadd.s32 %s160, 1
      %p164 = scmp.eq.s32.totalorder %s21, 1
      %p165 = scmp.ne.s32.totalorder %s160, %s162
      %p166 = scmp.eq.s32.totalorder %s21, 0
      %p167 = por %p165, %p166
      %p168 = scmp.ne.s32.totalorder %s160, %s162
      %p169 = scmp.eq.s32.totalorder %s26, 1
      %p170 = por %p168, %p169
      %p171 = scmp.ne.s32.totalorder %s162, %s163
      %p172 = scmp.eq.s32.totalorder %s26, 0
      %p173 = por %p171, %p172
      %p174 = scmp.ne.s32.totalorder %s162, %s163
      %p175 = scmp.eq.s32.totalorder %s27, 1
      %p176 = por %p174, %p175
      %p178 = scmp.ne.s32.totalorder %s163, %s177
      %p179 = scmp.eq.s32.totalorder %s27, 0
      %p180 = por %p178, %p179
      %s182 = sadd.s32 %s181, 1
      %p185 = scmp.eq.s32.totalorder %s21, 1
      %p186 = scmp.ne.s32.totalorder %s181, %s183
      %p187 = scmp.eq.s32.totalorder %s21, 0
      %p188 = por %p186, %p187
      %p189 = scmp.ne.s32.totalorder %s181, %s183
      %p190 = scmp.eq.s32.totalorder %s26, 1
      %p191 = por %p189, %p190
      %p192 = scmp.ne.s32.totalorder %s183, %s184
      %p193 = scmp.eq.s32.totalorder %s26, 0
      %p194 = por %p192, %p193
      %p195 = scmp.ne.s32.totalorder %s183, %s184
      %p196 = scmp.eq.s32.totalorder %s27, 1
      %p197 = por %p195, %p196
      %p199 = scmp.ne.s32.totalorder %s184, %s198
      %p200 = scmp.eq.s32.totalorder %s27, 0
      %p201 = por %p199, %p200
      %s203 = sadd.s32 %s202, 1
      %p206 = scmp.eq.s32.totalorder %s21, 1
      %p207 = scmp.ne.s32.totalorder %s202, %s204
      %p208 = scmp.eq.s32.totalorder %s21, 0
      %p209 = por %p207, %p208
      %p210 = scmp.ne.s32.totalorder %s202, %s204
      %p211 = scmp.eq.s32.totalorder %s26, 1
      %p212 = por %p210, %p211
      %p213 = scmp.ne.s32.totalorder %s204, %s205
      %p214 = scmp.eq.s32.totalorder %s26, 0
      %p215 = por %p213, %p214
      %p216 = scmp.ne.s32.totalorder %s204, %s205
      %p217 = scmp.eq.s32.totalorder %s27, 1
      %p218 = por %p216, %p217
      %p220 = scmp.ne.s32.totalorder %s205, %s219
      %p221 = scmp.eq.s32.totalorder %s27, 0
      %p222 = por %p220, %p221
      %s224 = sadd.s32 %s223, 1
      %p227 = scmp.eq.s32.totalorder %s21, 1
      %p228 = scmp.ne.s32.totalorder %s223, %s225
      %p229 = scmp.eq.s32.totalorder %s21, 0
      %p230 = por %p228, %p229
      %p231 = scmp.ne.s32.totalorder %s223, %s225
      %p232 = scmp.eq.s32.totalorder %s26, 1
      %p233 = por %p231, %p232
      %p234 = scmp.ne.s32.totalorder %s225, %s226
      %p235 = scmp.eq.s32.totalorder %s26, 0
      %p236 = por %p234, %p235
      %p237 = scmp.ne.s32.totalorder %s225, %s226
      %p238 = scmp.eq.s32.totalorder %s27, 1
      %p239 = por %p237, %p238
      %p241 = scmp.ne.s32.totalorder %s226, %s240
      %p242 = scmp.eq.s32.totalorder %s27, 0
      %p243 = por %p241, %p242
      %s245 = sadd.s32 %s244, 1
      %p248 = scmp.eq.s32.totalorder %s21, 1
      %p249 = scmp.ne.s32.totalorder %s244, %s246
      %p250 = scmp.eq.s32.totalorder %s21, 0
      %p251 = por %p249, %p250
      %p252 = scmp.ne.s32.totalorder %s244, %s246
      %p253 = scmp.eq.s32.totalorder %s26, 1
      %p254 = por %p252, %p253
      %p255 = scmp.ne.s32.totalorder %s246, %s247
      %p256 = scmp.eq.s32.totalorder %s26, 0
      %p257 = por %p255, %p256
      %p258 = scmp.ne.s32.totalorder %s246, %s247
      %p259 = scmp.eq.s32.totalorder %s27, 1
      %p260 = por %p258, %p259
      %p262 = scmp.ne.s32.totalorder %s247, %s261
      %p263 = scmp.eq.s32.totalorder %s27, 0
      %p264 = por %p262, %p263
      %s266 = sadd.s32 %s265, 1
      %p269 = scmp.eq.s32.totalorder %s21, 1
      %p270 = scmp.ne.s32.totalorder %s265, %s267
      %p271 = scmp.eq.s32.totalorder %s21, 0
      %p272 = por %p270, %p271
      %p273 = scmp.ne.s32.totalorder %s265, %s267
      %p274 = scmp.eq.s32.totalorder %s26, 1
      %p275 = por %p273, %p274
      %p276 = scmp.ne.s32.totalorder %s267, %s268
      %p277 = scmp.eq.s32.totalorder %s26, 0
      %p278 = por %p276, %p277
      %p279 = scmp.ne.s32.totalorder %s267, %s268
      %p280 = scmp.eq.s32.totalorder %s27, 1
      %p281 = por %p279, %p280
      %p283 = scmp.ne.s32.totalorder %s268, %s282
      %p284 = scmp.eq.s32.totalorder %s27, 0
      %p285 = por %p283, %p284
      %s286 = ssub.s32 %s21, %s28
      %p287 = scmp.eq.s32.totalorder %s286, 0
      %s289 = sadd.s32 %s288, 1
      %s290 = scalar_select %p287, %s288, %s289
      %p293 = pneg %p287
      %p294 = scmp.eq.s32.totalorder %s21, 1
      %p295 = por %p293, %p294
      %p296 = scmp.ne.s32.totalorder %s288, %s291
      %p297 = scmp.eq.s32.totalorder %s21, 0
      %p298 = por %p296, %p297
      %p299 = scmp.ne.s32.totalorder %s288, %s291
      %p300 = scmp.eq.s32.totalorder %s26, 1
      %p301 = por %p299, %p300
      %p302 = scmp.ne.s32.totalorder %s291, %s292
      %p303 = scmp.eq.s32.totalorder %s26, 0
      %p304 = por %p302, %p303
      %p305 = scmp.ne.s32.totalorder %s291, %s292
      %p306 = scmp.eq.s32.totalorder %s27, 1
      %p307 = por %p305, %p306
      %p309 = scmp.ne.s32.totalorder %s292, %s308
      %p310 = scmp.eq.s32.totalorder %s27, 0
      %p311 = por %p309, %p310
      %p312 = scmp.le.s32.totalorder 1, %s21
      %p313 = scmp.lt.s32.totalorder %s21, 3
      %p314 = pnand %p312, %p313
      %p315 = pneg %p314
      // Predicated region
      $region9: #{net_forward.1} parent=5 // pred_check
        _
      $region10: #{net_forward.1} parent=5 // pred_check_branch
        %317 = sbr.rel (%p314) target = $region12
      $region11: #{net_forward.1} parent=5 // pred_region
        %s318 = ssub.s32 %s21, 1
        // Predicated region
        $region13: #{net_forward.1} parent=11 // pred_check
          %p319 = pneg %p68
        $region14: #{net_forward.1} parent=11 // pred_check_branch
          %321 = sbr.rel (%p319) target = $region16
        $region15: #{net_forward.1} parent=11 // pred_region
          _
        $region16: #{net_forward.1} parent=11 // pred_fallthru
          _
        // Predicated region
        $region17: #{net_forward.1} parent=11 // pred_check
          %p322 = pneg %p89
        $region18: #{net_forward.1} parent=11 // pred_check_branch
          %324 = sbr.rel (%p322) target = $region20
        $region19: #{net_forward.1} parent=11 // pred_region
          _
        $region20: #{net_forward.1} parent=11 // pred_fallthru
          _
        // Predicated region
        $region21: #{net_forward.1} parent=11 // pred_check
          %p325 = pneg %p110
        $region22: #{net_forward.1} parent=11 // pred_check_branch
          %327 = sbr.rel (%p325) target = $region24
        $region23: #{net_forward.1} parent=11 // pred_region
          _
        $region24: #{net_forward.1} parent=11 // pred_fallthru
          _
        // Predicated region
        $region25: #{net_forward.1} parent=11 // pred_check
          %p328 = pneg %p131
        $region26: #{net_forward.1} parent=11 // pred_check_branch
          %330 = sbr.rel (%p328) target = $region28
        $region27: #{net_forward.1} parent=11 // pred_region
          _
        $region28: #{net_forward.1} parent=11 // pred_fallthru
          _
        // Predicated region
        $region29: #{net_forward.1} parent=11 // pred_check
          %p331 = pneg %p152
        $region30: #{net_forward.1} parent=11 // pred_check_branch
          %333 = sbr.rel (%p331) target = $region32
        $region31: #{net_forward.1} parent=11 // pred_region
          _
        $region32: #{net_forward.1} parent=11 // pred_fallthru
          _
        // Predicated region
        $region33: #{net_forward.1} parent=11 // pred_check
          %p334 = pneg %p173
        $region34: #{net_forward.1} parent=11 // pred_check_branch
          %336 = sbr.rel (%p334) target = $region36
        $region35: #{net_forward.1} parent=11 // pred_region
          _
        $region36: #{net_forward.1} parent=11 // pred_fallthru
          _
        // Predicated region
        $region37: #{net_forward.1} parent=11 // pred_check
          %p337 = pneg %p194
        $region38: #{net_forward.1} parent=11 // pred_check_branch
          %339 = sbr.rel (%p337) target = $region40
        $region39: #{net_forward.1} parent=11 // pred_region
          _
        $region40: #{net_forward.1} parent=11 // pred_fallthru
          _
        // Predicated region
        $region41: #{net_forward.1} parent=11 // pred_check
          %p340 = pneg %p215
        $region42: #{net_forward.1} parent=11 // pred_check_branch
          %342 = sbr.rel (%p340) target = $region44
        $region43: #{net_forward.1} parent=11 // pred_region
          _
        $region44: #{net_forward.1} parent=11 // pred_fallthru
          _
        // Predicated region
        $region45: #{net_forward.1} parent=11 // pred_check
          %p343 = pneg %p236
        $region46: #{net_forward.1} parent=11 // pred_check_branch
          %345 = sbr.rel (%p343) target = $region48
        $region47: #{net_forward.1} parent=11 // pred_region
          _
        $region48: #{net_forward.1} parent=11 // pred_fallthru
          _
        // Predicated region
        $region49: #{net_forward.1} parent=11 // pred_check
          %p346 = pneg %p257
        $region50: #{net_forward.1} parent=11 // pred_check_branch
          %348 = sbr.rel (%p346) target = $region52
        $region51: #{net_forward.1} parent=11 // pred_region
          _
        $region52: #{net_forward.1} parent=11 // pred_fallthru
          _
        // Predicated region
        $region53: #{net_forward.1} parent=11 // pred_check
          %p349 = pneg %p278
        $region54: #{net_forward.1} parent=11 // pred_check_branch
          %351 = sbr.rel (%p349) target = $region56
        $region55: #{net_forward.1} parent=11 // pred_region
          _
        $region56: #{net_forward.1} parent=11 // pred_fallthru
          _
      $region12: #{net_forward.1} parent=5 // pred_fallthru
        _
      %p352 = scmp.lt.s32.totalorder %s21, 2
      // Predicated region
      $region57: #{net_forward.1} parent=5 // pred_check
        %p353 = pneg %p352
      $region58: #{net_forward.1} parent=5 // pred_check_branch
        %355 = sbr.rel (%p353) target = $region60
      $region59: #{net_forward.1} parent=5 // pred_region
        // Predicated region
        $region61: #{net_forward.1} parent=59 // pred_check
          %p356 = pneg %p41
        $region62: #{net_forward.1} parent=59 // pred_check_branch
          %358 = sbr.rel (%p356) target = $region64
        $region63: #{net_forward.1} parent=59 // pred_region
          %p359 = scmp.lt.s32.totalorder %s21, 1
          %s360 = scalar_select %p359, %s21, 1
          %s361 = smul.addr %s360, 8
          %s362 = scalar_lea.vmem %s0, %s361
        $region64: #{net_forward.1} parent=59 // pred_fallthru
          _
      $region60: #{net_forward.1} parent=5 // pred_fallthru
        _
      %p363 = scmp.le.s32.totalorder 1, %s21
      %p364 = scmp.lt.s32.totalorder %s21, 3
      %p365 = pnand %p363, %p364
      %p366 = pneg %p365
      // Predicated region
      $region65: #{net_forward.1} parent=5 // pred_check
        _
      $region66: #{net_forward.1} parent=5 // pred_check_branch
        %368 = sbr.rel (%p365) target = $region68
      $region67: #{net_forward.1} parent=5 // pred_region
        %s369 = ssub.s32 %s21, 1
        %p370 = scmp.lt.s32.totalorder %s26, 1
        %s371 = scalar_select %p370, %s26, 1
        %s372 = smul.addr %s371, 8
        %s373 = scalar_lea.vmem %s0, %s372
        %p374 = pneg %p47
        %p375 = pneg %p44
        %p376 = pneg %p68
        %p377 = pneg %p65
        %p378 = pneg %p89
        %p379 = pneg %p86
        %p380 = pneg %p110
        %p381 = pneg %p107
        %p382 = pneg %p131
        %p383 = pneg %p128
        %p384 = pneg %p152
        %p385 = pneg %p149
        %p386 = pneg %p173
        %p387 = pneg %p170
        %p388 = pneg %p194
        %p389 = pneg %p191
        %p390 = pneg %p215
        %p391 = pneg %p212
        %p392 = pneg %p236
        %p393 = pneg %p233
        %p394 = pneg %p257
        %p395 = pneg %p254
        %p396 = pneg %p278
        %p397 = pneg %p275
        %p398 = pneg %p304
        %p399 = pneg %p301
        %s400 = sand.u32 %s291, 1
        %s401 = scalar_lea.sflag [#allocation3], %s400
        %s402 = sand.u32 %s291, 1
        %s403 = scalar_lea.vmem [#allocation2], %s402
        %p404 = scmp.lt.s32.totalorder %s26, 1
        %s405 = scalar_select %p404, %s26, 1
        %s406 = smul.addr %s405, 8
        %s407 = scalar_lea.vmem %s0, %s406
        %v408 = vld [vmem:[%s407] sm:$0xff]
        %v410 = vlaneseq
        %v411 = vshrl.u32 %v410, 7
        %v412 = vsub.s32 0, %v411
        %v413 = vrot.slane %v408, %v412
        %v414 = vlaneseq
        %v415 = vshrl.u32 %v414, 7
        %v416 = vsub.s32 1, %v415
        %v417 = vrot.slane %v408, %v416
        %v418 = vlaneseq
        %v419 = vshrl.u32 %v418, 7
        %v420 = vsub.s32 2, %v419
        %v421 = vrot.slane %v408, %v420
        %v422 = vlaneseq
        %v423 = vshrl.u32 %v422, 7
        %v424 = vsub.s32 3, %v423
        %v425 = vrot.slane %v408, %v424
        %v426 = vlaneseq
        %v427 = vshrl.u32 %v426, 7
        %v428 = vsub.s32 4, %v427
        %v429 = vrot.slane %v408, %v428
        %v430 = vlaneseq
        %v431 = vshrl.u32 %v430, 7
        %v432 = vsub.s32 5, %v431
        %v433 = vrot.slane %v408, %v432
        %v434 = vlaneseq
        %v435 = vshrl.u32 %v434, 7
        %v436 = vsub.s32 6, %v435
        %v437 = vrot.slane %v408, %v436
        %v438 = vlaneseq
        %v439 = vshrl.u32 %v438, 7
        %v440 = vsub.s32 7, %v439
        %v441 = vrot.slane %v408, %v440
        %450 = vrot.lane.b32.xlu0 %v413, 127
        %v451 = vpop.permute.xlu0 %450
        %452 = vrot.lane.b32.xlu0 %v417, 127
        %v453 = vpop.permute.xlu0 %452
        %454 = vrot.lane.b32.xlu0 %v421, 127
        %v455 = vpop.permute.xlu0 %454
        %456 = vrot.lane.b32.xlu0 %v425, 127
        %v457 = vpop.permute.xlu0 %456
        %458 = vrot.lane.b32.xlu0 %v429, 127
        %v459 = vpop.permute.xlu0 %458
        %460 = vrot.lane.b32.xlu0 %v433, 127
        %v461 = vpop.permute.xlu0 %460
        %462 = vrot.lane.b32.xlu0 %v437, 127
        %v463 = vpop.permute.xlu0 %462
        %464 = vrot.lane.b32.xlu0 %v441, 127
        %v465 = vpop.permute.xlu0 %464
        %vm466 = vcmask 1039360
        %v467 = vsel %vm466, %v451, %v453
        %v468 = vsel %vm466, %v453, %v455
        %v469 = vsel %vm466, %v455, %v457
        %v470 = vsel %vm466, %v457, %v459
        %v471 = vsel %vm466, %v459, %v461
        %v472 = vsel %vm466, %v461, %v463
        %v473 = vsel %vm466, %v463, %v465
        %482 = vrot.lane.b32.xlu0 %v413, 126
        %v483 = vpop.permute.xlu0 %482
        %484 = vrot.lane.b32.xlu0 %v417, 126
        %v485 = vpop.permute.xlu0 %484
        %486 = vrot.lane.b32.xlu0 %v421, 126
        %v487 = vpop.permute.xlu0 %486
        %488 = vrot.lane.b32.xlu0 %v425, 126
        %v489 = vpop.permute.xlu0 %488
        %490 = vrot.lane.b32.xlu0 %v429, 126
        %v491 = vpop.permute.xlu0 %490
        %492 = vrot.lane.b32.xlu0 %v433, 126
        %v493 = vpop.permute.xlu0 %492
        %494 = vrot.lane.b32.xlu0 %v437, 126
        %v495 = vpop.permute.xlu0 %494
        %496 = vrot.lane.b32.xlu0 %v441, 126
        %v497 = vpop.permute.xlu0 %496
        %vm498 = vcmask 1031168
        %v499 = vsel %vm498, %v483, %v485
        %v500 = vsel %vm498, %v485, %v487
        %v501 = vsel %vm498, %v487, %v489
        %v502 = vsel %vm498, %v489, %v491
        %v503 = vsel %vm498, %v491, %v493
        %v504 = vsel %vm498, %v493, %v495
        %v505 = vsel %vm498, %v495, %v497
        %514 = vrot.lane.b32.xlu0 %v413, 96
        %v515 = vpop.permute.xlu0 %514
        %516 = vrot.lane.b32.xlu0 %v417, 96
        %v517 = vpop.permute.xlu0 %516
        %518 = vrot.lane.b32.xlu0 %v421, 96
        %v519 = vpop.permute.xlu0 %518
        %520 = vrot.lane.b32.xlu0 %v425, 96
        %v521 = vpop.permute.xlu0 %520
        %522 = vrot.lane.b32.xlu0 %v429, 96
        %v523 = vpop.permute.xlu0 %522
        %524 = vrot.lane.b32.xlu0 %v433, 96
        %v525 = vpop.permute.xlu0 %524
        %526 = vrot.lane.b32.xlu0 %v437, 96
        %v527 = vpop.permute.xlu0 %526
        %528 = vrot.lane.b32.xlu0 %v441, 96
        %v529 = vpop.permute.xlu0 %528
        %vm530 = vcmask 785408
        %v531 = vsel %vm530, %v515, %v517
        %v532 = vsel %vm530, %v517, %v519
        %v533 = vsel %vm530, %v519, %v521
        %v534 = vsel %vm530, %v521, %v523
        %v535 = vsel %vm530, %v523, %v525
        %v536 = vsel %vm530, %v525, %v527
        %v537 = vsel %vm530, %v527, %v529
        %546 = vrot.lane.b32.xlu0 %v413, 95
        %v547 = vpop.permute.xlu0 %546
        %548 = vrot.lane.b32.xlu0 %v417, 95
        %v549 = vpop.permute.xlu0 %548
        %550 = vrot.lane.b32.xlu0 %v421, 95
        %v551 = vpop.permute.xlu0 %550
        %552 = vrot.lane.b32.xlu0 %v425, 95
        %v553 = vpop.permute.xlu0 %552
        %554 = vrot.lane.b32.xlu0 %v429, 95
        %v555 = vpop.permute.xlu0 %554
        %556 = vrot.lane.b32.xlu0 %v433, 95
        %v557 = vpop.permute.xlu0 %556
        %558 = vrot.lane.b32.xlu0 %v437, 95
        %v559 = vpop.permute.xlu0 %558
        %560 = vrot.lane.b32.xlu0 %v441, 95
        %v561 = vpop.permute.xlu0 %560
        %vm562 = vcmask 777216
        %v563 = vsel %vm562, %v547, %v549
        %v564 = vsel %vm562, %v549, %v551
        %v565 = vsel %vm562, %v551, %v553
        %v566 = vsel %vm562, %v553, %v555
        %v567 = vsel %vm562, %v555, %v557
        %v568 = vsel %vm562, %v557, %v559
        %v569 = vsel %vm562, %v559, %v561
        %578 = vrot.lane.b32.xlu0 %v413, 94
        %v579 = vpop.permute.xlu0 %578
        %580 = vrot.lane.b32.xlu0 %v417, 94
        %v581 = vpop.permute.xlu0 %580
        %582 = vrot.lane.b32.xlu0 %v421, 94
        %v583 = vpop.permute.xlu0 %582
        %584 = vrot.lane.b32.xlu0 %v425, 94
        %v585 = vpop.permute.xlu0 %584
        %586 = vrot.lane.b32.xlu0 %v429, 94
        %v587 = vpop.permute.xlu0 %586
        %588 = vrot.lane.b32.xlu0 %v433, 94
        %v589 = vpop.permute.xlu0 %588
        %590 = vrot.lane.b32.xlu0 %v437, 94
        %v591 = vpop.permute.xlu0 %590
        %592 = vrot.lane.b32.xlu0 %v441, 94
        %v593 = vpop.permute.xlu0 %592
        %vm594 = vcmask 769024
        %v595 = vsel %vm594, %v579, %v581
        %v596 = vsel %vm594, %v581, %v583
        %v597 = vsel %vm594, %v583, %v585
        %v598 = vsel %vm594, %v585, %v587
        %v599 = vsel %vm594, %v587, %v589
        %v600 = vsel %vm594, %v589, %v591
        %v601 = vsel %vm594, %v591, %v593
        %610 = vrot.lane.b32.xlu0 %v413, 64
        %v611 = vpop.permute.xlu0 %610
        %612 = vrot.lane.b32.xlu0 %v417, 64
        %v613 = vpop.permute.xlu0 %612
        %614 = vrot.lane.b32.xlu0 %v421, 64
        %v615 = vpop.permute.xlu0 %614
        %616 = vrot.lane.b32.xlu0 %v425, 64
        %v617 = vpop.permute.xlu0 %616
        %618 = vrot.lane.b32.xlu0 %v429, 64
        %v619 = vpop.permute.xlu0 %618
        %620 = vrot.lane.b32.xlu0 %v433, 64
        %v621 = vpop.permute.xlu0 %620
        %622 = vrot.lane.b32.xlu0 %v437, 64
        %v623 = vpop.permute.xlu0 %622
        %624 = vrot.lane.b32.xlu0 %v441, 64
        %v625 = vpop.permute.xlu0 %624
        %vm626 = vcmask 523264
        %v627 = vsel %vm626, %v611, %v613
        %v628 = vsel %vm626, %v613, %v615
        %v629 = vsel %vm626, %v615, %v617
        %v630 = vsel %vm626, %v617, %v619
        %v631 = vsel %vm626, %v619, %v621
        %v632 = vsel %vm626, %v621, %v623
        %v633 = vsel %vm626, %v623, %v625
        %642 = vrot.lane.b32.xlu0 %v413, 63
        %v643 = vpop.permute.xlu0 %642
        %644 = vrot.lane.b32.xlu0 %v417, 63
        %v645 = vpop.permute.xlu0 %644
        %646 = vrot.lane.b32.xlu0 %v421, 63
        %v647 = vpop.permute.xlu0 %646
        %648 = vrot.lane.b32.xlu0 %v425, 63
        %v649 = vpop.permute.xlu0 %648
        %650 = vrot.lane.b32.xlu0 %v429, 63
        %v651 = vpop.permute.xlu0 %650
        %652 = vrot.lane.b32.xlu0 %v433, 63
        %v653 = vpop.permute.xlu0 %652
        %654 = vrot.lane.b32.xlu0 %v437, 63
        %v655 = vpop.permute.xlu0 %654
        %656 = vrot.lane.b32.xlu0 %v441, 63
        %v657 = vpop.permute.xlu0 %656
        %vm658 = vcmask 515072
        %v659 = vsel %vm658, %v643, %v645
        %v660 = vsel %vm658, %v645, %v647
        %v661 = vsel %vm658, %v647, %v649
        %v662 = vsel %vm658, %v649, %v651
        %v663 = vsel %vm658, %v651, %v653
        %v664 = vsel %vm658, %v653, %v655
        %v665 = vsel %vm658, %v655, %v657
        %674 = vrot.lane.b32.xlu0 %v413, 62
        %v675 = vpop.permute.xlu0 %674
        %676 = vrot.lane.b32.xlu0 %v417, 62
        %v677 = vpop.permute.xlu0 %676
        %678 = vrot.lane.b32.xlu0 %v421, 62
        %v679 = vpop.permute.xlu0 %678
        %680 = vrot.lane.b32.xlu0 %v425, 62
        %v681 = vpop.permute.xlu0 %680
        %682 = vrot.lane.b32.xlu0 %v429, 62
        %v683 = vpop.permute.xlu0 %682
        %684 = vrot.lane.b32.xlu0 %v433, 62
        %v685 = vpop.permute.xlu0 %684
        %686 = vrot.lane.b32.xlu0 %v437, 62
        %v687 = vpop.permute.xlu0 %686
        %688 = vrot.lane.b32.xlu0 %v441, 62
        %v689 = vpop.permute.xlu0 %688
        %vm690 = vcmask 506880
        %v691 = vsel %vm690, %v675, %v677
        %v692 = vsel %vm690, %v677, %v679
        %v693 = vsel %vm690, %v679, %v681
        %v694 = vsel %vm690, %v681, %v683
        %v695 = vsel %vm690, %v683, %v685
        %v696 = vsel %vm690, %v685, %v687
        %v697 = vsel %vm690, %v687, %v689
        %vm698 = vcmask 1040384
        %v699 = vsel %vm698, %v413, %v467
        %v700 = vsel %vm698, %v417, %v468
        %v701 = vsel %vm698, %v421, %v469
        %v702 = vsel %vm698, %v425, %v470
        %v703 = vsel %vm698, %v429, %v471
        %v704 = vsel %vm698, %v433, %v472
        %v705 = vsel %vm698, %v437, %v473
        %v706 = vsel %vm698, %v441, %v465
        %vm707 = vcmask 1041408
        %v708 = vsel %vm707, %v699, %v499
        %v709 = vsel %vm707, %v700, %v500
        %v710 = vsel %vm707, %v701, %v501
        %v711 = vsel %vm707, %v702, %v502
        %v712 = vsel %vm707, %v703, %v503
        %v713 = vsel %vm707, %v704, %v504
        %v714 = vsel %vm707, %v705, %v505
        %v715 = vsel %vm707, %v706, %v497
        %vm716 = vcmask 1042432
        %v717 = vsel %vm716, %v708, %v531
        %v718 = vsel %vm716, %v709, %v532
        %v719 = vsel %vm716, %v710, %v533
        %v720 = vsel %vm716, %v711, %v534
        %v721 = vsel %vm716, %v712, %v535
        %v722 = vsel %vm716, %v713, %v536
        %v723 = vsel %vm716, %v714, %v537
        %v724 = vsel %vm716, %v715, %v529
        %vm725 = vcmask 1043456
        %v726 = vsel %vm725, %v717, %v563
        %v727 = vsel %vm725, %v718, %v564
        %v728 = vsel %vm725, %v719, %v565
        %v729 = vsel %vm725, %v720, %v566
        %v730 = vsel %vm725, %v721, %v567
        %v731 = vsel %vm725, %v722, %v568
        %v732 = vsel %vm725, %v723, %v569
        %v733 = vsel %vm725, %v724, %v561
        %vm734 = vcmask 1044480
        %v735 = vsel %vm734, %v726, %v595
        %v736 = vsel %vm734, %v727, %v596
        %v737 = vsel %vm734, %v728, %v597
        %v738 = vsel %vm734, %v729, %v598
        %v739 = vsel %vm734, %v730, %v599
        %v740 = vsel %vm734, %v731, %v600
        %v741 = vsel %vm734, %v732, %v601
        %v742 = vsel %vm734, %v733, %v593
        %vm743 = vcmask 1045504
        %v744 = vsel %vm743, %v735, %v627
        %v745 = vsel %vm743, %v736, %v628
        %v746 = vsel %vm743, %v737, %v629
        %v747 = vsel %vm743, %v738, %v630
        %v748 = vsel %vm743, %v739, %v631
        %v749 = vsel %vm743, %v740, %v632
        %v750 = vsel %vm743, %v741, %v633
        %v751 = vsel %vm743, %v742, %v625
        %vm752 = vcmask 1046528
        %v753 = vsel %vm752, %v744, %v659
        %v754 = vsel %vm752, %v745, %v660
        %v755 = vsel %vm752, %v746, %v661
        %v756 = vsel %vm752, %v747, %v662
        %v757 = vsel %vm752, %v748, %v663
        %v758 = vsel %vm752, %v749, %v664
        %v759 = vsel %vm752, %v750, %v665
        %v760 = vsel %vm752, %v751, %v657
        %v761 = vld [vmem:[%s1] sm:$0x3f]
        %v762 = vld [vmem:[%s2] sm:$0x3f]
        %764 = vset.pattern.permute.xlu0 0
        %765 = vperm.xlu0 %764, %v762
        %v766 = vpop.permute.xlu0 %765
        %vm768 = vcmask 72704
        %v770 = vsel %vm768, %v761, 0
        %v772 = vsel %vm698, %v691, 0
        %v774 = vsel %vm698, %v692, 0
        %v776 = vsel %vm698, %v693, 0
        %v778 = vsel %vm698, %v694, 0
        %v780 = vsel %vm698, %v695, 0
        %v782 = vsel %vm698, %v696, 0
        %v784 = vsel %vm698, %v697, 0
        %v786 = vsel %vm698, %v689, 0
        %788 = vmatprep.subr.mxu0 %v754
        %789 = vmatpush1.msra.mxu0 %v753
        %790 = vmatprep.subr.mxu0 %v774
        %791 = vmatpush1.msra.mxu0 %v772
        %792 = vmatprep.subr.mxu0 0.0
        %793 = vmatpush1.msra.mxu0 0.0
        %794 = vmatprep.subr.mxu0 0.0
        %795 = vmatpush1.msra.mxu0 0.0
        %796 = vmatprep.subr.mxu0 0.0
        %797 = vmatpush1.msra.mxu0 0.0
        %798 = vmatprep.subr.mxu0 0.0
        %799 = vmatpush1.msra.mxu0 0.0
        %800 = vmatprep.subr.mxu0 0.0
        %801 = vmatpush1.msra.mxu0 0.0
        %802 = vmatprep.subr.mxu0 0.0
        %803 = vmatpush1.msra.mxu0 0.0
        %804 = vmatprep.subr.mxu0 0.0
        %805 = vmatpush1.msra.mxu0 0.0
        %806 = vmatprep.subr.mxu0 0.0
        %807 = vmatpush1.msra.mxu0 0.0
        %808 = vmatprep.subr.mxu0 0.0
        %809 = vmatpush1.msra.mxu0 0.0
        %810 = vmatprep.subr.mxu0 0.0
        %811 = vmatpush1.msra.mxu0 0.0
        %812 = vmatprep.subr.mxu0 0.0
        %813 = vmatpush1.msra.mxu0 0.0
        %814 = vmatprep.subr.mxu0 0.0
        %815 = vmatpush1.msra.mxu0 0.0
        %816 = vmatprep.subr.mxu0 0.0
        %817 = vmatpush1.msra.mxu0 0.0
        %818 = vmatprep.subr.mxu0 0.0
        %819 = vmatpush1.msra.mxu0 0.0
        %820 = vmatprep.subr.mxu0 0.0
        %821 = vmatpush1.msra.mxu0 0.0
        %822 = vmatprep.subr.mxu0 0.0
        %823 = vmatpush1.msra.mxu0 0.0
        %824 = vmatprep.subr.mxu0 0.0
        %825 = vmatpush1.msra.mxu0 0.0
        %826 = vmatprep.subr.mxu0 0.0
        %827 = vmatpush1.msra.mxu0 0.0
        %828 = vmatprep.subr.mxu0 0.0
        %829 = vmatpush1.msra.mxu0 0.0
        %830 = vmatprep.subr.mxu0 0.0
        %831 = vmatpush1.msra.mxu0 0.0
        %832 = vmatprep.subr.mxu0 0.0
        %833 = vmatpush1.msra.mxu0 0.0
        %834 = vmatprep.subr.mxu0 0.0
        %835 = vmatpush1.msra.mxu0 0.0
        %836 = vmatprep.subr.mxu0 0.0
        %837 = vmatpush1.msra.mxu0 0.0
        %838 = vmatprep.subr.mxu0 0.0
        %839 = vmatpush1.msra.mxu0 0.0
        %840 = vmatprep.subr.mxu0 0.0
        %841 = vmatpush1.msra.mxu0 0.0
        %842 = vmatprep.subr.mxu0 0.0
        %843 = vmatpush1.msra.mxu0 0.0
        %844 = vmatprep.subr.mxu0 0.0
        %845 = vmatpush1.msra.mxu0 0.0
        %846 = vmatprep.subr.mxu0 0.0
        %847 = vmatpush1.msra.mxu0 0.0
        %848 = vmatprep.subr.mxu0 0.0
        %849 = vmatpush1.msra.mxu0 0.0
        %850 = vmatprep.subr.mxu0 0.0
        %851 = vmatpush1.msra.mxu0 0.0
        %852 = vmatprep.mubr.f32.mxu0 0.0
        %853 = vmatmul.mubr.f32.gmra.mrb[0].mxu0 %v770
        %v854 = vpop.f32.mrb[0].mxu0
        %v855 = vadd.f32 %v766, %v854
        %v856 = vpop.f32.mrb[0].mxu0
        %v857 = vadd.f32 %v766, %v856
        %858 = vdwg.mxu0
        %859 = vmatprep.subr.mxu0 %v756
        %860 = vmatpush1.msra.mxu0 %v755
        %861 = vmatprep.subr.mxu0 %v778
        %862 = vmatpush1.msra.mxu0 %v776
        %863 = vmatprep.subr.mxu0 0.0
        %864 = vmatpush1.msra.mxu0 0.0
        %865 = vmatprep.subr.mxu0 0.0
        %866 = vmatpush1.msra.mxu0 0.0
        %867 = vmatprep.subr.mxu0 0.0
        %868 = vmatpush1.msra.mxu0 0.0
        %869 = vmatprep.subr.mxu0 0.0
        %870 = vmatpush1.msra.mxu0 0.0
        %871 = vmatprep.subr.mxu0 0.0
        %872 = vmatpush1.msra.mxu0 0.0
        %873 = vmatprep.subr.mxu0 0.0
        %874 = vmatpush1.msra.mxu0 0.0
        %875 = vmatprep.subr.mxu0 0.0
        %876 = vmatpush1.msra.mxu0 0.0
        %877 = vmatprep.subr.mxu0 0.0
        %878 = vmatpush1.msra.mxu0 0.0
        %879 = vmatprep.subr.mxu0 0.0
        %880 = vmatpush1.msra.mxu0 0.0
        %881 = vmatprep.subr.mxu0 0.0
        %882 = vmatpush1.msra.mxu0 0.0
        %883 = vmatprep.subr.mxu0 0.0
        %884 = vmatpush1.msra.mxu0 0.0
        %885 = vmatprep.subr.mxu0 0.0
        %886 = vmatpush1.msra.mxu0 0.0
        %887 = vmatprep.subr.mxu0 0.0
        %888 = vmatpush1.msra.mxu0 0.0
        %889 = vmatprep.subr.mxu0 0.0
        %890 = vmatpush1.msra.mxu0 0.0
        %891 = vmatprep.subr.mxu0 0.0
        %892 = vmatpush1.msra.mxu0 0.0
        %893 = vmatprep.subr.mxu0 0.0
        %894 = vmatpush1.msra.mxu0 0.0
        %895 = vmatprep.subr.mxu0 0.0
        %896 = vmatpush1.msra.mxu0 0.0
        %897 = vmatprep.subr.mxu0 0.0
        %898 = vmatpush1.msra.mxu0 0.0
        %899 = vmatprep.subr.mxu0 0.0
        %900 = vmatpush1.msra.mxu0 0.0
        %901 = vmatprep.subr.mxu0 0.0
        %902 = vmatpush1.msra.mxu0 0.0
        %903 = vmatprep.subr.mxu0 0.0
        %904 = vmatpush1.msra.mxu0 0.0
        %905 = vmatprep.subr.mxu0 0.0
        %906 = vmatpush1.msra.mxu0 0.0
        %907 = vmatprep.subr.mxu0 0.0
        %908 = vmatpush1.msra.mxu0 0.0
        %909 = vmatprep.subr.mxu0 0.0
        %910 = vmatpush1.msra.mxu0 0.0
        %911 = vmatprep.subr.mxu0 0.0
        %912 = vmatpush1.msra.mxu0 0.0
        %913 = vmatprep.subr.mxu0 0.0
        %914 = vmatpush1.msra.mxu0 0.0
        %915 = vmatprep.subr.mxu0 0.0
        %916 = vmatpush1.msra.mxu0 0.0
        %917 = vmatprep.subr.mxu0 0.0
        %918 = vmatpush1.msra.mxu0 0.0
        %919 = vmatprep.subr.mxu0 0.0
        %920 = vmatpush1.msra.mxu0 0.0
        %921 = vmatprep.subr.mxu0 0.0
        %922 = vmatpush1.msra.mxu0 0.0
        %923 = vmatprep.mubr.f32.mxu0 0.0
        %924 = vmatmul.mubr.f32.gmra.mrb[0].mxu0 %v770
        %v925 = vpop.f32.mrb[0].mxu0
        %v926 = vadd.f32 %v766, %v925
        %v927 = vpop.f32.mrb[0].mxu0
        %v928 = vadd.f32 %v766, %v927
        %929 = vdwg.mxu0
        %930 = vmatprep.subr.mxu0 %v758
        %931 = vmatpush1.msra.mxu0 %v757
        %932 = vmatprep.subr.mxu0 %v782
        %933 = vmatpush1.msra.mxu0 %v780
        %934 = vmatprep.subr.mxu0 0.0
        %935 = vmatpush1.msra.mxu0 0.0
        %936 = vmatprep.subr.mxu0 0.0
        %937 = vmatpush1.msra.mxu0 0.0
        %938 = vmatprep.subr.mxu0 0.0
        %939 = vmatpush1.msra.mxu0 0.0
        %940 = vmatprep.subr.mxu0 0.0
        %941 = vmatpush1.msra.mxu0 0.0
        %942 = vmatprep.subr.mxu0 0.0
        %943 = vmatpush1.msra.mxu0 0.0
        %944 = vmatprep.subr.mxu0 0.0
        %945 = vmatpush1.msra.mxu0 0.0
        %946 = vmatprep.subr.mxu0 0.0
        %947 = vmatpush1.msra.mxu0 0.0
        %948 = vmatprep.subr.mxu0 0.0
        %949 = vmatpush1.msra.mxu0 0.0
        %950 = vmatprep.subr.mxu0 0.0
        %951 = vmatpush1.msra.mxu0 0.0
        %952 = vmatprep.subr.mxu0 0.0
        %953 = vmatpush1.msra.mxu0 0.0
        %954 = vmatprep.subr.mxu0 0.0
        %955 = vmatpush1.msra.mxu0 0.0
        %956 = vmatprep.subr.mxu0 0.0
        %957 = vmatpush1.msra.mxu0 0.0
        %958 = vmatprep.subr.mxu0 0.0
        %959 = vmatpush1.msra.mxu0 0.0
        %960 = vmatprep.subr.mxu0 0.0
        %961 = vmatpush1.msra.mxu0 0.0
        %962 = vmatprep.subr.mxu0 0.0
        %963 = vmatpush1.msra.mxu0 0.0
        %964 = vmatprep.subr.mxu0 0.0
        %965 = vmatpush1.msra.mxu0 0.0
        %966 = vmatprep.subr.mxu0 0.0
        %967 = vmatpush1.msra.mxu0 0.0
        %968 = vmatprep.subr.mxu0 0.0
        %969 = vmatpush1.msra.mxu0 0.0
        %970 = vmatprep.subr.mxu0 0.0
        %971 = vmatpush1.msra.mxu0 0.0
        %972 = vmatprep.subr.mxu0 0.0
        %973 = vmatpush1.msra.mxu0 0.0
        %974 = vmatprep.subr.mxu0 0.0
        %975 = vmatpush1.msra.mxu0 0.0
        %976 = vmatprep.subr.mxu0 0.0
        %977 = vmatpush1.msra.mxu0 0.0
        %978 = vmatprep.subr.mxu0 0.0
        %979 = vmatpush1.msra.mxu0 0.0
        %980 = vmatprep.subr.mxu0 0.0
        %981 = vmatpush1.msra.mxu0 0.0
        %982 = vmatprep.subr.mxu0 0.0
        %983 = vmatpush1.msra.mxu0 0.0
        %984 = vmatprep.subr.mxu0 0.0
        %985 = vmatpush1.msra.mxu0 0.0
        %986 = vmatprep.subr.mxu0 0.0
        %987 = vmatpush1.msra.mxu0 0.0
        %988 = vmatprep.subr.mxu0 0.0
        %989 = vmatpush1.msra.mxu0 0.0
        %990 = vmatprep.subr.mxu0 0.0
        %991 = vmatpush1.msra.mxu0 0.0
        %992 = vmatprep.subr.mxu0 0.0
        %993 = vmatpush1.msra.mxu0 0.0
        %994 = vmatprep.mubr.f32.mxu0 0.0
        %995 = vmatmul.mubr.f32.gmra.mrb[0].mxu0 %v770
        %v996 = vpop.f32.mrb[0].mxu0
        %v997 = vadd.f32 %v766, %v996
        %v998 = vpop.f32.mrb[0].mxu0
        %v999 = vadd.f32 %v766, %v998
        %1000 = vdwg.mxu0
        %1001 = vmatprep.subr.mxu0 %v760
        %1002 = vmatpush1.msra.mxu0 %v759
        %1003 = vmatprep.subr.mxu0 %v786
        %1004 = vmatpush1.msra.mxu0 %v784
        %1005 = vmatprep.subr.mxu0 0.0
        %1006 = vmatpush1.msra.mxu0 0.0
        %1007 = vmatprep.subr.mxu0 0.0
        %1008 = vmatpush1.msra.mxu0 0.0
        %1009 = vmatprep.subr.mxu0 0.0
        %1010 = vmatpush1.msra.mxu0 0.0
        %1011 = vmatprep.subr.mxu0 0.0
        %1012 = vmatpush1.msra.mxu0 0.0
        %1013 = vmatprep.subr.mxu0 0.0
        %1014 = vmatpush1.msra.mxu0 0.0
        %1015 = vmatprep.subr.mxu0 0.0
        %1016 = vmatpush1.msra.mxu0 0.0
        %1017 = vmatprep.subr.mxu0 0.0
        %1018 = vmatpush1.msra.mxu0 0.0
        %1019 = vmatprep.subr.mxu0 0.0
        %1020 = vmatpush1.msra.mxu0 0.0
        %1021 = vmatprep.subr.mxu0 0.0
        %1022 = vmatpush1.msra.mxu0 0.0
        %1023 = vmatprep.subr.mxu0 0.0
        %1024 = vmatpush1.msra.mxu0 0.0
        %1025 = vmatprep.subr.mxu0 0.0
        %1026 = vmatpush1.msra.mxu0 0.0
        %1027 = vmatprep.subr.mxu0 0.0
        %1028 = vmatpush1.msra.mxu0 0.0
        %1029 = vmatprep.subr.mxu0 0.0
        %1030 = vmatpush1.msra.mxu0 0.0
        %1031 = vmatprep.subr.mxu0 0.0
        %1032 = vmatpush1.msra.mxu0 0.0
        %1033 = vmatprep.subr.mxu0 0.0
        %1034 = vmatpush1.msra.mxu0 0.0
        %1035 = vmatprep.subr.mxu0 0.0
        %1036 = vmatpush1.msra.mxu0 0.0
        %1037 = vmatprep.subr.mxu0 0.0
        %1038 = vmatpush1.msra.mxu0 0.0
        %1039 = vmatprep.subr.mxu0 0.0
        %1040 = vmatpush1.msra.mxu0 0.0
        %1041 = vmatprep.subr.mxu0 0.0
        %1042 = vmatpush1.msra.mxu0 0.0
        %1043 = vmatprep.subr.mxu0 0.0
        %1044 = vmatpush1.msra.mxu0 0.0
        %1045 = vmatprep.subr.mxu0 0.0
        %1046 = vmatpush1.msra.mxu0 0.0
        %1047 = vmatprep.subr.mxu0 0.0
        %1048 = vmatpush1.msra.mxu0 0.0
        %1049 = vmatprep.subr.mxu0 0.0
        %1050 = vmatpush1.msra.mxu0 0.0
        %1051 = vmatprep.subr.mxu0 0.0
        %1052 = vmatpush1.msra.mxu0 0.0
        %1053 = vmatprep.subr.mxu0 0.0
        %1054 = vmatpush1.msra.mxu0 0.0
        %1055 = vmatprep.subr.mxu0 0.0
        %1056 = vmatpush1.msra.mxu0 0.0
        %1057 = vmatprep.subr.mxu0 0.0
        %1058 = vmatpush1.msra.mxu0 0.0
        %1059 = vmatprep.subr.mxu0 0.0
        %1060 = vmatpush1.msra.mxu0 0.0
        %1061 = vmatprep.subr.mxu0 0.0
        %1062 = vmatpush1.msra.mxu0 0.0
        %1063 = vmatprep.subr.mxu0 0.0
        %1064 = vmatpush1.msra.mxu0 0.0
        %1065 = vmatprep.mubr.f32.mxu0 0.0
        %1066 = vmatmul.mubr.f32.gmra.mrb[0].mxu0 %v770
        %v1067 = vpop.f32.mrb[0].mxu0
        %v1068 = vadd.f32 %v766, %v1067
        %v1069 = vpop.f32.mrb[0].mxu0
        %v1070 = vadd.f32 %v766, %v1069
        %1071 = vdwg.mxu0
        %v1072 = vmax.f32 %v855, 0.0
        %v1073 = vmax.f32 %v857, 0.0
        %v1074 = vmax.f32 %v926, 0.0
        %v1075 = vmax.f32 %v928, 0.0
        %v1076 = vmax.f32 %v997, 0.0
        %v1077 = vmax.f32 %v999, 0.0
        %v1078 = vmax.f32 %v1068, 0.0
        %v1079 = vmax.f32 %v1070, 0.0
        %1088 = vrot.lane.b32.xlu0 %v1072, 127
        %v1089 = vpop.permute.xlu0 %1088
        %1090 = vrot.lane.b32.xlu0 %v1073, 127
        %v1091 = vpop.permute.xlu0 %1090
        %1092 = vrot.lane.b32.xlu0 %v1074, 127
        %v1093 = vpop.permute.xlu0 %1092
        %1094 = vrot.lane.b32.xlu0 %v1075, 127
        %v1095 = vpop.permute.xlu0 %1094
        %1096 = vrot.lane.b32.xlu0 %v1076, 127
        %v1097 = vpop.permute.xlu0 %1096
        %1098 = vrot.lane.b32.xlu0 %v1077, 127
        %v1099 = vpop.permute.xlu0 %1098
        %1100 = vrot.lane.b32.xlu0 %v1078, 127
        %v1101 = vpop.permute.xlu0 %1100
        %1102 = vrot.lane.b32.xlu0 %v1079, 127
        %v1103 = vpop.permute.xlu0 %1102
        %v1104 = vsel %vm466, %v1089, %v1091
        %v1105 = vsel %vm466, %v1091, %v1093
        %v1106 = vsel %vm466, %v1093, %v1095
        %v1107 = vsel %vm466, %v1095, %v1097
        %v1108 = vsel %vm466, %v1097, %v1099
        %v1109 = vsel %vm466, %v1099, %v1101
        %v1110 = vsel %vm466, %v1101, %v1103
        %v1118 = vmax.f32 %v1072, %v1104
        %v1119 = vmax.f32 %v1073, %v1105
        %v1120 = vmax.f32 %v1074, %v1106
        %v1121 = vmax.f32 %v1075, %v1107
        %v1122 = vmax.f32 %v1076, %v1108
        %v1123 = vmax.f32 %v1077, %v1109
        %v1124 = vmax.f32 %v1078, %v1110
        %v1126 = vmax.f32 %v1079, %v1103
        %1135 = vrot.lane.b32.xlu0 %v1118, 96
        %v1136 = vpop.permute.xlu0 %1135
        %1137 = vrot.lane.b32.xlu0 %v1119, 96
        %v1138 = vpop.permute.xlu0 %1137
        %1139 = vrot.lane.b32.xlu0 %v1120, 96
        %v1140 = vpop.permute.xlu0 %1139
        %1141 = vrot.lane.b32.xlu0 %v1121, 96
        %v1142 = vpop.permute.xlu0 %1141
        %1143 = vrot.lane.b32.xlu0 %v1122, 96
        %v1144 = vpop.permute.xlu0 %1143
        %1145 = vrot.lane.b32.xlu0 %v1123, 96
        %v1146 = vpop.permute.xlu0 %1145
        %1147 = vrot.lane.b32.xlu0 %v1124, 96
        %v1148 = vpop.permute.xlu0 %1147
        %1149 = vrot.lane.b32.xlu0 %v1126, 96
        %v1150 = vpop.permute.xlu0 %1149
        %v1151 = vsel %vm530, %v1136, %v1138
        %v1152 = vsel %vm530, %v1138, %v1140
        %v1153 = vsel %vm530, %v1140, %v1142
        %v1154 = vsel %vm530, %v1142, %v1144
        %v1155 = vsel %vm530, %v1144, %v1146
        %v1156 = vsel %vm530, %v1146, %v1148
        %v1157 = vsel %vm530, %v1148, %v1150
        %v1165 = vmax.f32 %v1118, %v1151
        %v1166 = vmax.f32 %v1119, %v1152
        %v1167 = vmax.f32 %v1120, %v1153
        %v1168 = vmax.f32 %v1121, %v1154
        %v1169 = vmax.f32 %v1122, %v1155
        %v1170 = vmax.f32 %v1123, %v1156
        %v1171 = vmax.f32 %v1124, %v1157
        %v1178 = vrot.slane %v1165, 2
        %v1179 = vrot.slane %v1166, 2
        %v1180 = vrot.slane %v1167, 2
        %v1181 = vrot.slane %v1168, 2
        %v1182 = vrot.slane %v1169, 2
        %v1183 = vrot.slane %v1170, 2
        %1184 = vrot.lane.b32.xlu0 %v1178, 126
        %v1185 = vpop.permute.xlu0 %1184
        %1186 = vrot.lane.b32.xlu0 %v1179, 126
        %v1187 = vpop.permute.xlu0 %1186
        %1188 = vrot.lane.b32.xlu0 %v1180, 126
        %v1189 = vpop.permute.xlu0 %1188
        %1190 = vrot.lane.b32.xlu0 %v1181, 126
        %v1191 = vpop.permute.xlu0 %1190
        %1192 = vrot.lane.b32.xlu0 %v1182, 126
        %v1193 = vpop.permute.xlu0 %1192
        %1194 = vrot.lane.b32.xlu0 %v1183, 126
        %v1195 = vpop.permute.xlu0 %1194
        %v1196 = vsel %vm498, %v1185, %v1187
        %v1197 = vsel %vm498, %v1187, %v1189
        %v1198 = vsel %vm498, %v1189, %v1191
        %v1199 = vsel %vm498, %v1191, %v1193
        %v1200 = vsel %vm498, %v1193, %v1195
        %v1207 = vrot.slane %v1165, 4
        %v1208 = vrot.slane %v1166, 4
        %v1209 = vrot.slane %v1167, 4
        %v1210 = vrot.slane %v1168, 4
        %v1211 = vrot.slane %v1169, 4
        %v1212 = vrot.slane %v1170, 4
        %1213 = vrot.lane.b32.xlu0 %v1207, 124
        %v1214 = vpop.permute.xlu0 %1213
        %1215 = vrot.lane.b32.xlu0 %v1208, 124
        %v1216 = vpop.permute.xlu0 %1215
        %1217 = vrot.lane.b32.xlu0 %v1209, 124
        %v1218 = vpop.permute.xlu0 %1217
        %1219 = vrot.lane.b32.xlu0 %v1210, 124
        %v1220 = vpop.permute.xlu0 %1219
        %1221 = vrot.lane.b32.xlu0 %v1211, 124
        %v1222 = vpop.permute.xlu0 %1221
        %1223 = vrot.lane.b32.xlu0 %v1212, 124
        %v1224 = vpop.permute.xlu0 %1223
        %vm1225 = vcmask 1014784
        %v1226 = vsel %vm1225, %v1214, %v1216
        %v1227 = vsel %vm1225, %v1216, %v1218
        %v1228 = vsel %vm1225, %v1218, %v1220
        %v1229 = vsel %vm1225, %v1220, %v1222
        %v1230 = vsel %vm1225, %v1222, %v1224
        %v1238 = vrot.slane %v1165, 6
        %v1239 = vrot.slane %v1166, 6
        %v1240 = vrot.slane %v1167, 6
        %v1241 = vrot.slane %v1168, 6
        %v1242 = vrot.slane %v1169, 6
        %v1243 = vrot.slane %v1170, 6
        %v1244 = vrot.slane %v1171, 6
        %1245 = vrot.lane.b32.xlu0 %v1238, 64
        %v1246 = vpop.permute.xlu0 %1245
        %1247 = vrot.lane.b32.xlu0 %v1239, 64
        %v1248 = vpop.permute.xlu0 %1247
        %1249 = vrot.lane.b32.xlu0 %v1240, 64
        %v1250 = vpop.permute.xlu0 %1249
        %1251 = vrot.lane.b32.xlu0 %v1241, 64
        %v1252 = vpop.permute.xlu0 %1251
        %1253 = vrot.lane.b32.xlu0 %v1242, 64
        %v1254 = vpop.permute.xlu0 %1253
        %1255 = vrot.lane.b32.xlu0 %v1243, 64
        %v1256 = vpop.permute.xlu0 %1255
        %1257 = vrot.lane.b32.xlu0 %v1244, 64
        %v1258 = vpop.permute.xlu0 %1257
        %v1259 = vsel %vm626, %v1246, %v1248
        %v1260 = vsel %vm626, %v1248, %v1250
        %v1261 = vsel %vm626, %v1250, %v1252
        %v1262 = vsel %vm626, %v1252, %v1254
        %v1263 = vsel %vm626, %v1254, %v1256
        %v1264 = vsel %vm626, %v1256, %v1258
        %1271 = vrot.lane.b32.xlu0 %v1165, 62
        %v1272 = vpop.permute.xlu0 %1271
        %1273 = vrot.lane.b32.xlu0 %v1166, 62
        %v1274 = vpop.permute.xlu0 %1273
        %1275 = vrot.lane.b32.xlu0 %v1167, 62
        %v1276 = vpop.permute.xlu0 %1275
        %1277 = vrot.lane.b32.xlu0 %v1168, 62
        %v1278 = vpop.permute.xlu0 %1277
        %1279 = vrot.lane.b32.xlu0 %v1169, 62
        %v1280 = vpop.permute.xlu0 %1279
        %1281 = vrot.lane.b32.xlu0 %v1170, 62
        %v1282 = vpop.permute.xlu0 %1281
        %1283 = vrot.lane.b32.xlu0 %v1171, 62
        %v1284 = vpop.permute.xlu0 %1283
        %v1285 = vsel %vm690, %v1272, %v1274
        %v1286 = vsel %vm690, %v1274, %v1276
        %v1287 = vsel %vm690, %v1276, %v1278
        %v1288 = vsel %vm690, %v1278, %v1280
        %v1289 = vsel %vm690, %v1280, %v1282
        %v1290 = vsel %vm690, %v1282, %v1284
        %v1297 = vrot.slane %v1171, 2
        %1298 = vrot.lane.b32.xlu0 %v1178, 60
        %v1299 = vpop.permute.xlu0 %1298
        %1300 = vrot.lane.b32.xlu0 %v1179, 60
        %v1301 = vpop.permute.xlu0 %1300
        %1302 = vrot.lane.b32.xlu0 %v1180, 60
        %v1303 = vpop.permute.xlu0 %1302
        %1304 = vrot.lane.b32.xlu0 %v1181, 60
        %v1305 = vpop.permute.xlu0 %1304
        %1306 = vrot.lane.b32.xlu0 %v1182, 60
        %v1307 = vpop.permute.xlu0 %1306
        %1308 = vrot.lane.b32.xlu0 %v1183, 60
        %v1309 = vpop.permute.xlu0 %1308
        %1310 = vrot.lane.b32.xlu0 %v1297, 60
        %v1311 = vpop.permute.xlu0 %1310
        %vm1312 = vcmask 490496
        %v1313 = vsel %vm1312, %v1299, %v1301
        %v1314 = vsel %vm1312, %v1301, %v1303
        %v1315 = vsel %vm1312, %v1303, %v1305
        %v1316 = vsel %vm1312, %v1305, %v1307
        %v1317 = vsel %vm1312, %v1307, %v1309
        %v1318 = vsel %vm1312, %v1309, %v1311
        %v1325 = vrot.slane %v1171, 4
        %1332 = vrot.lane.b32.xlu0 %v1239, 126
        %v1333 = vpop.permute.xlu0 %1332
        %1334 = vrot.lane.b32.xlu0 %v1240, 126
        %v1335 = vpop.permute.xlu0 %1334
        %1336 = vrot.lane.b32.xlu0 %v1241, 126
        %v1337 = vpop.permute.xlu0 %1336
        %1338 = vrot.lane.b32.xlu0 %v1242, 126
        %v1339 = vpop.permute.xlu0 %1338
        %1340 = vrot.lane.b32.xlu0 %v1243, 126
        %v1341 = vpop.permute.xlu0 %1340
        %1342 = vrot.lane.b32.xlu0 %v1244, 126
        %v1343 = vpop.permute.xlu0 %1342
        %v1344 = vsel %vm498, %v1333, %v1335
        %v1345 = vsel %vm498, %v1335, %v1337
        %v1346 = vsel %vm498, %v1337, %v1339
        %v1347 = vsel %vm498, %v1339, %v1341
        %v1348 = vsel %vm498, %v1341, %v1343
        %1355 = vrot.lane.b32.xlu0 %v1166, 124
        %v1356 = vpop.permute.xlu0 %1355
        %1357 = vrot.lane.b32.xlu0 %v1167, 124
        %v1358 = vpop.permute.xlu0 %1357
        %1359 = vrot.lane.b32.xlu0 %v1168, 124
        %v1360 = vpop.permute.xlu0 %1359
        %1361 = vrot.lane.b32.xlu0 %v1169, 124
        %v1362 = vpop.permute.xlu0 %1361
        %1363 = vrot.lane.b32.xlu0 %v1170, 124
        %v1364 = vpop.permute.xlu0 %1363
        %1365 = vrot.lane.b32.xlu0 %v1171, 124
        %v1366 = vpop.permute.xlu0 %1365
        %v1367 = vsel %vm1225, %v1356, %v1358
        %v1368 = vsel %vm1225, %v1358, %v1360
        %v1369 = vsel %vm1225, %v1360, %v1362
        %v1370 = vsel %vm1225, %v1362, %v1364
        %v1371 = vsel %vm1225, %v1364, %v1366
        %v1372 = vsel %vm743, %v1165, %v1196
        %v1373 = vsel %vm743, %v1166, %v1197
        %v1374 = vsel %vm743, %v1167, %v1198
        %v1375 = vsel %vm743, %v1168, %v1199
        %v1376 = vsel %vm743, %v1169, %v1200
        %v1377 = vsel %vm743, %v1170, %v1195
        %v1378 = vsel %vm725, %v1196, %v1226
        %v1379 = vsel %vm725, %v1197, %v1227
        %v1380 = vsel %vm725, %v1198, %v1228
        %v1381 = vsel %vm725, %v1199, %v1229
        %v1382 = vsel %vm725, %v1200, %v1230
        %v1383 = vsel %vm725, %v1195, %v1224
        %v1384 = vsel %vm707, %v1226, %v1259
        %v1385 = vsel %vm707, %v1227, %v1260
        %v1386 = vsel %vm707, %v1228, %v1261
        %v1387 = vsel %vm707, %v1229, %v1262
        %v1388 = vsel %vm707, %v1230, %v1263
        %v1389 = vsel %vm707, %v1224, %v1264
        %v1390 = vsel %vm743, %v1285, %v1313
        %v1391 = vsel %vm743, %v1286, %v1314
        %v1392 = vsel %vm743, %v1287, %v1315
        %v1393 = vsel %vm743, %v1288, %v1316
        %v1394 = vsel %vm743, %v1289, %v1317
        %v1395 = vsel %vm743, %v1290, %v1318
        %v1396 = vsel %vm725, %v1313, %v1208
        %v1397 = vsel %vm725, %v1314, %v1209
        %v1398 = vsel %vm725, %v1315, %v1210
        %v1399 = vsel %vm725, %v1316, %v1211
        %v1400 = vsel %vm725, %v1317, %v1212
        %v1401 = vsel %vm725, %v1318, %v1325
        %v1402 = vsel %vm707, %v1208, %v1344
        %v1403 = vsel %vm707, %v1209, %v1345
        %v1404 = vsel %vm707, %v1210, %v1346
        %v1405 = vsel %vm707, %v1211, %v1347
        %v1406 = vsel %vm707, %v1212, %v1348
        %v1407 = vsel %vm707, %v1325, %v1343
        %v1408 = vld [vmem:[%s3] sm:$0xff]
        %v1409 = vld [vmem:[%s3 + $0x8] sm:$0xff]
        %v1410 = vld [vmem:[%s4] sm:$0xff]
        %v1411 = vld [vmem:[%s4 + $0x8] sm:$0xff]
        %1413 = vset.pattern.permute.xlu0 0
        %1414 = vperm.xlu0 %1413, %v1410
        %v1415 = vpop.permute.xlu0 %1414
        %1418 = vset.pattern.permute.xlu0 0
        %1419 = vperm.xlu0 %1418, %v1411
        %v1420 = vpop.permute.xlu0 %1419
        %vm1422 = vcmask 441344
        %v1424 = vsel %vm1422, %v1408, 0
        %v1427 = vsel %vm1422, %v1409, 0
        %v1429 = vsel %vm743, %v1367, 0
        %v1431 = vsel %vm743, %v1368, 0
        %v1433 = vsel %vm743, %v1369, 0
        %v1435 = vsel %vm743, %v1370, 0
        %v1437 = vsel %vm743, %v1371, 0
        %v1439 = vsel %vm743, %v1366, 0
        %1441 = vmatprep.subr.mxu0 %v1373
        %1442 = vmatpush1.msra.mxu0 %v1372
        %1443 = vmatprep.subr.mxu0 %v1379
        %1444 = vmatpush1.msra.mxu0 %v1378
        %1445 = vmatprep.subr.mxu0 %v1385
        %1446 = vmatpush1.msra.mxu0 %v1384
        %1447 = vmatprep.subr.mxu0 %v1391
        %1448 = vmatpush1.msra.mxu0 %v1390
        %1449 = vmatprep.subr.mxu0 %v1397
        %1450 = vmatpush1.msra.mxu0 %v1396
        %1451 = vmatprep.subr.mxu0 %v1403
        %1452 = vmatpush1.msra.mxu0 %v1402
        %1453 = vmatprep.subr.mxu0 %v1431
        %1454 = vmatpush1.msra.mxu0 %v1429
        %1455 = vmatprep.subr.mxu0 0.0
        %1456 = vmatpush1.msra.mxu0 0.0
        %1457 = vmatprep.subr.mxu0 0.0
        %1458 = vmatpush1.msra.mxu0 0.0
        %1459 = vmatprep.subr.mxu0 0.0
        %1460 = vmatpush1.msra.mxu0 0.0
        %1461 = vmatprep.subr.mxu0 0.0
        %1462 = vmatpush1.msra.mxu0 0.0
        %1463 = vmatprep.subr.mxu0 0.0
        %1464 = vmatpush1.msra.mxu0 0.0
        %1465 = vmatprep.subr.mxu0 0.0
        %1466 = vmatpush1.msra.mxu0 0.0
        %1467 = vmatprep.subr.mxu0 0.0
        %1468 = vmatpush1.msra.mxu0 0.0
        %1469 = vmatprep.subr.mxu0 0.0
        %1470 = vmatpush1.msra.mxu0 0.0
        %1471 = vmatprep.subr.mxu0 0.0
        %1472 = vmatpush1.msra.mxu0 0.0
        %1473 = vmatprep.subr.mxu0 0.0
        %1474 = vmatpush1.msra.mxu0 0.0
        %1475 = vmatprep.subr.mxu0 0.0
        %1476 = vmatpush1.msra.mxu0 0.0
        %1477 = vmatprep.subr.mxu0 0.0
        %1478 = vmatpush1.msra.mxu0 0.0
        %1479 = vmatprep.subr.mxu0 0.0
        %1480 = vmatpush1.msra.mxu0 0.0
        %1481 = vmatprep.subr.mxu0 0.0
        %1482 = vmatpush1.msra.mxu0 0.0
        %1483 = vmatprep.subr.mxu0 0.0
        %1484 = vmatpush1.msra.mxu0 0.0
        %1485 = vmatprep.subr.mxu0 0.0
        %1486 = vmatpush1.msra.mxu0 0.0
        %1487 = vmatprep.subr.mxu0 0.0
        %1488 = vmatpush1.msra.mxu0 0.0
        %1489 = vmatprep.subr.mxu0 0.0
        %1490 = vmatpush1.msra.mxu0 0.0
        %1491 = vmatprep.subr.mxu0 0.0
        %1492 = vmatpush1.msra.mxu0 0.0
        %1493 = vmatprep.subr.mxu0 0.0
        %1494 = vmatpush1.msra.mxu0 0.0
        %1495 = vmatprep.subr.mxu0 0.0
        %1496 = vmatpush1.msra.mxu0 0.0
        %1497 = vmatprep.subr.mxu0 0.0
        %1498 = vmatpush1.msra.mxu0 0.0
        %1499 = vmatprep.subr.mxu0 0.0
        %1500 = vmatpush1.msra.mxu0 0.0
        %1501 = vmatprep.subr.mxu0 0.0
        %1502 = vmatpush1.msra.mxu0 0.0
        %1503 = vmatprep.subr.mxu0 0.0
        %1504 = vmatpush1.msra.mxu0 0.0
        %1505 = vmatprep.mubr.f32.mxu0 0.0
        %1506 = vmatmul.mubr.f32.gmra.mrb[0].mxu0 %v1424
        %v1507 = vpop.f32.mrb[0].mxu0
        %v1508 = vadd.f32 %v1415, %v1507
        %v1509 = vpop.f32.mrb[0].mxu0
        %v1510 = vadd.f32 %v1415, %v1509
        %1511 = vmatprep.mubr.f32.mxu0 0.0
        %1512 = vmatmul.mubr.f32.gmra.mrb[0].mxu0 %v1427
        %v1513 = vpop.f32.mrb[0].mxu0
        %v1514 = vadd.f32 %v1420, %v1513
        %v1515 = vpop.f32.mrb[0].mxu0
        %v1516 = vadd.f32 %v1420, %v1515
        %1517 = vdwg.mxu0
        %1518 = vmatprep.subr.mxu0 %v1375
        %1519 = vmatpush1.msra.mxu0 %v1374
        %1520 = vmatprep.subr.mxu0 %v1381
        %1521 = vmatpush1.msra.mxu0 %v1380
        %1522 = vmatprep.subr.mxu0 %v1387
        %1523 = vmatpush1.msra.mxu0 %v1386
        %1524 = vmatprep.subr.mxu0 %v1393
        %1525 = vmatpush1.msra.mxu0 %v1392
        %1526 = vmatprep.subr.mxu0 %v1399
        %1527 = vmatpush1.msra.mxu0 %v1398
        %1528 = vmatprep.subr.mxu0 %v1405
        %1529 = vmatpush1.msra.mxu0 %v1404
        %1530 = vmatprep.subr.mxu0 %v1435
        %1531 = vmatpush1.msra.mxu0 %v1433
        %1532 = vmatprep.subr.mxu0 0.0
        %1533 = vmatpush1.msra.mxu0 0.0
        %1534 = vmatprep.subr.mxu0 0.0
        %1535 = vmatpush1.msra.mxu0 0.0
        %1536 = vmatprep.subr.mxu0 0.0
        %1537 = vmatpush1.msra.mxu0 0.0
        %1538 = vmatprep.subr.mxu0 0.0
        %1539 = vmatpush1.msra.mxu0 0.0
        %1540 = vmatprep.subr.mxu0 0.0
        %1541 = vmatpush1.msra.mxu0 0.0
        %1542 = vmatprep.subr.mxu0 0.0
        %1543 = vmatpush1.msra.mxu0 0.0
        %1544 = vmatprep.subr.mxu0 0.0
        %1545 = vmatpush1.msra.mxu0 0.0
        %1546 = vmatprep.subr.mxu0 0.0
        %1547 = vmatpush1.msra.mxu0 0.0
        %1548 = vmatprep.subr.mxu0 0.0
        %1549 = vmatpush1.msra.mxu0 0.0
        %1550 = vmatprep.subr.mxu0 0.0
        %1551 = vmatpush1.msra.mxu0 0.0
        %1552 = vmatprep.subr.mxu0 0.0
        %1553 = vmatpush1.msra.mxu0 0.0
        %1554 = vmatprep.subr.mxu0 0.0
        %1555 = vmatpush1.msra.mxu0 0.0
        %1556 = vmatprep.subr.mxu0 0.0
        %1557 = vmatpush1.msra.mxu0 0.0
        %1558 = vmatprep.subr.mxu0 0.0
        %1559 = vmatpush1.msra.mxu0 0.0
        %1560 = vmatprep.subr.mxu0 0.0
        %1561 = vmatpush1.msra.mxu0 0.0
        %1562 = vmatprep.subr.mxu0 0.0
        %1563 = vmatpush1.msra.mxu0 0.0
        %1564 = vmatprep.subr.mxu0 0.0
        %1565 = vmatpush1.msra.mxu0 0.0
        %1566 = vmatprep.subr.mxu0 0.0
        %1567 = vmatpush1.msra.mxu0 0.0
        %1568 = vmatprep.subr.mxu0 0.0
        %1569 = vmatpush1.msra.mxu0 0.0
        %1570 = vmatprep.subr.mxu0 0.0
        %1571 = vmatpush1.msra.mxu0 0.0
        %1572 = vmatprep.subr.mxu0 0.0
        %1573 = vmatpush1.msra.mxu0 0.0
        %1574 = vmatprep.subr.mxu0 0.0
        %1575 = vmatpush1.msra.mxu0 0.0
        %1576 = vmatprep.subr.mxu0 0.0
        %1577 = vmatpush1.msra.mxu0 0.0
        %1578 = vmatprep.subr.mxu0 0.0
        %1579 = vmatpush1.msra.mxu0 0.0
        %1580 = vmatprep.subr.mxu0 0.0
        %1581 = vmatpush1.msra.mxu0 0.0
        %1582 = vmatprep.mubr.f32.mxu0 0.0
        %1583 = vmatmul.mubr.f32.gmra.mrb[0].mxu0 %v1424
        %v1584 = vpop.f32.mrb[0].mxu0
        %v1585 = vadd.f32 %v1415, %v1584
        %v1586 = vpop.f32.mrb[0].mxu0
        %v1587 = vadd.f32 %v1415, %v1586
        %1588 = vmatprep.mubr.f32.mxu0 0.0
        %1589 = vmatmul.mubr.f32.gmra.mrb[0].mxu0 %v1427
        %v1590 = vpop.f32.mrb[0].mxu0
        %v1591 = vadd.f32 %v1420, %v1590
        %v1592 = vpop.f32.mrb[0].mxu0
        %v1593 = vadd.f32 %v1420, %v1592
        %1594 = vdwg.mxu0
        %1595 = vmatprep.subr.mxu0 %v1377
        %1596 = vmatpush1.msra.mxu0 %v1376
        %1597 = vmatprep.subr.mxu0 %v1383
        %1598 = vmatpush1.msra.mxu0 %v1382
        %1599 = vmatprep.subr.mxu0 %v1389
        %1600 = vmatpush1.msra.mxu0 %v1388
        %1601 = vmatprep.subr.mxu0 %v1395
        %1602 = vmatpush1.msra.mxu0 %v1394
        %1603 = vmatprep.subr.mxu0 %v1401
        %1604 = vmatpush1.msra.mxu0 %v1400
        %1605 = vmatprep.subr.mxu0 %v1407
        %1606 = vmatpush1.msra.mxu0 %v1406
        %1607 = vmatprep.subr.mxu0 %v1439
        %1608 = vmatpush1.msra.mxu0 %v1437
        %1609 = vmatprep.subr.mxu0 0.0
        %1610 = vmatpush1.msra.mxu0 0.0
        %1611 = vmatprep.subr.mxu0 0.0
        %1612 = vmatpush1.msra.mxu0 0.0
        %1613 = vmatprep.subr.mxu0 0.0
        %1614 = vmatpush1.msra.mxu0 0.0
        %1615 = vmatprep.subr.mxu0 0.0
        %1616 = vmatpush1.msra.mxu0 0.0
        %1617 = vmatprep.subr.mxu0 0.0
        %1618 = vmatpush1.msra.mxu0 0.0
        %1619 = vmatprep.subr.mxu0 0.0
        %1620 = vmatpush1.msra.mxu0 0.0
        %1621 = vmatprep.subr.mxu0 0.0
        %1622 = vmatpush1.msra.mxu0 0.0
        %1623 = vmatprep.subr.mxu0 0.0
        %1624 = vmatpush1.msra.mxu0 0.0
        %1625 = vmatprep.subr.mxu0 0.0
        %1626 = vmatpush1.msra.mxu0 0.0
        %1627 = vmatprep.subr.mxu0 0.0
        %1628 = vmatpush1.msra.mxu0 0.0
        %1629 = vmatprep.subr.mxu0 0.0
        %1630 = vmatpush1.msra.mxu0 0.0
        %1631 = vmatprep.subr.mxu0 0.0
        %1632 = vmatpush1.msra.mxu0 0.0
        %1633 = vmatprep.subr.mxu0 0.0
        %1634 = vmatpush1.msra.mxu0 0.0
        %1635 = vmatprep.subr.mxu0 0.0
        %1636 = vmatpush1.msra.mxu0 0.0
        %1637 = vmatprep.subr.mxu0 0.0
        %1638 = vmatpush1.msra.mxu0 0.0
        %1639 = vmatprep.subr.mxu0 0.0
        %1640 = vmatpush1.msra.mxu0 0.0
        %1641 = vmatprep.subr.mxu0 0.0
        %1642 = vmatpush1.msra.mxu0 0.0
        %1643 = vmatprep.subr.mxu0 0.0
        %1644 = vmatpush1.msra.mxu0 0.0
        %1645 = vmatprep.subr.mxu0 0.0
        %1646 = vmatpush1.msra.mxu0 0.0
        %1647 = vmatprep.subr.mxu0 0.0
        %1648 = vmatpush1.msra.mxu0 0.0
        %1649 = vmatprep.subr.mxu0 0.0
        %1650 = vmatpush1.msra.mxu0 0.0
        %1651 = vmatprep.subr.mxu0 0.0
        %1652 = vmatpush1.msra.mxu0 0.0
        %1653 = vmatprep.subr.mxu0 0.0
        %1654 = vmatpush1.msra.mxu0 0.0
        %1655 = vmatprep.subr.mxu0 0.0
        %1656 = vmatpush1.msra.mxu0 0.0
        %1657 = vmatprep.subr.mxu0 0.0
        %1658 = vmatpush1.msra.mxu0 0.0
        %1659 = vmatprep.mubr.f32.mxu0 0.0
        %1660 = vmatmul.mubr.f32.gmra.mrb[0].mxu0 %v1424
        %v1661 = vpop.f32.mrb[0].mxu0
        %v1662 = vadd.f32 %v1415, %v1661
        %v1663 = vpop.f32.mrb[0].mxu0
        %v1664 = vadd.f32 %v1415, %v1663
        %1665 = vmatprep.mubr.f32.mxu0 0.0
        %1666 = vmatmul.mubr.f32.gmra.mrb[0].mxu0 %v1427
        %v1667 = vpop.f32.mrb[0].mxu0
        %v1668 = vadd.f32 %v1420, %v1667
        %v1669 = vpop.f32.mrb[0].mxu0
        %v1670 = vadd.f32 %v1420, %v1669
        %1671 = vdwg.mxu0
        %v1672 = vmax.f32 %v1508, 0.0
        %v1673 = vmax.f32 %v1510, 0.0
        %v1674 = vmax.f32 %v1585, 0.0
        %v1675 = vmax.f32 %v1587, 0.0
        %v1676 = vmax.f32 %v1662, 0.0
        %v1677 = vmax.f32 %v1664, 0.0
        %v1678 = vmax.f32 %v1514, 0.0
        %v1679 = vmax.f32 %v1516, 0.0
        %v1680 = vmax.f32 %v1591, 0.0
        %v1681 = vmax.f32 %v1593, 0.0
        %v1682 = vmax.f32 %v1668, 0.0
        %v1683 = vmax.f32 %v1670, 0.0
        %1696 = vrot.lane.b32.xlu0 %v1672, 126
        %v1697 = vpop.permute.xlu0 %1696
        %1698 = vrot.lane.b32.xlu0 %v1673, 126
        %v1699 = vpop.permute.xlu0 %1698
        %1700 = vrot.lane.b32.xlu0 %v1674, 126
        %v1701 = vpop.permute.xlu0 %1700
        %1702 = vrot.lane.b32.xlu0 %v1675, 126
        %v1703 = vpop.permute.xlu0 %1702
        %1704 = vrot.lane.b32.xlu0 %v1676, 126
        %v1705 = vpop.permute.xlu0 %1704
        %1706 = vrot.lane.b32.xlu0 %v1677, 126
        %v1707 = vpop.permute.xlu0 %1706
        %1708 = vrot.lane.b32.xlu0 %v1678, 126
        %v1709 = vpop.permute.xlu0 %1708
        %1710 = vrot.lane.b32.xlu0 %v1679, 126
        %v1711 = vpop.permute.xlu0 %1710
        %1712 = vrot.lane.b32.xlu0 %v1680, 126
        %v1713 = vpop.permute.xlu0 %1712
        %1714 = vrot.lane.b32.xlu0 %v1681, 126
        %v1715 = vpop.permute.xlu0 %1714
        %1716 = vrot.lane.b32.xlu0 %v1682, 126
        %v1717 = vpop.permute.xlu0 %1716
        %1718 = vrot.lane.b32.xlu0 %v1683, 126
        %v1719 = vpop.permute.xlu0 %1718
        %v1720 = vsel %vm498, %v1697, %v1699
        %v1721 = vsel %vm498, %v1699, %v1701
        %v1722 = vsel %vm498, %v1701, %v1703
        %v1723 = vsel %vm498, %v1703, %v1705
        %v1724 = vsel %vm498, %v1705, %v1707
        %v1725 = vsel %vm498, %v1709, %v1711
        %v1726 = vsel %vm498, %v1711, %v1713
        %v1727 = vsel %vm498, %v1713, %v1715
        %v1728 = vsel %vm498, %v1715, %v1717
        %v1729 = vsel %vm498, %v1717, %v1719
        %v1742 = vmax.f32 %v1672, %v1720
        %v1743 = vmax.f32 %v1673, %v1721
        %v1744 = vmax.f32 %v1674, %v1722
        %v1745 = vmax.f32 %v1675, %v1723
        %v1746 = vmax.f32 %v1676, %v1724
        %v1747 = vmax.f32 %v1677, %v1707
        %v1748 = vmax.f32 %v1678, %v1725
        %v1749 = vmax.f32 %v1679, %v1726
        %v1750 = vmax.f32 %v1680, %v1727
        %v1751 = vmax.f32 %v1681, %v1728
        %v1752 = vmax.f32 %v1682, %v1729
        %v1753 = vmax.f32 %v1683, %v1719
        %1766 = vrot.lane.b32.xlu0 %v1742, 64
        %v1767 = vpop.permute.xlu0 %1766
        %1768 = vrot.lane.b32.xlu0 %v1743, 64
        %v1769 = vpop.permute.xlu0 %1768
        %1770 = vrot.lane.b32.xlu0 %v1744, 64
        %v1771 = vpop.permute.xlu0 %1770
        %1772 = vrot.lane.b32.xlu0 %v1745, 64
        %v1773 = vpop.permute.xlu0 %1772
        %1774 = vrot.lane.b32.xlu0 %v1746, 64
        %v1775 = vpop.permute.xlu0 %1774
        %1776 = vrot.lane.b32.xlu0 %v1747, 64
        %v1777 = vpop.permute.xlu0 %1776
        %1778 = vrot.lane.b32.xlu0 %v1748, 64
        %v1779 = vpop.permute.xlu0 %1778
        %1780 = vrot.lane.b32.xlu0 %v1749, 64
        %v1781 = vpop.permute.xlu0 %1780
        %1782 = vrot.lane.b32.xlu0 %v1750, 64
        %v1783 = vpop.permute.xlu0 %1782
        %1784 = vrot.lane.b32.xlu0 %v1751, 64
        %v1785 = vpop.permute.xlu0 %1784
        %1786 = vrot.lane.b32.xlu0 %v1752, 64
        %v1787 = vpop.permute.xlu0 %1786
        %1788 = vrot.lane.b32.xlu0 %v1753, 64
        %v1789 = vpop.permute.xlu0 %1788
        %v1790 = vsel %vm626, %v1767, %v1769
        %v1791 = vsel %vm626, %v1769, %v1771
        %v1792 = vsel %vm626, %v1771, %v1773
        %v1793 = vsel %vm626, %v1773, %v1775
        %v1794 = vsel %vm626, %v1775, %v1777
        %v1795 = vsel %vm626, %v1779, %v1781
        %v1796 = vsel %vm626, %v1781, %v1783
        %v1797 = vsel %vm626, %v1783, %v1785
        %v1798 = vsel %vm626, %v1785, %v1787
        %v1799 = vsel %vm626, %v1787, %v1789
        %v1812 = vmax.f32 %v1742, %v1790
        %v1813 = vmax.f32 %v1743, %v1791
        %v1814 = vmax.f32 %v1744, %v1792
        %v1815 = vmax.f32 %v1745, %v1793
        %v1816 = vmax.f32 %v1746, %v1794
        %v1817 = vmax.f32 %v1747, %v1777
        %v1818 = vmax.f32 %v1748, %v1795
        %v1819 = vmax.f32 %v1749, %v1796
        %v1820 = vmax.f32 %v1750, %v1797
        %v1821 = vmax.f32 %v1751, %v1798
        %v1822 = vmax.f32 %v1752, %v1799
        %v1823 = vmax.f32 %v1753, %v1789
        %v1824 = vld [vmem:[%s11] sm:$0xff]
        %v1825 = vld [vmem:[%s11 + $0x8] sm:$0xff]
        %v1826 = vld [vmem:[%s11 + $0x10] sm:$0xff]
        %v1827 = vld [vmem:[%s11 + $0x18] sm:$0xff]
        %v1828 = vld [vmem:[%s11 + $0x20] sm:$0xff]
        %v1829 = vld [vmem:[%s11 + $0x28] sm:$0xff]
        %v1830 = vld [vmem:[%s11 + $0x30] sm:$0xff]
        %v1831 = vld [vmem:[%s11 + $0x38] sm:$0xff]
        %v1832 = vld [vmem:[%s11 + $0x40] sm:$0xff]
        %v1833 = vld [vmem:[%s11 + $0x48] sm:$0xff]
        %v1834 = vld [vmem:[%s11 + $0x50] sm:$0xff]
        %v1835 = vld [vmem:[%s11 + $0x58] sm:$0xff]
        %v1836 = vld [vmem:[%s11 + $0x60] sm:$0xff]
        %v1837 = vld [vmem:[%s11 + $0x68] sm:$0xff]
        %v1838 = vld [vmem:[%s11 + $0x70] sm:$0xff]
        %v1839 = vld [vmem:[%s11 + $0x78] sm:$0xff]
        %v1840 = vld [vmem:[%s11 + $0x80] sm:$0xff]
        %v1841 = vld [vmem:[%s11 + $0x88] sm:$0xff]
        %v1842 = vld [vmem:[%s11 + $0x90] sm:$0xff]
        %v1843 = vld [vmem:[%s11 + $0x98] sm:$0xff]
        %v1844 = vld [vmem:[%s11 + $0xa0] sm:$0xff]
        %v1845 = vld [vmem:[%s11 + $0xa8] sm:$0xff]
        %v1846 = vld [vmem:[%s11 + $0xb0] sm:$0xff]
        %v1847 = vld [vmem:[%s11 + $0xb8] sm:$0xff]
        %v1848 = vld [vmem:[%s11 + $0xc0] sm:$0xff]
        %v1849 = vld [vmem:[%s11 + $0xc8] sm:$0xff]
        %v1850 = vld [vmem:[%s11 + $0xd0] sm:$0xff]
        %v1851 = vld [vmem:[%s11 + $0xd8] sm:$0xff]
        %v1852 = vld [vmem:[%s11 + $0xe0] sm:$0xff]
        %v1853 = vld [vmem:[%s11 + $0xe8] sm:$0xff]
        %v1854 = vld [vmem:[%s11 + $0xf0] sm:$0xff]
        %v1855 = vld [vmem:[%s11 + $0xf8] sm:$0xff]
        %v1856 = vld [vmem:[%s11 + $0x100] sm:$0xff]
        %v1857 = vld [vmem:[%s11 + $0x108] sm:$0xff]
        %v1858 = vld [vmem:[%s11 + $0x110] sm:$0xff]
        %v1859 = vld [vmem:[%s11 + $0x118] sm:$0xff]
        %v1860 = vld [vmem:[%s11 + $0x120] sm:$0xff]
        %v1861 = vld [vmem:[%s11 + $0x128] sm:$0xff]
        %v1862 = vld [vmem:[%s11 + $0x130] sm:$0xff]
        %v1863 = vld [vmem:[%s11 + $0x138] sm:$0xff]
        %v1864 = vld [vmem:[%s11 + $0x140] sm:$0xff]
        %v1865 = vld [vmem:[%s11 + $0x148] sm:$0xff]
        %v1866 = vld [vmem:[%s11 + $0x150] sm:$0xff]
        %v1867 = vld [vmem:[%s11 + $0x158] sm:$0xff]
        %v1868 = vld [vmem:[%s11 + $0x160] sm:$0xff]
        %v1869 = vld [vmem:[%s11 + $0x168] sm:$0xff]
        %v1870 = vld [vmem:[%s11 + $0x170] sm:$0xff]
        %v1871 = vld [vmem:[%s11 + $0x178] sm:$0xff]
        %v1872 = vld [vmem:[%s11 + $0x180] sm:$0xff]
        %v1873 = vld [vmem:[%s11 + $0x188] sm:$0xff]
        %v1874 = vld [vmem:[%s11 + $0x190] sm:$0xff]
        %v1875 = vld [vmem:[%s11 + $0x198] sm:$0xff]
        %v1876 = vld [vmem:[%s11 + $0x1a0] sm:$0xff]
        %v1877 = vld [vmem:[%s11 + $0x1a8] sm:$0xff]
        %v1878 = vld [vmem:[%s11 + $0x1b0] sm:$0xff]
        %v1879 = vld [vmem:[%s11 + $0x1b8] sm:$0xff]
        %v1880 = vld [vmem:[%s11 + $0x1c0] sm:$0xff]
        %v1881 = vld [vmem:[%s11 + $0x1c8] sm:$0xff]
        %v1882 = vld [vmem:[%s11 + $0x1d0] sm:$0xff]
        %v1883 = vld [vmem:[%s11 + $0x1d8] sm:$0xff]
        %v1884 = vld [vmem:[%s11 + $0x1e0] sm:$0xff]
        %v1885 = vld [vmem:[%s11 + $0x1e8] sm:$0xff]
        %v1886 = vld [vmem:[%s11 + $0x1f0] sm:$0xff]
        %v1887 = vld [vmem:[%s11 + $0x1f8] sm:$0xff]
        %v1888 = vld [vmem:[%s11 + $0x200] sm:$0xff]
        %v1889 = vld [vmem:[%s11 + $0x208] sm:$0xff]
        %v1890 = vld [vmem:[%s11 + $0x210] sm:$0xff]
        %v1891 = vld [vmem:[%s11 + $0x218] sm:$0xff]
        %v1892 = vld [vmem:[%s11 + $0x220] sm:$0xff]
        %v1893 = vld [vmem:[%s11 + $0x228] sm:$0xff]
        %v1894 = vld [vmem:[%s11 + $0x230] sm:$0xff]
        %v1895 = vld [vmem:[%s11 + $0x238] sm:$0xff]
        %v1896 = vld [vmem:[%s11 + $0x240] sm:$0xff]
        %v1897 = vld [vmem:[%s11 + $0x248] sm:$0xff]
        %v1898 = vld [vmem:[%s11 + $0x250] sm:$0xff]
        %v1899 = vld [vmem:[%s11 + $0x258] sm:$0xff]
        %v1900 = vld [vmem:[%s11 + $0x260] sm:$0xff]
        %v1901 = vld [vmem:[%s11 + $0x268] sm:$0xff]
        %v1902 = vld [vmem:[%s11 + $0x270] sm:$0xff]
        %v1903 = vld [vmem:[%s11 + $0x278] sm:$0xff]
        %v1904 = vld [vmem:[%s11 + $0x280] sm:$0xff]
        %v1905 = vld [vmem:[%s11 + $0x288] sm:$0xff]
        %v1906 = vld [vmem:[%s11 + $0x290] sm:$0x1f]
        %vm1907 = vcmask 171008
        %v1909 = vsel %vm1907, %v1817, 0
        %v1912 = vsel %vm1907, %v1823, 0
        %v1915 = vsel %vm734, %v1906, 0
        %1917 = vmatprep.subr.mxu0 0.0
        %1918 = vmatpush1.msra.mxu0 %v1824
        %1919 = vmatprep.subr.mxu0 0.0
        %1920 = vmatpush1.msra.mxu0 %v1825
        %1921 = vmatprep.subr.mxu0 0.0
        %1922 = vmatpush1.msra.mxu0 %v1826
        %1923 = vmatprep.subr.mxu0 0.0
        %1924 = vmatpush1.msra.mxu0 %v1827
        %1925 = vmatprep.subr.mxu0 0.0
        %1926 = vmatpush1.msra.mxu0 %v1828
        %1927 = vmatprep.subr.mxu0 0.0
        %1928 = vmatpush1.msra.mxu0 %v1829
        %1929 = vmatprep.subr.mxu0 0.0
        %1930 = vmatpush1.msra.mxu0 %v1830
        %1931 = vmatprep.subr.mxu0 0.0
        %1932 = vmatpush1.msra.mxu0 %v1831
        %1933 = vmatprep.subr.mxu0 0.0
        %1934 = vmatpush1.msra.mxu0 %v1832
        %1935 = vmatprep.subr.mxu0 0.0
        %1936 = vmatpush1.msra.mxu0 %v1833
        %1937 = vmatprep.subr.mxu0 0.0
        %1938 = vmatpush1.msra.mxu0 %v1834
        %1939 = vmatprep.subr.mxu0 0.0
        %1940 = vmatpush1.msra.mxu0 %v1835
        %1941 = vmatprep.subr.mxu0 0.0
        %1942 = vmatpush1.msra.mxu0 %v1836
        %1943 = vmatprep.subr.mxu0 0.0
        %1944 = vmatpush1.msra.mxu0 %v1837
        %1945 = vmatprep.subr.mxu0 0.0
        %1946 = vmatpush1.msra.mxu0 %v1838
        %1947 = vmatprep.subr.mxu0 0.0
        %1948 = vmatpush1.msra.mxu0 %v1839
        %1949 = vmatprep.subr.mxu0 0.0
        %1950 = vmatpush1.msra.mxu0 %v1840
        %1951 = vmatprep.subr.mxu0 0.0
        %1952 = vmatpush1.msra.mxu0 %v1841
        %1953 = vmatprep.subr.mxu0 0.0
        %1954 = vmatpush1.msra.mxu0 %v1842
        %1955 = vmatprep.subr.mxu0 0.0
        %1956 = vmatpush1.msra.mxu0 %v1843
        %1957 = vmatprep.subr.mxu0 0.0
        %1958 = vmatpush1.msra.mxu0 %v1844
        %1959 = vmatprep.subr.mxu0 0.0
        %1960 = vmatpush1.msra.mxu0 %v1845
        %1961 = vmatprep.subr.mxu0 0.0
        %1962 = vmatpush1.msra.mxu0 %v1846
        %1963 = vmatprep.subr.mxu0 0.0
        %1964 = vmatpush1.msra.mxu0 %v1847
        %1965 = vmatprep.subr.mxu0 0.0
        %1966 = vmatpush1.msra.mxu0 %v1848
        %1967 = vmatprep.subr.mxu0 0.0
        %1968 = vmatpush1.msra.mxu0 %v1849
        %1969 = vmatprep.subr.mxu0 0.0
        %1970 = vmatpush1.msra.mxu0 %v1850
        %1971 = vmatprep.subr.mxu0 0.0
        %1972 = vmatpush1.msra.mxu0 %v1851
        %1973 = vmatprep.subr.mxu0 0.0
        %1974 = vmatpush1.msra.mxu0 %v1852
        %1975 = vmatprep.subr.mxu0 0.0
        %1976 = vmatpush1.msra.mxu0 %v1853
        %1977 = vmatprep.subr.mxu0 0.0
        %1978 = vmatpush1.msra.mxu0 %v1854
        %1979 = vmatprep.subr.mxu0 0.0
        %1980 = vmatpush1.msra.mxu0 %v1855
        %1981 = vmatprep.mubr.f32.mxu0 %v1813
        %1982 = vmatmul.mubr.f32.gmra.mrb[0].mxu0 %v1812
        %v1983 = vpop.f32.mrb[0].mxu0
        %v1984 = vadd.f32 0.0, %v1983
        %v1985 = vpop.f32.mrb[0].mxu0
        %1986 = vmatprep.mubr.f32.mxu0 %v1819
        %1987 = vmatmul.mubr.f32.gmra.mrb[0].mxu0 %v1818
        %v1988 = vpop.f32.mrb[0].mxu0
        %v1989 = vadd.f32 0.0, %v1988
        %v1990 = vpop.f32.mrb[0].mxu0
        %1991 = vdwg.mxu0
        %1992 = vmatprep.subr.mxu0 0.0
        %1993 = vmatpush1.msra.mxu0 %v1856
        %1994 = vmatprep.subr.mxu0 0.0
        %1995 = vmatpush1.msra.mxu0 %v1857
        %1996 = vmatprep.subr.mxu0 0.0
        %1997 = vmatpush1.msra.mxu0 %v1858
        %1998 = vmatprep.subr.mxu0 0.0
        %1999 = vmatpush1.msra.mxu0 %v1859
        %2000 = vmatprep.subr.mxu0 0.0
        %2001 = vmatpush1.msra.mxu0 %v1860
        %2002 = vmatprep.subr.mxu0 0.0
        %2003 = vmatpush1.msra.mxu0 %v1861
        %2004 = vmatprep.subr.mxu0 0.0
        %2005 = vmatpush1.msra.mxu0 %v1862
        %2006 = vmatprep.subr.mxu0 0.0
        %2007 = vmatpush1.msra.mxu0 %v1863
        %2008 = vmatprep.subr.mxu0 0.0
        %2009 = vmatpush1.msra.mxu0 %v1864
        %2010 = vmatprep.subr.mxu0 0.0
        %2011 = vmatpush1.msra.mxu0 %v1865
        %2012 = vmatprep.subr.mxu0 0.0
        %2013 = vmatpush1.msra.mxu0 %v1866
        %2014 = vmatprep.subr.mxu0 0.0
        %2015 = vmatpush1.msra.mxu0 %v1867
        %2016 = vmatprep.subr.mxu0 0.0
        %2017 = vmatpush1.msra.mxu0 %v1868
        %2018 = vmatprep.subr.mxu0 0.0
        %2019 = vmatpush1.msra.mxu0 %v1869
        %2020 = vmatprep.subr.mxu0 0.0
        %2021 = vmatpush1.msra.mxu0 %v1870
        %2022 = vmatprep.subr.mxu0 0.0
        %2023 = vmatpush1.msra.mxu0 %v1871
        %2024 = vmatprep.subr.mxu0 0.0
        %2025 = vmatpush1.msra.mxu0 %v1872
        %2026 = vmatprep.subr.mxu0 0.0
        %2027 = vmatpush1.msra.mxu0 %v1873
        %2028 = vmatprep.subr.mxu0 0.0
        %2029 = vmatpush1.msra.mxu0 %v1874
        %2030 = vmatprep.subr.mxu0 0.0
        %2031 = vmatpush1.msra.mxu0 %v1875
        %2032 = vmatprep.subr.mxu0 0.0
        %2033 = vmatpush1.msra.mxu0 %v1876
        %2034 = vmatprep.subr.mxu0 0.0
        %2035 = vmatpush1.msra.mxu0 %v1877
        %2036 = vmatprep.subr.mxu0 0.0
        %2037 = vmatpush1.msra.mxu0 %v1878
        %2038 = vmatprep.subr.mxu0 0.0
        %2039 = vmatpush1.msra.mxu0 %v1879
        %2040 = vmatprep.subr.mxu0 0.0
        %2041 = vmatpush1.msra.mxu0 %v1880
        %2042 = vmatprep.subr.mxu0 0.0
        %2043 = vmatpush1.msra.mxu0 %v1881
        %2044 = vmatprep.subr.mxu0 0.0
        %2045 = vmatpush1.msra.mxu0 %v1882
        %2046 = vmatprep.subr.mxu0 0.0
        %2047 = vmatpush1.msra.mxu0 %v1883
        %2048 = vmatprep.subr.mxu0 0.0
        %2049 = vmatpush1.msra.mxu0 %v1884
        %2050 = vmatprep.subr.mxu0 0.0
        %2051 = vmatpush1.msra.mxu0 %v1885
        %2052 = vmatprep.subr.mxu0 0.0
        %2053 = vmatpush1.msra.mxu0 %v1886
        %2054 = vmatprep.subr.mxu0 0.0
        %2055 = vmatpush1.msra.mxu0 %v1887
        %2056 = vmatprep.mubr.f32.mxu0 %v1815
        %2057 = vmatmul.mubr.f32.gmra.mrb[0].mxu0 %v1814
        %v2058 = vpop.f32.mrb[0].mxu0
        %v2059 = vadd.f32 %v1984, %v2058
        %v2060 = vpop.f32.mrb[0].mxu0
        %2061 = vmatprep.mubr.f32.mxu0 %v1821
        %2062 = vmatmul.mubr.f32.gmra.mrb[0].mxu0 %v1820
        %v2063 = vpop.f32.mrb[0].mxu0
        %v2064 = vadd.f32 %v1989, %v2063
        %v2065 = vpop.f32.mrb[0].mxu0
        %2066 = vdwg.mxu0
        %2067 = vmatprep.subr.mxu0 0.0
        %2068 = vmatpush1.msra.mxu0 %v1888
        %2069 = vmatprep.subr.mxu0 0.0
        %2070 = vmatpush1.msra.mxu0 %v1889
        %2071 = vmatprep.subr.mxu0 0.0
        %2072 = vmatpush1.msra.mxu0 %v1890
        %2073 = vmatprep.subr.mxu0 0.0
        %2074 = vmatpush1.msra.mxu0 %v1891
        %2075 = vmatprep.subr.mxu0 0.0
        %2076 = vmatpush1.msra.mxu0 %v1892
        %2077 = vmatprep.subr.mxu0 0.0
        %2078 = vmatpush1.msra.mxu0 %v1893
        %2079 = vmatprep.subr.mxu0 0.0
        %2080 = vmatpush1.msra.mxu0 %v1894
        %2081 = vmatprep.subr.mxu0 0.0
        %2082 = vmatpush1.msra.mxu0 %v1895
        %2083 = vmatprep.subr.mxu0 0.0
        %2084 = vmatpush1.msra.mxu0 %v1896
        %2085 = vmatprep.subr.mxu0 0.0
        %2086 = vmatpush1.msra.mxu0 %v1897
        %2087 = vmatprep.subr.mxu0 0.0
        %2088 = vmatpush1.msra.mxu0 %v1898
        %2089 = vmatprep.subr.mxu0 0.0
        %2090 = vmatpush1.msra.mxu0 %v1899
        %2091 = vmatprep.subr.mxu0 0.0
        %2092 = vmatpush1.msra.mxu0 %v1900
        %2093 = vmatprep.subr.mxu0 0.0
        %2094 = vmatpush1.msra.mxu0 %v1901
        %2095 = vmatprep.subr.mxu0 0.0
        %2096 = vmatpush1.msra.mxu0 %v1902
        %2097 = vmatprep.subr.mxu0 0.0
        %2098 = vmatpush1.msra.mxu0 %v1903
        %2099 = vmatprep.subr.mxu0 0.0
        %2100 = vmatpush1.msra.mxu0 %v1904
        %2101 = vmatprep.subr.mxu0 0.0
        %2102 = vmatpush1.msra.mxu0 %v1905
        %2103 = vmatprep.subr.mxu0 0.0
        %2104 = vmatpush1.msra.mxu0 %v1915
        %2105 = vmatprep.subr.mxu0 0.0
        %2106 = vmatpush1.msra.mxu0 0.0
        %2107 = vmatprep.subr.mxu0 0.0
        %2108 = vmatpush1.msra.mxu0 0.0
        %2109 = vmatprep.subr.mxu0 0.0
        %2110 = vmatpush1.msra.mxu0 0.0
        %2111 = vmatprep.subr.mxu0 0.0
        %2112 = vmatpush1.msra.mxu0 0.0
        %2113 = vmatprep.subr.mxu0 0.0
        %2114 = vmatpush1.msra.mxu0 0.0
        %2115 = vmatprep.subr.mxu0 0.0
        %2116 = vmatpush1.msra.mxu0 0.0
        %2117 = vmatprep.subr.mxu0 0.0
        %2118 = vmatpush1.msra.mxu0 0.0
        %2119 = vmatprep.subr.mxu0 0.0
        %2120 = vmatpush1.msra.mxu0 0.0
        %2121 = vmatprep.subr.mxu0 0.0
        %2122 = vmatpush1.msra.mxu0 0.0
        %2123 = vmatprep.subr.mxu0 0.0
        %2124 = vmatpush1.msra.mxu0 0.0
        %2125 = vmatprep.subr.mxu0 0.0
        %2126 = vmatpush1.msra.mxu0 0.0
        %2127 = vmatprep.subr.mxu0 0.0
        %2128 = vmatpush1.msra.mxu0 0.0
        %2129 = vmatprep.subr.mxu0 0.0
        %2130 = vmatpush1.msra.mxu0 0.0
        %2131 = vmatprep.mubr.f32.mxu0 %v1909
        %2132 = vmatmul.mubr.f32.gmra.mrb[0].mxu0 %v1816
        %v2133 = vpop.f32.mrb[0].mxu0
        %v2134 = vadd.f32 %v2059, %v2133
        %v2135 = vpop.f32.mrb[0].mxu0
        %2136 = vmatprep.mubr.f32.mxu0 %v1912
        %2137 = vmatmul.mubr.f32.gmra.mrb[0].mxu0 %v1822
        %v2138 = vpop.f32.mrb[0].mxu0
        %v2139 = vadd.f32 %v2064, %v2138
        %v2140 = vpop.f32.mrb[0].mxu0
        %2141 = vdwg.mxu0
        %v2142 = vld [vmem:[%s6] sm:$0x1]
        %v2143 = vld [vmem:[%s5] sm:$0xff]
        %v2144 = vld [vmem:[%s5 + $0x8] sm:$0xff]
        %v2145 = vld [vmem:[%s5 + $0x10] sm:$0xff]
        %v2146 = vld [vmem:[%s5 + $0x18] sm:$0xff]
        %v2147 = vld [vmem:[%s5 + $0x20] sm:$0xf]
        %vm2148 = vcmask 293888
        %v2150 = vsel %vm2148, %v2134, 0
        %v2153 = vsel %vm725, %v2147, 0
        %2155 = vmatprep.subr.mxu0 0.0
        %2156 = vmatpush1.msra.mxu0 %v2143
        %2157 = vmatprep.subr.mxu0 0.0
        %2158 = vmatpush1.msra.mxu0 %v2144
        %2159 = vmatprep.subr.mxu0 0.0
        %2160 = vmatpush1.msra.mxu0 %v2145
        %2161 = vmatprep.subr.mxu0 0.0
        %2162 = vmatpush1.msra.mxu0 %v2146
        %2163 = vmatprep.subr.mxu0 0.0
        %2164 = vmatpush1.msra.mxu0 %v2153
        %2165 = vmatprep.subr.mxu0 0.0
        %2166 = vmatpush1.msra.mxu0 0.0
        %2167 = vmatprep.subr.mxu0 0.0
        %2168 = vmatpush1.msra.mxu0 0.0
        %2169 = vmatprep.subr.mxu0 0.0
        %2170 = vmatpush1.msra.mxu0 0.0
        %2171 = vmatprep.subr.mxu0 0.0
        %2172 = vmatpush1.msra.mxu0 0.0
        %2173 = vmatprep.subr.mxu0 0.0
        %2174 = vmatpush1.msra.mxu0 0.0
        %2175 = vmatprep.subr.mxu0 0.0
        %2176 = vmatpush1.msra.mxu0 0.0
        %2177 = vmatprep.subr.mxu0 0.0
        %2178 = vmatpush1.msra.mxu0 0.0
        %2179 = vmatprep.subr.mxu0 0.0
        %2180 = vmatpush1.msra.mxu0 0.0
        %2181 = vmatprep.subr.mxu0 0.0
        %2182 = vmatpush1.msra.mxu0 0.0
        %2183 = vmatprep.subr.mxu0 0.0
        %2184 = vmatpush1.msra.mxu0 0.0
        %2185 = vmatprep.subr.mxu0 0.0
        %2186 = vmatpush1.msra.mxu0 0.0
        %2187 = vmatprep.subr.mxu0 0.0
        %2188 = vmatpush1.msra.mxu0 0.0
        %2189 = vmatprep.subr.mxu0 0.0
        %2190 = vmatpush1.msra.mxu0 0.0
        %2191 = vmatprep.subr.mxu0 0.0
        %2192 = vmatpush1.msra.mxu0 0.0
        %2193 = vmatprep.subr.mxu0 0.0
        %2194 = vmatpush1.msra.mxu0 0.0
        %2195 = vmatprep.subr.mxu0 0.0
        %2196 = vmatpush1.msra.mxu0 0.0
        %2197 = vmatprep.subr.mxu0 0.0
        %2198 = vmatpush1.msra.mxu0 0.0
        %2199 = vmatprep.subr.mxu0 0.0
        %2200 = vmatpush1.msra.mxu0 0.0
        %2201 = vmatprep.subr.mxu0 0.0
        %2202 = vmatpush1.msra.mxu0 0.0
        %2203 = vmatprep.subr.mxu0 0.0
        %2204 = vmatpush1.msra.mxu0 0.0
        %2205 = vmatprep.subr.mxu0 0.0
        %2206 = vmatpush1.msra.mxu0 0.0
        %2207 = vmatprep.subr.mxu0 0.0
        %2208 = vmatpush1.msra.mxu0 0.0
        %2209 = vmatprep.subr.mxu0 0.0
        %2210 = vmatpush1.msra.mxu0 0.0
        %2211 = vmatprep.subr.mxu0 0.0
        %2212 = vmatpush1.msra.mxu0 0.0
        %2213 = vmatprep.subr.mxu0 0.0
        %2214 = vmatpush1.msra.mxu0 0.0
        %2215 = vmatprep.subr.mxu0 0.0
        %2216 = vmatpush1.msra.mxu0 0.0
        %2217 = vmatprep.subr.mxu0 0.0
        %2218 = vmatpush1.msra.mxu0 0.0
        %2219 = vmatprep.mubr.f32.mxu0 0.0
        %2220 = vmatmul.mubr.f32.gmra.mrb[0].mxu0 %v2150
        %v2221 = vpop.f32.mrb[0].mxu0
        %v2222 = vadd.f32 0.0, %v2221
        %v2223 = vpop.f32.mrb[0].mxu0
        %2224 = vdwg.mxu0
        %v2225 = vadd.f32 %v2142, %v2222
        %s2226 = scalar_lea.vmem %s5, 40
        %v2227 = vld [vmem:[%s2226] sm:$0xff]
        %v2228 = vld [vmem:[%s2226 + $0x8] sm:$0xff]
        %v2229 = vld [vmem:[%s2226 + $0x10] sm:$0xff]
        %v2230 = vld [vmem:[%s2226 + $0x18] sm:$0xff]
        %v2231 = vld [vmem:[%s2226 + $0x20] sm:$0xf]
        %v2232 = vrot.slane %v2134, 1
        %v2233 = vsel %vm2148, %v2232, 0
        %v2236 = vsel %vm725, %v2231, 0
        %2238 = vmatprep.subr.mxu0 0.0
        %2239 = vmatpush1.msra.mxu0 %v2227
        %2240 = vmatprep.subr.mxu0 0.0
        %2241 = vmatpush1.msra.mxu0 %v2228
        %2242 = vmatprep.subr.mxu0 0.0
        %2243 = vmatpush1.msra.mxu0 %v2229
        %2244 = vmatprep.subr.mxu0 0.0
        %2245 = vmatpush1.msra.mxu0 %v2230
        %2246 = vmatprep.subr.mxu0 0.0
        %2247 = vmatpush1.msra.mxu0 %v2236
        %2248 = vmatprep.subr.mxu0 0.0
        %2249 = vmatpush1.msra.mxu0 0.0
        %2250 = vmatprep.subr.mxu0 0.0
        %2251 = vmatpush1.msra.mxu0 0.0
        %2252 = vmatprep.subr.mxu0 0.0
        %2253 = vmatpush1.msra.mxu0 0.0
        %2254 = vmatprep.subr.mxu0 0.0
        %2255 = vmatpush1.msra.mxu0 0.0
        %2256 = vmatprep.subr.mxu0 0.0
        %2257 = vmatpush1.msra.mxu0 0.0
        %2258 = vmatprep.subr.mxu0 0.0
        %2259 = vmatpush1.msra.mxu0 0.0
        %2260 = vmatprep.subr.mxu0 0.0
        %2261 = vmatpush1.msra.mxu0 0.0
        %2262 = vmatprep.subr.mxu0 0.0
        %2263 = vmatpush1.msra.mxu0 0.0
        %2264 = vmatprep.subr.mxu0 0.0
        %2265 = vmatpush1.msra.mxu0 0.0
        %2266 = vmatprep.subr.mxu0 0.0
        %2267 = vmatpush1.msra.mxu0 0.0
        %2268 = vmatprep.subr.mxu0 0.0
        %2269 = vmatpush1.msra.mxu0 0.0
        %2270 = vmatprep.subr.mxu0 0.0
        %2271 = vmatpush1.msra.mxu0 0.0
        %2272 = vmatprep.subr.mxu0 0.0
        %2273 = vmatpush1.msra.mxu0 0.0
        %2274 = vmatprep.subr.mxu0 0.0
        %2275 = vmatpush1.msra.mxu0 0.0
        %2276 = vmatprep.subr.mxu0 0.0
        %2277 = vmatpush1.msra.mxu0 0.0
        %2278 = vmatprep.subr.mxu0 0.0
        %2279 = vmatpush1.msra.mxu0 0.0
        %2280 = vmatprep.subr.mxu0 0.0
        %2281 = vmatpush1.msra.mxu0 0.0
        %2282 = vmatprep.subr.mxu0 0.0
        %2283 = vmatpush1.msra.mxu0 0.0
        %2284 = vmatprep.subr.mxu0 0.0
        %2285 = vmatpush1.msra.mxu0 0.0
        %2286 = vmatprep.subr.mxu0 0.0
        %2287 = vmatpush1.msra.mxu0 0.0
        %2288 = vmatprep.subr.mxu0 0.0
        %2289 = vmatpush1.msra.mxu0 0.0
        %2290 = vmatprep.subr.mxu0 0.0
        %2291 = vmatpush1.msra.mxu0 0.0
        %2292 = vmatprep.subr.mxu0 0.0
        %2293 = vmatpush1.msra.mxu0 0.0
        %2294 = vmatprep.subr.mxu0 0.0
        %2295 = vmatpush1.msra.mxu0 0.0
        %2296 = vmatprep.subr.mxu0 0.0
        %2297 = vmatpush1.msra.mxu0 0.0
        %2298 = vmatprep.subr.mxu0 0.0
        %2299 = vmatpush1.msra.mxu0 0.0
        %2300 = vmatprep.subr.mxu0 0.0
        %2301 = vmatpush1.msra.mxu0 0.0
        %2302 = vmatprep.mubr.f32.mxu0 0.0
        %2303 = vmatmul.mubr.f32.gmra.mrb[0].mxu0 %v2233
        %v2304 = vpop.f32.mrb[0].mxu0
        %v2305 = vadd.f32 0.0, %v2304
        %v2306 = vpop.f32.mrb[0].mxu0
        %2307 = vdwg.mxu0
        %v2308 = vadd.f32 %v2225, %v2305
        %s2309 = scalar_lea.vmem %s5, 80
        %v2310 = vld [vmem:[%s2309] sm:$0xff]
        %v2311 = vld [vmem:[%s2309 + $0x8] sm:$0xff]
        %v2312 = vld [vmem:[%s2309 + $0x10] sm:$0xff]
        %v2313 = vld [vmem:[%s2309 + $0x18] sm:$0xff]
        %v2314 = vld [vmem:[%s2309 + $0x20] sm:$0xf]
        %v2315 = vrot.slane %v2134, 2
        %v2316 = vsel %vm2148, %v2315, 0
        %v2319 = vsel %vm725, %v2314, 0
        %2321 = vmatprep.subr.mxu0 0.0
        %2322 = vmatpush1.msra.mxu0 %v2310
        %2323 = vmatprep.subr.mxu0 0.0
        %2324 = vmatpush1.msra.mxu0 %v2311
        %2325 = vmatprep.subr.mxu0 0.0
        %2326 = vmatpush1.msra.mxu0 %v2312
        %2327 = vmatprep.subr.mxu0 0.0
        %2328 = vmatpush1.msra.mxu0 %v2313
        %2329 = vmatprep.subr.mxu0 0.0
        %2330 = vmatpush1.msra.mxu0 %v2319
        %2331 = vmatprep.subr.mxu0 0.0
        %2332 = vmatpush1.msra.mxu0 0.0
        %2333 = vmatprep.subr.mxu0 0.0
        %2334 = vmatpush1.msra.mxu0 0.0
        %2335 = vmatprep.subr.mxu0 0.0
        %2336 = vmatpush1.msra.mxu0 0.0
        %2337 = vmatprep.subr.mxu0 0.0
        %2338 = vmatpush1.msra.mxu0 0.0
        %2339 = vmatprep.subr.mxu0 0.0
        %2340 = vmatpush1.msra.mxu0 0.0
        %2341 = vmatprep.subr.mxu0 0.0
        %2342 = vmatpush1.msra.mxu0 0.0
        %2343 = vmatprep.subr.mxu0 0.0
        %2344 = vmatpush1.msra.mxu0 0.0
        %2345 = vmatprep.subr.mxu0 0.0
        %2346 = vmatpush1.msra.mxu0 0.0
        %2347 = vmatprep.subr.mxu0 0.0
        %2348 = vmatpush1.msra.mxu0 0.0
        %2349 = vmatprep.subr.mxu0 0.0
        %2350 = vmatpush1.msra.mxu0 0.0
        %2351 = vmatprep.subr.mxu0 0.0
        %2352 = vmatpush1.msra.mxu0 0.0
        %2353 = vmatprep.subr.mxu0 0.0
        %2354 = vmatpush1.msra.mxu0 0.0
        %2355 = vmatprep.subr.mxu0 0.0
        %2356 = vmatpush1.msra.mxu0 0.0
        %2357 = vmatprep.subr.mxu0 0.0
        %2358 = vmatpush1.msra.mxu0 0.0
        %2359 = vmatprep.subr.mxu0 0.0
        %2360 = vmatpush1.msra.mxu0 0.0
        %2361 = vmatprep.subr.mxu0 0.0
        %2362 = vmatpush1.msra.mxu0 0.0
        %2363 = vmatprep.subr.mxu0 0.0
        %2364 = vmatpush1.msra.mxu0 0.0
        %2365 = vmatprep.subr.mxu0 0.0
        %2366 = vmatpush1.msra.mxu0 0.0
        %2367 = vmatprep.subr.mxu0 0.0
        %2368 = vmatpush1.msra.mxu0 0.0
        %2369 = vmatprep.subr.mxu0 0.0
        %2370 = vmatpush1.msra.mxu0 0.0
        %2371 = vmatprep.subr.mxu0 0.0
        %2372 = vmatpush1.msra.mxu0 0.0
        %2373 = vmatprep.subr.mxu0 0.0
        %2374 = vmatpush1.msra.mxu0 0.0
        %2375 = vmatprep.subr.mxu0 0.0
        %2376 = vmatpush1.msra.mxu0 0.0
        %2377 = vmatprep.subr.mxu0 0.0
        %2378 = vmatpush1.msra.mxu0 0.0
        %2379 = vmatprep.subr.mxu0 0.0
        %2380 = vmatpush1.msra.mxu0 0.0
        %2381 = vmatprep.subr.mxu0 0.0
        %2382 = vmatpush1.msra.mxu0 0.0
        %2383 = vmatprep.subr.mxu0 0.0
        %2384 = vmatpush1.msra.mxu0 0.0
        %2385 = vmatprep.mubr.f32.mxu0 0.0
        %2386 = vmatmul.mubr.f32.gmra.mrb[0].mxu0 %v2316
        %v2387 = vpop.f32.mrb[0].mxu0
        %v2388 = vadd.f32 0.0, %v2387
        %v2389 = vpop.f32.mrb[0].mxu0
        %2390 = vdwg.mxu0
        %v2391 = vadd.f32 %v2308, %v2388
        %s2392 = scalar_lea.vmem %s5, 120
        %v2393 = vld [vmem:[%s2392] sm:$0xff]
        %v2394 = vld [vmem:[%s2392 + $0x8] sm:$0xff]
        %v2395 = vld [vmem:[%s2392 + $0x10] sm:$0xff]
        %v2396 = vld [vmem:[%s2392 + $0x18] sm:$0xff]
        %v2397 = vld [vmem:[%s2392 + $0x20] sm:$0xf]
        %v2398 = vrot.slane %v2134, 3
        %v2399 = vsel %vm2148, %v2398, 0
        %v2402 = vsel %vm725, %v2397, 0
        %2404 = vmatprep.subr.mxu0 0.0
        %2405 = vmatpush1.msra.mxu0 %v2393
        %2406 = vmatprep.subr.mxu0 0.0
        %2407 = vmatpush1.msra.mxu0 %v2394
        %2408 = vmatprep.subr.mxu0 0.0
        %2409 = vmatpush1.msra.mxu0 %v2395
        %2410 = vmatprep.subr.mxu0 0.0
        %2411 = vmatpush1.msra.mxu0 %v2396
        %2412 = vmatprep.subr.mxu0 0.0
        %2413 = vmatpush1.msra.mxu0 %v2402
        %2414 = vmatprep.subr.mxu0 0.0
        %2415 = vmatpush1.msra.mxu0 0.0
        %2416 = vmatprep.subr.mxu0 0.0
        %2417 = vmatpush1.msra.mxu0 0.0
        %2418 = vmatprep.subr.mxu0 0.0
        %2419 = vmatpush1.msra.mxu0 0.0
        %2420 = vmatprep.subr.mxu0 0.0
        %2421 = vmatpush1.msra.mxu0 0.0
        %2422 = vmatprep.subr.mxu0 0.0
        %2423 = vmatpush1.msra.mxu0 0.0
        %2424 = vmatprep.subr.mxu0 0.0
        %2425 = vmatpush1.msra.mxu0 0.0
        %2426 = vmatprep.subr.mxu0 0.0
        %2427 = vmatpush1.msra.mxu0 0.0
        %2428 = vmatprep.subr.mxu0 0.0
        %2429 = vmatpush1.msra.mxu0 0.0
        %2430 = vmatprep.subr.mxu0 0.0
        %2431 = vmatpush1.msra.mxu0 0.0
        %2432 = vmatprep.subr.mxu0 0.0
        %2433 = vmatpush1.msra.mxu0 0.0
        %2434 = vmatprep.subr.mxu0 0.0
        %2435 = vmatpush1.msra.mxu0 0.0
        %2436 = vmatprep.subr.mxu0 0.0
        %2437 = vmatpush1.msra.mxu0 0.0
        %2438 = vmatprep.subr.mxu0 0.0
        %2439 = vmatpush1.msra.mxu0 0.0
        %2440 = vmatprep.subr.mxu0 0.0
        %2441 = vmatpush1.msra.mxu0 0.0
        %2442 = vmatprep.subr.mxu0 0.0
        %2443 = vmatpush1.msra.mxu0 0.0
        %2444 = vmatprep.subr.mxu0 0.0
        %2445 = vmatpush1.msra.mxu0 0.0
        %2446 = vmatprep.subr.mxu0 0.0
        %2447 = vmatpush1.msra.mxu0 0.0
        %2448 = vmatprep.subr.mxu0 0.0
        %2449 = vmatpush1.msra.mxu0 0.0
        %2450 = vmatprep.subr.mxu0 0.0
        %2451 = vmatpush1.msra.mxu0 0.0
        %2452 = vmatprep.subr.mxu0 0.0
        %2453 = vmatpush1.msra.mxu0 0.0
        %2454 = vmatprep.subr.mxu0 0.0
        %2455 = vmatpush1.msra.mxu0 0.0
        %2456 = vmatprep.subr.mxu0 0.0
        %2457 = vmatpush1.msra.mxu0 0.0
        %2458 = vmatprep.subr.mxu0 0.0
        %2459 = vmatpush1.msra.mxu0 0.0
        %2460 = vmatprep.subr.mxu0 0.0
        %2461 = vmatpush1.msra.mxu0 0.0
        %2462 = vmatprep.subr.mxu0 0.0
        %2463 = vmatpush1.msra.mxu0 0.0
        %2464 = vmatprep.subr.mxu0 0.0
        %2465 = vmatpush1.msra.mxu0 0.0
        %2466 = vmatprep.subr.mxu0 0.0
        %2467 = vmatpush1.msra.mxu0 0.0
        %2468 = vmatprep.mubr.f32.mxu0 0.0
        %2469 = vmatmul.mubr.f32.gmra.mrb[0].mxu0 %v2399
        %v2470 = vpop.f32.mrb[0].mxu0
        %v2471 = vadd.f32 0.0, %v2470
        %v2472 = vpop.f32.mrb[0].mxu0
        %2473 = vdwg.mxu0
        %v2474 = vadd.f32 %v2391, %v2471
        %s2475 = scalar_lea.vmem %s5, 160
        %v2476 = vld [vmem:[%s2475] sm:$0xff]
        %v2477 = vld [vmem:[%s2475 + $0x8] sm:$0xff]
        %v2478 = vld [vmem:[%s2475 + $0x10] sm:$0xff]
        %v2479 = vld [vmem:[%s2475 + $0x18] sm:$0xff]
        %v2480 = vld [vmem:[%s2475 + $0x20] sm:$0xf]
        %v2481 = vrot.slane %v2134, 4
        %v2482 = vsel %vm2148, %v2481, 0
        %v2485 = vsel %vm725, %v2480, 0
        %2487 = vmatprep.subr.mxu0 0.0
        %2488 = vmatpush1.msra.mxu0 %v2476
        %2489 = vmatprep.subr.mxu0 0.0
        %2490 = vmatpush1.msra.mxu0 %v2477
        %2491 = vmatprep.subr.mxu0 0.0
        %2492 = vmatpush1.msra.mxu0 %v2478
        %2493 = vmatprep.subr.mxu0 0.0
        %2494 = vmatpush1.msra.mxu0 %v2479
        %2495 = vmatprep.subr.mxu0 0.0
        %2496 = vmatpush1.msra.mxu0 %v2485
        %2497 = vmatprep.subr.mxu0 0.0
        %2498 = vmatpush1.msra.mxu0 0.0
        %2499 = vmatprep.subr.mxu0 0.0
        %2500 = vmatpush1.msra.mxu0 0.0
        %2501 = vmatprep.subr.mxu0 0.0
        %2502 = vmatpush1.msra.mxu0 0.0
        %2503 = vmatprep.subr.mxu0 0.0
        %2504 = vmatpush1.msra.mxu0 0.0
        %2505 = vmatprep.subr.mxu0 0.0
        %2506 = vmatpush1.msra.mxu0 0.0
        %2507 = vmatprep.subr.mxu0 0.0
        %2508 = vmatpush1.msra.mxu0 0.0
        %2509 = vmatprep.subr.mxu0 0.0
        %2510 = vmatpush1.msra.mxu0 0.0
        %2511 = vmatprep.subr.mxu0 0.0
        %2512 = vmatpush1.msra.mxu0 0.0
        %2513 = vmatprep.subr.mxu0 0.0
        %2514 = vmatpush1.msra.mxu0 0.0
        %2515 = vmatprep.subr.mxu0 0.0
        %2516 = vmatpush1.msra.mxu0 0.0
        %2517 = vmatprep.subr.mxu0 0.0
        %2518 = vmatpush1.msra.mxu0 0.0
        %2519 = vmatprep.subr.mxu0 0.0
        %2520 = vmatpush1.msra.mxu0 0.0
        %2521 = vmatprep.subr.mxu0 0.0
        %2522 = vmatpush1.msra.mxu0 0.0
        %2523 = vmatprep.subr.mxu0 0.0
        %2524 = vmatpush1.msra.mxu0 0.0
        %2525 = vmatprep.subr.mxu0 0.0
        %2526 = vmatpush1.msra.mxu0 0.0
        %2527 = vmatprep.subr.mxu0 0.0
        %2528 = vmatpush1.msra.mxu0 0.0
        %2529 = vmatprep.subr.mxu0 0.0
        %2530 = vmatpush1.msra.mxu0 0.0
        %2531 = vmatprep.subr.mxu0 0.0
        %2532 = vmatpush1.msra.mxu0 0.0
        %2533 = vmatprep.subr.mxu0 0.0
        %2534 = vmatpush1.msra.mxu0 0.0
        %2535 = vmatprep.subr.mxu0 0.0
        %2536 = vmatpush1.msra.mxu0 0.0
        %2537 = vmatprep.subr.mxu0 0.0
        %2538 = vmatpush1.msra.mxu0 0.0
        %2539 = vmatprep.subr.mxu0 0.0
        %2540 = vmatpush1.msra.mxu0 0.0
        %2541 = vmatprep.subr.mxu0 0.0
        %2542 = vmatpush1.msra.mxu0 0.0
        %2543 = vmatprep.subr.mxu0 0.0
        %2544 = vmatpush1.msra.mxu0 0.0
        %2545 = vmatprep.subr.mxu0 0.0
        %2546 = vmatpush1.msra.mxu0 0.0
        %2547 = vmatprep.subr.mxu0 0.0
        %2548 = vmatpush1.msra.mxu0 0.0
        %2549 = vmatprep.subr.mxu0 0.0
        %2550 = vmatpush1.msra.mxu0 0.0
        %2551 = vmatprep.mubr.f32.mxu0 0.0
        %2552 = vmatmul.mubr.f32.gmra.mrb[0].mxu0 %v2482
        %v2553 = vpop.f32.mrb[0].mxu0
        %v2554 = vadd.f32 0.0, %v2553
        %v2555 = vpop.f32.mrb[0].mxu0
        %2556 = vdwg.mxu0
        %v2557 = vadd.f32 %v2474, %v2554
        %s2558 = scalar_lea.vmem %s5, 200
        %v2559 = vld [vmem:[%s2558] sm:$0xff]
        %v2560 = vld [vmem:[%s2558 + $0x8] sm:$0xff]
        %v2561 = vld [vmem:[%s2558 + $0x10] sm:$0xff]
        %v2562 = vld [vmem:[%s2558 + $0x18] sm:$0xff]
        %v2563 = vld [vmem:[%s2558 + $0x20] sm:$0xf]
        %v2564 = vrot.slane %v2134, 5
        %v2565 = vsel %vm2148, %v2564, 0
        %v2568 = vsel %vm725, %v2563, 0
        %2570 = vmatprep.subr.mxu0 0.0
        %2571 = vmatpush1.msra.mxu0 %v2559
        %2572 = vmatprep.subr.mxu0 0.0
        %2573 = vmatpush1.msra.mxu0 %v2560
        %2574 = vmatprep.subr.mxu0 0.0
        %2575 = vmatpush1.msra.mxu0 %v2561
        %2576 = vmatprep.subr.mxu0 0.0
        %2577 = vmatpush1.msra.mxu0 %v2562
        %2578 = vmatprep.subr.mxu0 0.0
        %2579 = vmatpush1.msra.mxu0 %v2568
        %2580 = vmatprep.subr.mxu0 0.0
        %2581 = vmatpush1.msra.mxu0 0.0
        %2582 = vmatprep.subr.mxu0 0.0
        %2583 = vmatpush1.msra.mxu0 0.0
        %2584 = vmatprep.subr.mxu0 0.0
        %2585 = vmatpush1.msra.mxu0 0.0
        %2586 = vmatprep.subr.mxu0 0.0
        %2587 = vmatpush1.msra.mxu0 0.0
        %2588 = vmatprep.subr.mxu0 0.0
        %2589 = vmatpush1.msra.mxu0 0.0
        %2590 = vmatprep.subr.mxu0 0.0
        %2591 = vmatpush1.msra.mxu0 0.0
        %2592 = vmatprep.subr.mxu0 0.0
        %2593 = vmatpush1.msra.mxu0 0.0
        %2594 = vmatprep.subr.mxu0 0.0
        %2595 = vmatpush1.msra.mxu0 0.0
        %2596 = vmatprep.subr.mxu0 0.0
        %2597 = vmatpush1.msra.mxu0 0.0
        %2598 = vmatprep.subr.mxu0 0.0
        %2599 = vmatpush1.msra.mxu0 0.0
        %2600 = vmatprep.subr.mxu0 0.0
        %2601 = vmatpush1.msra.mxu0 0.0
        %2602 = vmatprep.subr.mxu0 0.0
        %2603 = vmatpush1.msra.mxu0 0.0
        %2604 = vmatprep.subr.mxu0 0.0
        %2605 = vmatpush1.msra.mxu0 0.0
        %2606 = vmatprep.subr.mxu0 0.0
        %2607 = vmatpush1.msra.mxu0 0.0
        %2608 = vmatprep.subr.mxu0 0.0
        %2609 = vmatpush1.msra.mxu0 0.0
        %2610 = vmatprep.subr.mxu0 0.0
        %2611 = vmatpush1.msra.mxu0 0.0
        %2612 = vmatprep.subr.mxu0 0.0
        %2613 = vmatpush1.msra.mxu0 0.0
        %2614 = vmatprep.subr.mxu0 0.0
        %2615 = vmatpush1.msra.mxu0 0.0
        %2616 = vmatprep.subr.mxu0 0.0
        %2617 = vmatpush1.msra.mxu0 0.0
        %2618 = vmatprep.subr.mxu0 0.0
        %2619 = vmatpush1.msra.mxu0 0.0
        %2620 = vmatprep.subr.mxu0 0.0
        %2621 = vmatpush1.msra.mxu0 0.0
        %2622 = vmatprep.subr.mxu0 0.0
        %2623 = vmatpush1.msra.mxu0 0.0
        %2624 = vmatprep.subr.mxu0 0.0
        %2625 = vmatpush1.msra.mxu0 0.0
        %2626 = vmatprep.subr.mxu0 0.0
        %2627 = vmatpush1.msra.mxu0 0.0
        %2628 = vmatprep.subr.mxu0 0.0
        %2629 = vmatpush1.msra.mxu0 0.0
        %2630 = vmatprep.subr.mxu0 0.0
        %2631 = vmatpush1.msra.mxu0 0.0
        %2632 = vmatprep.subr.mxu0 0.0
        %2633 = vmatpush1.msra.mxu0 0.0
        %2634 = vmatprep.mubr.f32.mxu0 0.0
        %2635 = vmatmul.mubr.f32.gmra.mrb[0].mxu0 %v2565
        %v2636 = vpop.f32.mrb[0].mxu0
        %v2637 = vadd.f32 0.0, %v2636
        %v2638 = vpop.f32.mrb[0].mxu0
        %2639 = vdwg.mxu0
        %v2640 = vadd.f32 %v2557, %v2637
        %s2641 = scalar_lea.vmem %s5, 240
        %v2642 = vld [vmem:[%s2641] sm:$0xff]
        %v2643 = vld [vmem:[%s2641 + $0x8] sm:$0xff]
        %v2644 = vld [vmem:[%s2641 + $0x10] sm:$0xff]
        %v2645 = vld [vmem:[%s2641 + $0x18] sm:$0xff]
        %v2646 = vld [vmem:[%s2641 + $0x20] sm:$0xf]
        %v2647 = vrot.slane %v2134, 6
        %v2648 = vsel %vm2148, %v2647, 0
        %v2651 = vsel %vm725, %v2646, 0
        %2653 = vmatprep.subr.mxu0 0.0
        %2654 = vmatpush1.msra.mxu0 %v2642
        %2655 = vmatprep.subr.mxu0 0.0
        %2656 = vmatpush1.msra.mxu0 %v2643
        %2657 = vmatprep.subr.mxu0 0.0
        %2658 = vmatpush1.msra.mxu0 %v2644
        %2659 = vmatprep.subr.mxu0 0.0
        %2660 = vmatpush1.msra.mxu0 %v2645
        %2661 = vmatprep.subr.mxu0 0.0
        %2662 = vmatpush1.msra.mxu0 %v2651
        %2663 = vmatprep.subr.mxu0 0.0
        %2664 = vmatpush1.msra.mxu0 0.0
        %2665 = vmatprep.subr.mxu0 0.0
        %2666 = vmatpush1.msra.mxu0 0.0
        %2667 = vmatprep.subr.mxu0 0.0
        %2668 = vmatpush1.msra.mxu0 0.0
        %2669 = vmatprep.subr.mxu0 0.0
        %2670 = vmatpush1.msra.mxu0 0.0
        %2671 = vmatprep.subr.mxu0 0.0
        %2672 = vmatpush1.msra.mxu0 0.0
        %2673 = vmatprep.subr.mxu0 0.0
        %2674 = vmatpush1.msra.mxu0 0.0
        %2675 = vmatprep.subr.mxu0 0.0
        %2676 = vmatpush1.msra.mxu0 0.0
        %2677 = vmatprep.subr.mxu0 0.0
        %2678 = vmatpush1.msra.mxu0 0.0
        %2679 = vmatprep.subr.mxu0 0.0
        %2680 = vmatpush1.msra.mxu0 0.0
        %2681 = vmatprep.subr.mxu0 0.0
        %2682 = vmatpush1.msra.mxu0 0.0
        %2683 = vmatprep.subr.mxu0 0.0
        %2684 = vmatpush1.msra.mxu0 0.0
        %2685 = vmatprep.subr.mxu0 0.0
        %2686 = vmatpush1.msra.mxu0 0.0
        %2687 = vmatprep.subr.mxu0 0.0
        %2688 = vmatpush1.msra.mxu0 0.0
        %2689 = vmatprep.subr.mxu0 0.0
        %2690 = vmatpush1.msra.mxu0 0.0
        %2691 = vmatprep.subr.mxu0 0.0
        %2692 = vmatpush1.msra.mxu0 0.0
        %2693 = vmatprep.subr.mxu0 0.0
        %2694 = vmatpush1.msra.mxu0 0.0
        %2695 = vmatprep.subr.mxu0 0.0
        %2696 = vmatpush1.msra.mxu0 0.0
        %2697 = vmatprep.subr.mxu0 0.0
        %2698 = vmatpush1.msra.mxu0 0.0
        %2699 = vmatprep.subr.mxu0 0.0
        %2700 = vmatpush1.msra.mxu0 0.0
        %2701 = vmatprep.subr.mxu0 0.0
        %2702 = vmatpush1.msra.mxu0 0.0
        %2703 = vmatprep.subr.mxu0 0.0
        %2704 = vmatpush1.msra.mxu0 0.0
        %2705 = vmatprep.subr.mxu0 0.0
        %2706 = vmatpush1.msra.mxu0 0.0
        %2707 = vmatprep.subr.mxu0 0.0
        %2708 = vmatpush1.msra.mxu0 0.0
        %2709 = vmatprep.subr.mxu0 0.0
        %2710 = vmatpush1.msra.mxu0 0.0
        %2711 = vmatprep.subr.mxu0 0.0
        %2712 = vmatpush1.msra.mxu0 0.0
        %2713 = vmatprep.subr.mxu0 0.0
        %2714 = vmatpush1.msra.mxu0 0.0
        %2715 = vmatprep.subr.mxu0 0.0
        %2716 = vmatpush1.msra.mxu0 0.0
        %2717 = vmatprep.mubr.f32.mxu0 0.0
        %2718 = vmatmul.mubr.f32.gmra.mrb[0].mxu0 %v2648
        %v2719 = vpop.f32.mrb[0].mxu0
        %v2720 = vadd.f32 0.0, %v2719
        %v2721 = vpop.f32.mrb[0].mxu0
        %2722 = vdwg.mxu0
        %v2723 = vadd.f32 %v2640, %v2720
        %s2724 = scalar_lea.vmem %s5, 280
        %v2725 = vld [vmem:[%s2724] sm:$0xff]
        %v2726 = vld [vmem:[%s2724 + $0x8] sm:$0xff]
        %v2727 = vld [vmem:[%s2724 + $0x10] sm:$0xff]
        %v2728 = vld [vmem:[%s2724 + $0x18] sm:$0xff]
        %v2729 = vld [vmem:[%s2724 + $0x20] sm:$0xf]
        %v2730 = vrot.slane %v2134, 7
        %v2731 = vsel %vm2148, %v2730, 0
        %v2734 = vsel %vm725, %v2729, 0
        %2736 = vmatprep.subr.mxu0 0.0
        %2737 = vmatpush1.msra.mxu0 %v2725
        %2738 = vmatprep.subr.mxu0 0.0
        %2739 = vmatpush1.msra.mxu0 %v2726
        %2740 = vmatprep.subr.mxu0 0.0
        %2741 = vmatpush1.msra.mxu0 %v2727
        %2742 = vmatprep.subr.mxu0 0.0
        %2743 = vmatpush1.msra.mxu0 %v2728
        %2744 = vmatprep.subr.mxu0 0.0
        %2745 = vmatpush1.msra.mxu0 %v2734
        %2746 = vmatprep.subr.mxu0 0.0
        %2747 = vmatpush1.msra.mxu0 0.0
        %2748 = vmatprep.subr.mxu0 0.0
        %2749 = vmatpush1.msra.mxu0 0.0
        %2750 = vmatprep.subr.mxu0 0.0
        %2751 = vmatpush1.msra.mxu0 0.0
        %2752 = vmatprep.subr.mxu0 0.0
        %2753 = vmatpush1.msra.mxu0 0.0
        %2754 = vmatprep.subr.mxu0 0.0
        %2755 = vmatpush1.msra.mxu0 0.0
        %2756 = vmatprep.subr.mxu0 0.0
        %2757 = vmatpush1.msra.mxu0 0.0
        %2758 = vmatprep.subr.mxu0 0.0
        %2759 = vmatpush1.msra.mxu0 0.0
        %2760 = vmatprep.subr.mxu0 0.0
        %2761 = vmatpush1.msra.mxu0 0.0
        %2762 = vmatprep.subr.mxu0 0.0
        %2763 = vmatpush1.msra.mxu0 0.0
        %2764 = vmatprep.subr.mxu0 0.0
        %2765 = vmatpush1.msra.mxu0 0.0
        %2766 = vmatprep.subr.mxu0 0.0
        %2767 = vmatpush1.msra.mxu0 0.0
        %2768 = vmatprep.subr.mxu0 0.0
        %2769 = vmatpush1.msra.mxu0 0.0
        %2770 = vmatprep.subr.mxu0 0.0
        %2771 = vmatpush1.msra.mxu0 0.0
        %2772 = vmatprep.subr.mxu0 0.0
        %2773 = vmatpush1.msra.mxu0 0.0
        %2774 = vmatprep.subr.mxu0 0.0
        %2775 = vmatpush1.msra.mxu0 0.0
        %2776 = vmatprep.subr.mxu0 0.0
        %2777 = vmatpush1.msra.mxu0 0.0
        %2778 = vmatprep.subr.mxu0 0.0
        %2779 = vmatpush1.msra.mxu0 0.0
        %2780 = vmatprep.subr.mxu0 0.0
        %2781 = vmatpush1.msra.mxu0 0.0
        %2782 = vmatprep.subr.mxu0 0.0
        %2783 = vmatpush1.msra.mxu0 0.0
        %2784 = vmatprep.subr.mxu0 0.0
        %2785 = vmatpush1.msra.mxu0 0.0
        %2786 = vmatprep.subr.mxu0 0.0
        %2787 = vmatpush1.msra.mxu0 0.0
        %2788 = vmatprep.subr.mxu0 0.0
        %2789 = vmatpush1.msra.mxu0 0.0
        %2790 = vmatprep.subr.mxu0 0.0
        %2791 = vmatpush1.msra.mxu0 0.0
        %2792 = vmatprep.subr.mxu0 0.0
        %2793 = vmatpush1.msra.mxu0 0.0
        %2794 = vmatprep.subr.mxu0 0.0
        %2795 = vmatpush1.msra.mxu0 0.0
        %2796 = vmatprep.subr.mxu0 0.0
        %2797 = vmatpush1.msra.mxu0 0.0
        %2798 = vmatprep.subr.mxu0 0.0
        %2799 = vmatpush1.msra.mxu0 0.0
        %2800 = vmatprep.mubr.f32.mxu0 0.0
        %2801 = vmatmul.mubr.f32.gmra.mrb[0].mxu0 %v2731
        %v2802 = vpop.f32.mrb[0].mxu0
        %v2803 = vadd.f32 0.0, %v2802
        %v2804 = vpop.f32.mrb[0].mxu0
        %2805 = vdwg.mxu0
        %v2806 = vadd.f32 %v2723, %v2803
        %s2807 = scalar_lea.vmem %s5, 320
        %v2808 = vld [vmem:[%s2807] sm:$0xff]
        %v2809 = vld [vmem:[%s2807 + $0x8] sm:$0xff]
        %v2810 = vld [vmem:[%s2807 + $0x10] sm:$0xff]
        %v2811 = vld [vmem:[%s2807 + $0x18] sm:$0xff]
        %v2812 = vld [vmem:[%s2807 + $0x20] sm:$0xf]
        %v2814 = vsel %vm2148, %v2139, 0
        %v2817 = vsel %vm725, %v2812, 0
        %2819 = vmatprep.subr.mxu0 0.0
        %2820 = vmatpush1.msra.mxu0 %v2808
        %2821 = vmatprep.subr.mxu0 0.0
        %2822 = vmatpush1.msra.mxu0 %v2809
        %2823 = vmatprep.subr.mxu0 0.0
        %2824 = vmatpush1.msra.mxu0 %v2810
        %2825 = vmatprep.subr.mxu0 0.0
        %2826 = vmatpush1.msra.mxu0 %v2811
        %2827 = vmatprep.subr.mxu0 0.0
        %2828 = vmatpush1.msra.mxu0 %v2817
        %2829 = vmatprep.subr.mxu0 0.0
        %2830 = vmatpush1.msra.mxu0 0.0
        %2831 = vmatprep.subr.mxu0 0.0
        %2832 = vmatpush1.msra.mxu0 0.0
        %2833 = vmatprep.subr.mxu0 0.0
        %2834 = vmatpush1.msra.mxu0 0.0
        %2835 = vmatprep.subr.mxu0 0.0
        %2836 = vmatpush1.msra.mxu0 0.0
        %2837 = vmatprep.subr.mxu0 0.0
        %2838 = vmatpush1.msra.mxu0 0.0
        %2839 = vmatprep.subr.mxu0 0.0
        %2840 = vmatpush1.msra.mxu0 0.0
        %2841 = vmatprep.subr.mxu0 0.0
        %2842 = vmatpush1.msra.mxu0 0.0
        %2843 = vmatprep.subr.mxu0 0.0
        %2844 = vmatpush1.msra.mxu0 0.0
        %2845 = vmatprep.subr.mxu0 0.0
        %2846 = vmatpush1.msra.mxu0 0.0
        %2847 = vmatprep.subr.mxu0 0.0
        %2848 = vmatpush1.msra.mxu0 0.0
        %2849 = vmatprep.subr.mxu0 0.0
        %2850 = vmatpush1.msra.mxu0 0.0
        %2851 = vmatprep.subr.mxu0 0.0
        %2852 = vmatpush1.msra.mxu0 0.0
        %2853 = vmatprep.subr.mxu0 0.0
        %2854 = vmatpush1.msra.mxu0 0.0
        %2855 = vmatprep.subr.mxu0 0.0
        %2856 = vmatpush1.msra.mxu0 0.0
        %2857 = vmatprep.subr.mxu0 0.0
        %2858 = vmatpush1.msra.mxu0 0.0
        %2859 = vmatprep.subr.mxu0 0.0
        %2860 = vmatpush1.msra.mxu0 0.0
        %2861 = vmatprep.subr.mxu0 0.0
        %2862 = vmatpush1.msra.mxu0 0.0
        %2863 = vmatprep.subr.mxu0 0.0
        %2864 = vmatpush1.msra.mxu0 0.0
        %2865 = vmatprep.subr.mxu0 0.0
        %2866 = vmatpush1.msra.mxu0 0.0
        %2867 = vmatprep.subr.mxu0 0.0
        %2868 = vmatpush1.msra.mxu0 0.0
        %2869 = vmatprep.subr.mxu0 0.0
        %2870 = vmatpush1.msra.mxu0 0.0
        %2871 = vmatprep.subr.mxu0 0.0
        %2872 = vmatpush1.msra.mxu0 0.0
        %2873 = vmatprep.subr.mxu0 0.0
        %2874 = vmatpush1.msra.mxu0 0.0
        %2875 = vmatprep.subr.mxu0 0.0
        %2876 = vmatpush1.msra.mxu0 0.0
        %2877 = vmatprep.subr.mxu0 0.0
        %2878 = vmatpush1.msra.mxu0 0.0
        %2879 = vmatprep.subr.mxu0 0.0
        %2880 = vmatpush1.msra.mxu0 0.0
        %2881 = vmatprep.subr.mxu0 0.0
        %2882 = vmatpush1.msra.mxu0 0.0
        %2883 = vmatprep.mubr.f32.mxu0 0.0
        %2884 = vmatmul.mubr.f32.gmra.mrb[0].mxu0 %v2814
        %v2885 = vpop.f32.mrb[0].mxu0
        %v2886 = vadd.f32 0.0, %v2885
        %v2887 = vpop.f32.mrb[0].mxu0
        %2888 = vdwg.mxu0
        %v2889 = vadd.f32 %v2806, %v2886
        %s2890 = scalar_lea.vmem %s5, 360
        %v2891 = vld [vmem:[%s2890] sm:$0xff]
        %v2892 = vld [vmem:[%s2890 + $0x8] sm:$0xff]
        %v2893 = vld [vmem:[%s2890 + $0x10] sm:$0xff]
        %v2894 = vld [vmem:[%s2890 + $0x18] sm:$0xff]
        %v2895 = vld [vmem:[%s2890 + $0x20] sm:$0xf]
        %v2896 = vrot.slane %v2139, 1
        %v2897 = vsel %vm2148, %v2896, 0
        %v2900 = vsel %vm725, %v2895, 0
        %2902 = vmatprep.subr.mxu0 0.0
        %2903 = vmatpush1.msra.mxu0 %v2891
        %2904 = vmatprep.subr.mxu0 0.0
        %2905 = vmatpush1.msra.mxu0 %v2892
        %2906 = vmatprep.subr.mxu0 0.0
        %2907 = vmatpush1.msra.mxu0 %v2893
        %2908 = vmatprep.subr.mxu0 0.0
        %2909 = vmatpush1.msra.mxu0 %v2894
        %2910 = vmatprep.subr.mxu0 0.0
        %2911 = vmatpush1.msra.mxu0 %v2900
        %2912 = vmatprep.subr.mxu0 0.0
        %2913 = vmatpush1.msra.mxu0 0.0
        %2914 = vmatprep.subr.mxu0 0.0
        %2915 = vmatpush1.msra.mxu0 0.0
        %2916 = vmatprep.subr.mxu0 0.0
        %2917 = vmatpush1.msra.mxu0 0.0
        %2918 = vmatprep.subr.mxu0 0.0
        %2919 = vmatpush1.msra.mxu0 0.0
        %2920 = vmatprep.subr.mxu0 0.0
        %2921 = vmatpush1.msra.mxu0 0.0
        %2922 = vmatprep.subr.mxu0 0.0
        %2923 = vmatpush1.msra.mxu0 0.0
        %2924 = vmatprep.subr.mxu0 0.0
        %2925 = vmatpush1.msra.mxu0 0.0
        %2926 = vmatprep.subr.mxu0 0.0
        %2927 = vmatpush1.msra.mxu0 0.0
        %2928 = vmatprep.subr.mxu0 0.0
        %2929 = vmatpush1.msra.mxu0 0.0
        %2930 = vmatprep.subr.mxu0 0.0
        %2931 = vmatpush1.msra.mxu0 0.0
        %2932 = vmatprep.subr.mxu0 0.0
        %2933 = vmatpush1.msra.mxu0 0.0
        %2934 = vmatprep.subr.mxu0 0.0
        %2935 = vmatpush1.msra.mxu0 0.0
        %2936 = vmatprep.subr.mxu0 0.0
        %2937 = vmatpush1.msra.mxu0 0.0
        %2938 = vmatprep.subr.mxu0 0.0
        %2939 = vmatpush1.msra.mxu0 0.0
        %2940 = vmatprep.subr.mxu0 0.0
        %2941 = vmatpush1.msra.mxu0 0.0
        %2942 = vmatprep.subr.mxu0 0.0
        %2943 = vmatpush1.msra.mxu0 0.0
        %2944 = vmatprep.subr.mxu0 0.0
        %2945 = vmatpush1.msra.mxu0 0.0
        %2946 = vmatprep.subr.mxu0 0.0
        %2947 = vmatpush1.msra.mxu0 0.0
        %2948 = vmatprep.subr.mxu0 0.0
        %2949 = vmatpush1.msra.mxu0 0.0
        %2950 = vmatprep.subr.mxu0 0.0
        %2951 = vmatpush1.msra.mxu0 0.0
        %2952 = vmatprep.subr.mxu0 0.0
        %2953 = vmatpush1.msra.mxu0 0.0
        %2954 = vmatprep.subr.mxu0 0.0
        %2955 = vmatpush1.msra.mxu0 0.0
        %2956 = vmatprep.subr.mxu0 0.0
        %2957 = vmatpush1.msra.mxu0 0.0
        %2958 = vmatprep.subr.mxu0 0.0
        %2959 = vmatpush1.msra.mxu0 0.0
        %2960 = vmatprep.subr.mxu0 0.0
        %2961 = vmatpush1.msra.mxu0 0.0
        %2962 = vmatprep.subr.mxu0 0.0
        %2963 = vmatpush1.msra.mxu0 0.0
        %2964 = vmatprep.subr.mxu0 0.0
        %2965 = vmatpush1.msra.mxu0 0.0
        %2966 = vmatprep.mubr.f32.mxu0 0.0
        %2967 = vmatmul.mubr.f32.gmra.mrb[0].mxu0 %v2897
        %v2968 = vpop.f32.mrb[0].mxu0
        %v2969 = vadd.f32 0.0, %v2968
        %v2970 = vpop.f32.mrb[0].mxu0
        %2971 = vdwg.mxu0
        %v2972 = vadd.f32 %v2889, %v2969
        %s2973 = scalar_lea.vmem %s5, 400
        %v2974 = vld [vmem:[%s2973] sm:$0xff]
        %v2975 = vld [vmem:[%s2973 + $0x8] sm:$0xff]
        %v2976 = vld [vmem:[%s2973 + $0x10] sm:$0xff]
        %v2977 = vld [vmem:[%s2973 + $0x18] sm:$0xff]
        %v2978 = vld [vmem:[%s2973 + $0x20] sm:$0xf]
        %v2979 = vrot.slane %v2139, 2
        %v2980 = vsel %vm2148, %v2979, 0
        %v2983 = vsel %vm725, %v2978, 0
        %2985 = vmatprep.subr.mxu0 0.0
        %2986 = vmatpush1.msra.mxu0 %v2974
        %2987 = vmatprep.subr.mxu0 0.0
        %2988 = vmatpush1.msra.mxu0 %v2975
        %2989 = vmatprep.subr.mxu0 0.0
        %2990 = vmatpush1.msra.mxu0 %v2976
        %2991 = vmatprep.subr.mxu0 0.0
        %2992 = vmatpush1.msra.mxu0 %v2977
        %2993 = vmatprep.subr.mxu0 0.0
        %2994 = vmatpush1.msra.mxu0 %v2983
        %2995 = vmatprep.subr.mxu0 0.0
        %2996 = vmatpush1.msra.mxu0 0.0
        %2997 = vmatprep.subr.mxu0 0.0
        %2998 = vmatpush1.msra.mxu0 0.0
        %2999 = vmatprep.subr.mxu0 0.0
        %3000 = vmatpush1.msra.mxu0 0.0
        %3001 = vmatprep.subr.mxu0 0.0
        %3002 = vmatpush1.msra.mxu0 0.0
        %3003 = vmatprep.subr.mxu0 0.0
        %3004 = vmatpush1.msra.mxu0 0.0
        %3005 = vmatprep.subr.mxu0 0.0
        %3006 = vmatpush1.msra.mxu0 0.0
        %3007 = vmatprep.subr.mxu0 0.0
        %3008 = vmatpush1.msra.mxu0 0.0
        %3009 = vmatprep.subr.mxu0 0.0
        %3010 = vmatpush1.msra.mxu0 0.0
        %3011 = vmatprep.subr.mxu0 0.0
        %3012 = vmatpush1.msra.mxu0 0.0
        %3013 = vmatprep.subr.mxu0 0.0
        %3014 = vmatpush1.msra.mxu0 0.0
        %3015 = vmatprep.subr.mxu0 0.0
        %3016 = vmatpush1.msra.mxu0 0.0
        %3017 = vmatprep.subr.mxu0 0.0
        %3018 = vmatpush1.msra.mxu0 0.0
        %3019 = vmatprep.subr.mxu0 0.0
        %3020 = vmatpush1.msra.mxu0 0.0
        %3021 = vmatprep.subr.mxu0 0.0
        %3022 = vmatpush1.msra.mxu0 0.0
        %3023 = vmatprep.subr.mxu0 0.0
        %3024 = vmatpush1.msra.mxu0 0.0
        %3025 = vmatprep.subr.mxu0 0.0
        %3026 = vmatpush1.msra.mxu0 0.0
        %3027 = vmatprep.subr.mxu0 0.0
        %3028 = vmatpush1.msra.mxu0 0.0
        %3029 = vmatprep.subr.mxu0 0.0
        %3030 = vmatpush1.msra.mxu0 0.0
        %3031 = vmatprep.subr.mxu0 0.0
        %3032 = vmatpush1.msra.mxu0 0.0
        %3033 = vmatprep.subr.mxu0 0.0
        %3034 = vmatpush1.msra.mxu0 0.0
        %3035 = vmatprep.subr.mxu0 0.0
        %3036 = vmatpush1.msra.mxu0 0.0
        %3037 = vmatprep.subr.mxu0 0.0
        %3038 = vmatpush1.msra.mxu0 0.0
        %3039 = vmatprep.subr.mxu0 0.0
        %3040 = vmatpush1.msra.mxu0 0.0
        %3041 = vmatprep.subr.mxu0 0.0
        %3042 = vmatpush1.msra.mxu0 0.0
        %3043 = vmatprep.subr.mxu0 0.0
        %3044 = vmatpush1.msra.mxu0 0.0
        %3045 = vmatprep.subr.mxu0 0.0
        %3046 = vmatpush1.msra.mxu0 0.0
        %3047 = vmatprep.subr.mxu0 0.0
        %3048 = vmatpush1.msra.mxu0 0.0
        %3049 = vmatprep.mubr.f32.mxu0 0.0
        %3050 = vmatmul.mubr.f32.gmra.mrb[0].mxu0 %v2980
        %v3051 = vpop.f32.mrb[0].mxu0
        %v3052 = vadd.f32 0.0, %v3051
        %v3053 = vpop.f32.mrb[0].mxu0
        %3054 = vdwg.mxu0
        %v3055 = vadd.f32 %v2972, %v3052
        %s3056 = scalar_lea.vmem %s5, 440
        %v3057 = vld [vmem:[%s3056] sm:$0xff]
        %v3058 = vld [vmem:[%s3056 + $0x8] sm:$0xff]
        %v3059 = vld [vmem:[%s3056 + $0x10] sm:$0xff]
        %v3060 = vld [vmem:[%s3056 + $0x18] sm:$0xff]
        %v3061 = vld [vmem:[%s3056 + $0x20] sm:$0xf]
        %v3062 = vrot.slane %v2139, 3
        %v3063 = vsel %vm2148, %v3062, 0
        %v3066 = vsel %vm725, %v3061, 0
        %3068 = vmatprep.subr.mxu0 0.0
        %3069 = vmatpush1.msra.mxu0 %v3057
        %3070 = vmatprep.subr.mxu0 0.0
        %3071 = vmatpush1.msra.mxu0 %v3058
        %3072 = vmatprep.subr.mxu0 0.0
        %3073 = vmatpush1.msra.mxu0 %v3059
        %3074 = vmatprep.subr.mxu0 0.0
        %3075 = vmatpush1.msra.mxu0 %v3060
        %3076 = vmatprep.subr.mxu0 0.0
        %3077 = vmatpush1.msra.mxu0 %v3066
        %3078 = vmatprep.subr.mxu0 0.0
        %3079 = vmatpush1.msra.mxu0 0.0
        %3080 = vmatprep.subr.mxu0 0.0
        %3081 = vmatpush1.msra.mxu0 0.0
        %3082 = vmatprep.subr.mxu0 0.0
        %3083 = vmatpush1.msra.mxu0 0.0
        %3084 = vmatprep.subr.mxu0 0.0
        %3085 = vmatpush1.msra.mxu0 0.0
        %3086 = vmatprep.subr.mxu0 0.0
        %3087 = vmatpush1.msra.mxu0 0.0
        %3088 = vmatprep.subr.mxu0 0.0
        %3089 = vmatpush1.msra.mxu0 0.0
        %3090 = vmatprep.subr.mxu0 0.0
        %3091 = vmatpush1.msra.mxu0 0.0
        %3092 = vmatprep.subr.mxu0 0.0
        %3093 = vmatpush1.msra.mxu0 0.0
        %3094 = vmatprep.subr.mxu0 0.0
        %3095 = vmatpush1.msra.mxu0 0.0
        %3096 = vmatprep.subr.mxu0 0.0
        %3097 = vmatpush1.msra.mxu0 0.0
        %3098 = vmatprep.subr.mxu0 0.0
        %3099 = vmatpush1.msra.mxu0 0.0
        %3100 = vmatprep.subr.mxu0 0.0
        %3101 = vmatpush1.msra.mxu0 0.0
        %3102 = vmatprep.subr.mxu0 0.0
        %3103 = vmatpush1.msra.mxu0 0.0
        %3104 = vmatprep.subr.mxu0 0.0
        %3105 = vmatpush1.msra.mxu0 0.0
        %3106 = vmatprep.subr.mxu0 0.0
        %3107 = vmatpush1.msra.mxu0 0.0
        %3108 = vmatprep.subr.mxu0 0.0
        %3109 = vmatpush1.msra.mxu0 0.0
        %3110 = vmatprep.subr.mxu0 0.0
        %3111 = vmatpush1.msra.mxu0 0.0
        %3112 = vmatprep.subr.mxu0 0.0
        %3113 = vmatpush1.msra.mxu0 0.0
        %3114 = vmatprep.subr.mxu0 0.0
        %3115 = vmatpush1.msra.mxu0 0.0
        %3116 = vmatprep.subr.mxu0 0.0
        %3117 = vmatpush1.msra.mxu0 0.0
        %3118 = vmatprep.subr.mxu0 0.0
        %3119 = vmatpush1.msra.mxu0 0.0
        %3120 = vmatprep.subr.mxu0 0.0
        %3121 = vmatpush1.msra.mxu0 0.0
        %3122 = vmatprep.subr.mxu0 0.0
        %3123 = vmatpush1.msra.mxu0 0.0
        %3124 = vmatprep.subr.mxu0 0.0
        %3125 = vmatpush1.msra.mxu0 0.0
        %3126 = vmatprep.subr.mxu0 0.0
        %3127 = vmatpush1.msra.mxu0 0.0
        %3128 = vmatprep.subr.mxu0 0.0
        %3129 = vmatpush1.msra.mxu0 0.0
        %3130 = vmatprep.subr.mxu0 0.0
        %3131 = vmatpush1.msra.mxu0 0.0
        %3132 = vmatprep.mubr.f32.mxu0 0.0
        %3133 = vmatmul.mubr.f32.gmra.mrb[0].mxu0 %v3063
        %v3134 = vpop.f32.mrb[0].mxu0
        %v3135 = vadd.f32 0.0, %v3134
        %v3136 = vpop.f32.mrb[0].mxu0
        %3137 = vdwg.mxu0
        %v3138 = vadd.f32 %v3055, %v3135
        %s3139 = scalar_lea.vmem %s5, 480
        %v3140 = vld [vmem:[%s3139] sm:$0xff]
        %v3141 = vld [vmem:[%s3139 + $0x8] sm:$0xff]
        %v3142 = vld [vmem:[%s3139 + $0x10] sm:$0xff]
        %v3143 = vld [vmem:[%s3139 + $0x18] sm:$0xff]
        %v3144 = vld [vmem:[%s3139 + $0x20] sm:$0xf]
        %v3145 = vrot.slane %v2139, 4
        %v3146 = vsel %vm2148, %v3145, 0
        %v3149 = vsel %vm725, %v3144, 0
        %3151 = vmatprep.subr.mxu0 0.0
        %3152 = vmatpush1.msra.mxu0 %v3140
        %3153 = vmatprep.subr.mxu0 0.0
        %3154 = vmatpush1.msra.mxu0 %v3141
        %3155 = vmatprep.subr.mxu0 0.0
        %3156 = vmatpush1.msra.mxu0 %v3142
        %3157 = vmatprep.subr.mxu0 0.0
        %3158 = vmatpush1.msra.mxu0 %v3143
        %3159 = vmatprep.subr.mxu0 0.0
        %3160 = vmatpush1.msra.mxu0 %v3149
        %3161 = vmatprep.subr.mxu0 0.0
        %3162 = vmatpush1.msra.mxu0 0.0
        %3163 = vmatprep.subr.mxu0 0.0
        %3164 = vmatpush1.msra.mxu0 0.0
        %3165 = vmatprep.subr.mxu0 0.0
        %3166 = vmatpush1.msra.mxu0 0.0
        %3167 = vmatprep.subr.mxu0 0.0
        %3168 = vmatpush1.msra.mxu0 0.0
        %3169 = vmatprep.subr.mxu0 0.0
        %3170 = vmatpush1.msra.mxu0 0.0
        %3171 = vmatprep.subr.mxu0 0.0
        %3172 = vmatpush1.msra.mxu0 0.0
        %3173 = vmatprep.subr.mxu0 0.0
        %3174 = vmatpush1.msra.mxu0 0.0
        %3175 = vmatprep.subr.mxu0 0.0
        %3176 = vmatpush1.msra.mxu0 0.0
        %3177 = vmatprep.subr.mxu0 0.0
        %3178 = vmatpush1.msra.mxu0 0.0
        %3179 = vmatprep.subr.mxu0 0.0
        %3180 = vmatpush1.msra.mxu0 0.0
        %3181 = vmatprep.subr.mxu0 0.0
        %3182 = vmatpush1.msra.mxu0 0.0
        %3183 = vmatprep.subr.mxu0 0.0
        %3184 = vmatpush1.msra.mxu0 0.0
        %3185 = vmatprep.subr.mxu0 0.0
        %3186 = vmatpush1.msra.mxu0 0.0
        %3187 = vmatprep.subr.mxu0 0.0
        %3188 = vmatpush1.msra.mxu0 0.0
        %3189 = vmatprep.subr.mxu0 0.0
        %3190 = vmatpush1.msra.mxu0 0.0
        %3191 = vmatprep.subr.mxu0 0.0
        %3192 = vmatpush1.msra.mxu0 0.0
        %3193 = vmatprep.subr.mxu0 0.0
        %3194 = vmatpush1.msra.mxu0 0.0
        %3195 = vmatprep.subr.mxu0 0.0
        %3196 = vmatpush1.msra.mxu0 0.0
        %3197 = vmatprep.subr.mxu0 0.0
        %3198 = vmatpush1.msra.mxu0 0.0
        %3199 = vmatprep.subr.mxu0 0.0
        %3200 = vmatpush1.msra.mxu0 0.0
        %3201 = vmatprep.subr.mxu0 0.0
        %3202 = vmatpush1.msra.mxu0 0.0
        %3203 = vmatprep.subr.mxu0 0.0
        %3204 = vmatpush1.msra.mxu0 0.0
        %3205 = vmatprep.subr.mxu0 0.0
        %3206 = vmatpush1.msra.mxu0 0.0
        %3207 = vmatprep.subr.mxu0 0.0
        %3208 = vmatpush1.msra.mxu0 0.0
        %3209 = vmatprep.subr.mxu0 0.0
        %3210 = vmatpush1.msra.mxu0 0.0
        %3211 = vmatprep.subr.mxu0 0.0
        %3212 = vmatpush1.msra.mxu0 0.0
        %3213 = vmatprep.subr.mxu0 0.0
        %3214 = vmatpush1.msra.mxu0 0.0
        %3215 = vmatprep.mubr.f32.mxu0 0.0
        %3216 = vmatmul.mubr.f32.gmra.mrb[0].mxu0 %v3146
        %v3217 = vpop.f32.mrb[0].mxu0
        %v3218 = vadd.f32 0.0, %v3217
        %v3219 = vpop.f32.mrb[0].mxu0
        %3220 = vdwg.mxu0
        %v3221 = vadd.f32 %v3138, %v3218
        %s3222 = scalar_lea.vmem %s5, 520
        %v3223 = vld [vmem:[%s3222] sm:$0xff]
        %v3224 = vld [vmem:[%s3222 + $0x8] sm:$0xff]
        %v3225 = vld [vmem:[%s3222 + $0x10] sm:$0xff]
        %v3226 = vld [vmem:[%s3222 + $0x18] sm:$0xff]
        %v3227 = vld [vmem:[%s3222 + $0x20] sm:$0xf]
        %v3228 = vrot.slane %v2139, 5
        %v3229 = vsel %vm2148, %v3228, 0
        %v3232 = vsel %vm725, %v3227, 0
        %3234 = vmatprep.subr.mxu0 0.0
        %3235 = vmatpush1.msra.mxu0 %v3223
        %3236 = vmatprep.subr.mxu0 0.0
        %3237 = vmatpush1.msra.mxu0 %v3224
        %3238 = vmatprep.subr.mxu0 0.0
        %3239 = vmatpush1.msra.mxu0 %v3225
        %3240 = vmatprep.subr.mxu0 0.0
        %3241 = vmatpush1.msra.mxu0 %v3226
        %3242 = vmatprep.subr.mxu0 0.0
        %3243 = vmatpush1.msra.mxu0 %v3232
        %3244 = vmatprep.subr.mxu0 0.0
        %3245 = vmatpush1.msra.mxu0 0.0
        %3246 = vmatprep.subr.mxu0 0.0
        %3247 = vmatpush1.msra.mxu0 0.0
        %3248 = vmatprep.subr.mxu0 0.0
        %3249 = vmatpush1.msra.mxu0 0.0
        %3250 = vmatprep.subr.mxu0 0.0
        %3251 = vmatpush1.msra.mxu0 0.0
        %3252 = vmatprep.subr.mxu0 0.0
        %3253 = vmatpush1.msra.mxu0 0.0
        %3254 = vmatprep.subr.mxu0 0.0
        %3255 = vmatpush1.msra.mxu0 0.0
        %3256 = vmatprep.subr.mxu0 0.0
        %3257 = vmatpush1.msra.mxu0 0.0
        %3258 = vmatprep.subr.mxu0 0.0
        %3259 = vmatpush1.msra.mxu0 0.0
        %3260 = vmatprep.subr.mxu0 0.0
        %3261 = vmatpush1.msra.mxu0 0.0
        %3262 = vmatprep.subr.mxu0 0.0
        %3263 = vmatpush1.msra.mxu0 0.0
        %3264 = vmatprep.subr.mxu0 0.0
        %3265 = vmatpush1.msra.mxu0 0.0
        %3266 = vmatprep.subr.mxu0 0.0
        %3267 = vmatpush1.msra.mxu0 0.0
        %3268 = vmatprep.subr.mxu0 0.0
        %3269 = vmatpush1.msra.mxu0 0.0
        %3270 = vmatprep.subr.mxu0 0.0
        %3271 = vmatpush1.msra.mxu0 0.0
        %3272 = vmatprep.subr.mxu0 0.0
        %3273 = vmatpush1.msra.mxu0 0.0
        %3274 = vmatprep.subr.mxu0 0.0
        %3275 = vmatpush1.msra.mxu0 0.0
        %3276 = vmatprep.subr.mxu0 0.0
        %3277 = vmatpush1.msra.mxu0 0.0
        %3278 = vmatprep.subr.mxu0 0.0
        %3279 = vmatpush1.msra.mxu0 0.0
        %3280 = vmatprep.subr.mxu0 0.0
        %3281 = vmatpush1.msra.mxu0 0.0
        %3282 = vmatprep.subr.mxu0 0.0
        %3283 = vmatpush1.msra.mxu0 0.0
        %3284 = vmatprep.subr.mxu0 0.0
        %3285 = vmatpush1.msra.mxu0 0.0
        %3286 = vmatprep.subr.mxu0 0.0
        %3287 = vmatpush1.msra.mxu0 0.0
        %3288 = vmatprep.subr.mxu0 0.0
        %3289 = vmatpush1.msra.mxu0 0.0
        %3290 = vmatprep.subr.mxu0 0.0
        %3291 = vmatpush1.msra.mxu0 0.0
        %3292 = vmatprep.subr.mxu0 0.0
        %3293 = vmatpush1.msra.mxu0 0.0
        %3294 = vmatprep.subr.mxu0 0.0
        %3295 = vmatpush1.msra.mxu0 0.0
        %3296 = vmatprep.subr.mxu0 0.0
        %3297 = vmatpush1.msra.mxu0 0.0
        %3298 = vmatprep.mubr.f32.mxu0 0.0
        %3299 = vmatmul.mubr.f32.gmra.mrb[0].mxu0 %v3229
        %v3300 = vpop.f32.mrb[0].mxu0
        %v3301 = vadd.f32 0.0, %v3300
        %v3302 = vpop.f32.mrb[0].mxu0
        %3303 = vdwg.mxu0
        %v3304 = vadd.f32 %v3221, %v3301
        %s3305 = scalar_lea.vmem %s5, 560
        %v3306 = vld [vmem:[%s3305] sm:$0xff]
        %v3307 = vld [vmem:[%s3305 + $0x8] sm:$0xff]
        %v3308 = vld [vmem:[%s3305 + $0x10] sm:$0xff]
        %v3309 = vld [vmem:[%s3305 + $0x18] sm:$0xff]
        %v3310 = vld [vmem:[%s3305 + $0x20] sm:$0xf]
        %v3311 = vrot.slane %v2139, 6
        %v3312 = vsel %vm2148, %v3311, 0
        %v3315 = vsel %vm725, %v3310, 0
        %3317 = vmatprep.subr.mxu0 0.0
        %3318 = vmatpush1.msra.mxu0 %v3306
        %3319 = vmatprep.subr.mxu0 0.0
        %3320 = vmatpush1.msra.mxu0 %v3307
        %3321 = vmatprep.subr.mxu0 0.0
        %3322 = vmatpush1.msra.mxu0 %v3308
        %3323 = vmatprep.subr.mxu0 0.0
        %3324 = vmatpush1.msra.mxu0 %v3309
        %3325 = vmatprep.subr.mxu0 0.0
        %3326 = vmatpush1.msra.mxu0 %v3315
        %3327 = vmatprep.subr.mxu0 0.0
        %3328 = vmatpush1.msra.mxu0 0.0
        %3329 = vmatprep.subr.mxu0 0.0
        %3330 = vmatpush1.msra.mxu0 0.0
        %3331 = vmatprep.subr.mxu0 0.0
        %3332 = vmatpush1.msra.mxu0 0.0
        %3333 = vmatprep.subr.mxu0 0.0
        %3334 = vmatpush1.msra.mxu0 0.0
        %3335 = vmatprep.subr.mxu0 0.0
        %3336 = vmatpush1.msra.mxu0 0.0
        %3337 = vmatprep.subr.mxu0 0.0
        %3338 = vmatpush1.msra.mxu0 0.0
        %3339 = vmatprep.subr.mxu0 0.0
        %3340 = vmatpush1.msra.mxu0 0.0
        %3341 = vmatprep.subr.mxu0 0.0
        %3342 = vmatpush1.msra.mxu0 0.0
        %3343 = vmatprep.subr.mxu0 0.0
        %3344 = vmatpush1.msra.mxu0 0.0
        %3345 = vmatprep.subr.mxu0 0.0
        %3346 = vmatpush1.msra.mxu0 0.0
        %3347 = vmatprep.subr.mxu0 0.0
        %3348 = vmatpush1.msra.mxu0 0.0
        %3349 = vmatprep.subr.mxu0 0.0
        %3350 = vmatpush1.msra.mxu0 0.0
        %3351 = vmatprep.subr.mxu0 0.0
        %3352 = vmatpush1.msra.mxu0 0.0
        %3353 = vmatprep.subr.mxu0 0.0
        %3354 = vmatpush1.msra.mxu0 0.0
        %3355 = vmatprep.subr.mxu0 0.0
        %3356 = vmatpush1.msra.mxu0 0.0
        %3357 = vmatprep.subr.mxu0 0.0
        %3358 = vmatpush1.msra.mxu0 0.0
        %3359 = vmatprep.subr.mxu0 0.0
        %3360 = vmatpush1.msra.mxu0 0.0
        %3361 = vmatprep.subr.mxu0 0.0
        %3362 = vmatpush1.msra.mxu0 0.0
        %3363 = vmatprep.subr.mxu0 0.0
        %3364 = vmatpush1.msra.mxu0 0.0
        %3365 = vmatprep.subr.mxu0 0.0
        %3366 = vmatpush1.msra.mxu0 0.0
        %3367 = vmatprep.subr.mxu0 0.0
        %3368 = vmatpush1.msra.mxu0 0.0
        %3369 = vmatprep.subr.mxu0 0.0
        %3370 = vmatpush1.msra.mxu0 0.0
        %3371 = vmatprep.subr.mxu0 0.0
        %3372 = vmatpush1.msra.mxu0 0.0
        %3373 = vmatprep.subr.mxu0 0.0
        %3374 = vmatpush1.msra.mxu0 0.0
        %3375 = vmatprep.subr.mxu0 0.0
        %3376 = vmatpush1.msra.mxu0 0.0
        %3377 = vmatprep.subr.mxu0 0.0
        %3378 = vmatpush1.msra.mxu0 0.0
        %3379 = vmatprep.subr.mxu0 0.0
        %3380 = vmatpush1.msra.mxu0 0.0
        %3381 = vmatprep.mubr.f32.mxu0 0.0
        %3382 = vmatmul.mubr.f32.gmra.mrb[0].mxu0 %v3312
        %v3383 = vpop.f32.mrb[0].mxu0
        %v3384 = vadd.f32 0.0, %v3383
        %v3385 = vpop.f32.mrb[0].mxu0
        %3386 = vdwg.mxu0
        %v3387 = vadd.f32 %v3304, %v3384
        %s3388 = scalar_lea.vmem %s5, 600
        %v3389 = vld [vmem:[%s3388] sm:$0xff]
        %v3390 = vld [vmem:[%s3388 + $0x8] sm:$0xff]
        %v3391 = vld [vmem:[%s3388 + $0x10] sm:$0xff]
        %v3392 = vld [vmem:[%s3388 + $0x18] sm:$0xff]
        %v3393 = vld [vmem:[%s3388 + $0x20] sm:$0xf]
        %v3394 = vrot.slane %v2139, 7
        %v3395 = vsel %vm2148, %v3394, 0
        %v3398 = vsel %vm725, %v3393, 0
        %3400 = vmatprep.subr.mxu0 0.0
        %3401 = vmatpush1.msra.mxu0 %v3389
        %3402 = vmatprep.subr.mxu0 0.0
        %3403 = vmatpush1.msra.mxu0 %v3390
        %3404 = vmatprep.subr.mxu0 0.0
        %3405 = vmatpush1.msra.mxu0 %v3391
        %3406 = vmatprep.subr.mxu0 0.0
        %3407 = vmatpush1.msra.mxu0 %v3392
        %3408 = vmatprep.subr.mxu0 0.0
        %3409 = vmatpush1.msra.mxu0 %v3398
        %3410 = vmatprep.subr.mxu0 0.0
        %3411 = vmatpush1.msra.mxu0 0.0
        %3412 = vmatprep.subr.mxu0 0.0
        %3413 = vmatpush1.msra.mxu0 0.0
        %3414 = vmatprep.subr.mxu0 0.0
        %3415 = vmatpush1.msra.mxu0 0.0
        %3416 = vmatprep.subr.mxu0 0.0
        %3417 = vmatpush1.msra.mxu0 0.0
        %3418 = vmatprep.subr.mxu0 0.0
        %3419 = vmatpush1.msra.mxu0 0.0
        %3420 = vmatprep.subr.mxu0 0.0
        %3421 = vmatpush1.msra.mxu0 0.0
        %3422 = vmatprep.subr.mxu0 0.0
        %3423 = vmatpush1.msra.mxu0 0.0
        %3424 = vmatprep.subr.mxu0 0.0
        %3425 = vmatpush1.msra.mxu0 0.0
        %3426 = vmatprep.subr.mxu0 0.0
        %3427 = vmatpush1.msra.mxu0 0.0
        %3428 = vmatprep.subr.mxu0 0.0
        %3429 = vmatpush1.msra.mxu0 0.0
        %3430 = vmatprep.subr.mxu0 0.0
        %3431 = vmatpush1.msra.mxu0 0.0
        %3432 = vmatprep.subr.mxu0 0.0
        %3433 = vmatpush1.msra.mxu0 0.0
        %3434 = vmatprep.subr.mxu0 0.0
        %3435 = vmatpush1.msra.mxu0 0.0
        %3436 = vmatprep.subr.mxu0 0.0
        %3437 = vmatpush1.msra.mxu0 0.0
        %3438 = vmatprep.subr.mxu0 0.0
        %3439 = vmatpush1.msra.mxu0 0.0
        %3440 = vmatprep.subr.mxu0 0.0
        %3441 = vmatpush1.msra.mxu0 0.0
        %3442 = vmatprep.subr.mxu0 0.0
        %3443 = vmatpush1.msra.mxu0 0.0
        %3444 = vmatprep.subr.mxu0 0.0
        %3445 = vmatpush1.msra.mxu0 0.0
        %3446 = vmatprep.subr.mxu0 0.0
        %3447 = vmatpush1.msra.mxu0 0.0
        %3448 = vmatprep.subr.mxu0 0.0
        %3449 = vmatpush1.msra.mxu0 0.0
        %3450 = vmatprep.subr.mxu0 0.0
        %3451 = vmatpush1.msra.mxu0 0.0
        %3452 = vmatprep.subr.mxu0 0.0
        %3453 = vmatpush1.msra.mxu0 0.0
        %3454 = vmatprep.subr.mxu0 0.0
        %3455 = vmatpush1.msra.mxu0 0.0
        %3456 = vmatprep.subr.mxu0 0.0
        %3457 = vmatpush1.msra.mxu0 0.0
        %3458 = vmatprep.subr.mxu0 0.0
        %3459 = vmatpush1.msra.mxu0 0.0
        %3460 = vmatprep.subr.mxu0 0.0
        %3461 = vmatpush1.msra.mxu0 0.0
        %3462 = vmatprep.subr.mxu0 0.0
        %3463 = vmatpush1.msra.mxu0 0.0
        %3464 = vmatprep.mubr.f32.mxu0 0.0
        %3465 = vmatmul.mubr.f32.gmra.mrb[0].mxu0 %v3395
        %v3466 = vpop.f32.mrb[0].mxu0
        %v3467 = vadd.f32 0.0, %v3466
        %v3468 = vpop.f32.mrb[0].mxu0
        %3469 = vdwg.mxu0
        %v3470 = vadd.f32 %v3387, %v3467
        %v3471 = vmax.f32 %v3470, 0.0
        %v3472 = vld [vmem:[%s7] sm:$0xff]
        %v3473 = vld [vmem:[%s7 + $0x8] sm:$0xff]
        %v3474 = vld [vmem:[%s7 + $0x10] sm:$0xff]
        %v3475 = vld [vmem:[%s7 + $0x18] sm:$0xff]
        %v3476 = vld [vmem:[%s7 + $0x20] sm:$0xff]
        %v3477 = vld [vmem:[%s7 + $0x28] sm:$0xff]
        %v3478 = vld [vmem:[%s7 + $0x30] sm:$0xff]
        %v3479 = vld [vmem:[%s7 + $0x38] sm:$0xff]
        %v3480 = vld [vmem:[%s7 + $0x40] sm:$0xff]
        %v3481 = vld [vmem:[%s7 + $0x48] sm:$0xff]
        %v3482 = vld [vmem:[%s7 + $0x50] sm:$0xff]
        %v3483 = vld [vmem:[%s7 + $0x58] sm:$0xff]
        %v3484 = vld [vmem:[%s7 + $0x60] sm:$0xff]
        %v3485 = vld [vmem:[%s7 + $0x68] sm:$0xff]
        %v3486 = vld [vmem:[%s7 + $0x70] sm:$0xff]
        %v3487 = vld [vmem:[%s8] sm:$0x1]
        %vm3488 = vcmask 982016
        %v3490 = vsel %vm3488, %v3471, 0
        %3492 = vmatprep.subr.mxu0 0.0
        %3493 = vmatpush1.msra.mxu0 %v3472
        %3494 = vmatprep.subr.mxu0 0.0
        %3495 = vmatpush1.msra.mxu0 %v3473
        %3496 = vmatprep.subr.mxu0 0.0
        %3497 = vmatpush1.msra.mxu0 %v3474
        %3498 = vmatprep.subr.mxu0 0.0
        %3499 = vmatpush1.msra.mxu0 %v3475
        %3500 = vmatprep.subr.mxu0 0.0
        %3501 = vmatpush1.msra.mxu0 %v3476
        %3502 = vmatprep.subr.mxu0 0.0
        %3503 = vmatpush1.msra.mxu0 %v3477
        %3504 = vmatprep.subr.mxu0 0.0
        %3505 = vmatpush1.msra.mxu0 %v3478
        %3506 = vmatprep.subr.mxu0 0.0
        %3507 = vmatpush1.msra.mxu0 %v3479
        %3508 = vmatprep.subr.mxu0 0.0
        %3509 = vmatpush1.msra.mxu0 %v3480
        %3510 = vmatprep.subr.mxu0 0.0
        %3511 = vmatpush1.msra.mxu0 %v3481
        %3512 = vmatprep.subr.mxu0 0.0
        %3513 = vmatpush1.msra.mxu0 %v3482
        %3514 = vmatprep.subr.mxu0 0.0
        %3515 = vmatpush1.msra.mxu0 %v3483
        %3516 = vmatprep.subr.mxu0 0.0
        %3517 = vmatpush1.msra.mxu0 %v3484
        %3518 = vmatprep.subr.mxu0 0.0
        %3519 = vmatpush1.msra.mxu0 %v3485
        %3520 = vmatprep.subr.mxu0 0.0
        %3521 = vmatpush1.msra.mxu0 %v3486
        %3522 = vmatprep.subr.mxu0 0.0
        %3523 = vmatpush1.msra.mxu0 0.0
        %3524 = vmatprep.subr.mxu0 0.0
        %3525 = vmatpush1.msra.mxu0 0.0
        %3526 = vmatprep.subr.mxu0 0.0
        %3527 = vmatpush1.msra.mxu0 0.0
        %3528 = vmatprep.subr.mxu0 0.0
        %3529 = vmatpush1.msra.mxu0 0.0
        %3530 = vmatprep.subr.mxu0 0.0
        %3531 = vmatpush1.msra.mxu0 0.0
        %3532 = vmatprep.subr.mxu0 0.0
        %3533 = vmatpush1.msra.mxu0 0.0
        %3534 = vmatprep.subr.mxu0 0.0
        %3535 = vmatpush1.msra.mxu0 0.0
        %3536 = vmatprep.subr.mxu0 0.0
        %3537 = vmatpush1.msra.mxu0 0.0
        %3538 = vmatprep.subr.mxu0 0.0
        %3539 = vmatpush1.msra.mxu0 0.0
        %3540 = vmatprep.subr.mxu0 0.0
        %3541 = vmatpush1.msra.mxu0 0.0
        %3542 = vmatprep.subr.mxu0 0.0
        %3543 = vmatpush1.msra.mxu0 0.0
        %3544 = vmatprep.subr.mxu0 0.0
        %3545 = vmatpush1.msra.mxu0 0.0
        %3546 = vmatprep.subr.mxu0 0.0
        %3547 = vmatpush1.msra.mxu0 0.0
        %3548 = vmatprep.subr.mxu0 0.0
        %3549 = vmatpush1.msra.mxu0 0.0
        %3550 = vmatprep.subr.mxu0 0.0
        %3551 = vmatpush1.msra.mxu0 0.0
        %3552 = vmatprep.subr.mxu0 0.0
        %3553 = vmatpush1.msra.mxu0 0.0
        %3554 = vmatprep.subr.mxu0 0.0
        %3555 = vmatpush1.msra.mxu0 0.0
        %3556 = vmatprep.mubr.f32.mxu0 0.0
        %3557 = vmatmul.mubr.f32.gmra.mrb[0].mxu0 %v3490
        %v3558 = vpop.f32.mrb[0].mxu0
        %v3559 = vadd.f32 %v3487, %v3558
        %v3560 = vpop.f32.mrb[0].mxu0
        %3561 = vdwg.mxu0
        %v3562 = vmax.f32 %v3559, 0.0
        %v3563 = vld [vmem:[%s9] sm:$0xff]
        %v3564 = vld [vmem:[%s9 + $0x8] sm:$0xff]
        %v3565 = vld [vmem:[%s9 + $0x10] sm:$0xff]
        %v3566 = vld [vmem:[%s9 + $0x18] sm:$0xff]
        %v3567 = vld [vmem:[%s9 + $0x20] sm:$0xff]
        %v3568 = vld [vmem:[%s9 + $0x28] sm:$0xff]
        %v3569 = vld [vmem:[%s9 + $0x30] sm:$0xff]
        %v3570 = vld [vmem:[%s9 + $0x38] sm:$0xff]
        %v3571 = vld [vmem:[%s9 + $0x40] sm:$0xff]
        %v3572 = vld [vmem:[%s9 + $0x48] sm:$0xff]
        %v3573 = vld [vmem:[%s9 + $0x50] sm:$0xf]
        %v3574 = vld [vmem:[%s10] sm:$0x1]
        %vm3575 = vcmask 687104
        %v3577 = vsel %vm3575, %v3562, 0
        %v3580 = vsel %vm725, %v3573, 0
        %3582 = vmatprep.subr.mxu0 0.0
        %3583 = vmatpush1.msra.mxu0 %v3563
        %3584 = vmatprep.subr.mxu0 0.0
        %3585 = vmatpush1.msra.mxu0 %v3564
        %3586 = vmatprep.subr.mxu0 0.0
        %3587 = vmatpush1.msra.mxu0 %v3565
        %3588 = vmatprep.subr.mxu0 0.0
        %3589 = vmatpush1.msra.mxu0 %v3566
        %3590 = vmatprep.subr.mxu0 0.0
        %3591 = vmatpush1.msra.mxu0 %v3567
        %3592 = vmatprep.subr.mxu0 0.0
        %3593 = vmatpush1.msra.mxu0 %v3568
        %3594 = vmatprep.subr.mxu0 0.0
        %3595 = vmatpush1.msra.mxu0 %v3569
        %3596 = vmatprep.subr.mxu0 0.0
        %3597 = vmatpush1.msra.mxu0 %v3570
        %3598 = vmatprep.subr.mxu0 0.0
        %3599 = vmatpush1.msra.mxu0 %v3571
        %3600 = vmatprep.subr.mxu0 0.0
        %3601 = vmatpush1.msra.mxu0 %v3572
        %3602 = vmatprep.subr.mxu0 0.0
        %3603 = vmatpush1.msra.mxu0 %v3580
        %3604 = vmatprep.subr.mxu0 0.0
        %3605 = vmatpush1.msra.mxu0 0.0
        %3606 = vmatprep.subr.mxu0 0.0
        %3607 = vmatpush1.msra.mxu0 0.0
        %3608 = vmatprep.subr.mxu0 0.0
        %3609 = vmatpush1.msra.mxu0 0.0
        %3610 = vmatprep.subr.mxu0 0.0
        %3611 = vmatpush1.msra.mxu0 0.0
        %3612 = vmatprep.subr.mxu0 0.0
        %3613 = vmatpush1.msra.mxu0 0.0
        %3614 = vmatprep.subr.mxu0 0.0
        %3615 = vmatpush1.msra.mxu0 0.0
        %3616 = vmatprep.subr.mxu0 0.0
        %3617 = vmatpush1.msra.mxu0 0.0
        %3618 = vmatprep.subr.mxu0 0.0
        %3619 = vmatpush1.msra.mxu0 0.0
        %3620 = vmatprep.subr.mxu0 0.0
        %3621 = vmatpush1.msra.mxu0 0.0
        %3622 = vmatprep.subr.mxu0 0.0
        %3623 = vmatpush1.msra.mxu0 0.0
        %3624 = vmatprep.subr.mxu0 0.0
        %3625 = vmatpush1.msra.mxu0 0.0
        %3626 = vmatprep.subr.mxu0 0.0
        %3627 = vmatpush1.msra.mxu0 0.0
        %3628 = vmatprep.subr.mxu0 0.0
        %3629 = vmatpush1.msra.mxu0 0.0
        %3630 = vmatprep.subr.mxu0 0.0
        %3631 = vmatpush1.msra.mxu0 0.0
        %3632 = vmatprep.subr.mxu0 0.0
        %3633 = vmatpush1.msra.mxu0 0.0
        %3634 = vmatprep.subr.mxu0 0.0
        %3635 = vmatpush1.msra.mxu0 0.0
        %3636 = vmatprep.subr.mxu0 0.0
        %3637 = vmatpush1.msra.mxu0 0.0
        %3638 = vmatprep.subr.mxu0 0.0
        %3639 = vmatpush1.msra.mxu0 0.0
        %3640 = vmatprep.subr.mxu0 0.0
        %3641 = vmatpush1.msra.mxu0 0.0
        %3642 = vmatprep.subr.mxu0 0.0
        %3643 = vmatpush1.msra.mxu0 0.0
        %3644 = vmatprep.subr.mxu0 0.0
        %3645 = vmatpush1.msra.mxu0 0.0
        %3646 = vmatprep.mubr.f32.mxu0 0.0
        %3647 = vmatmul.mubr.f32.gmra.mrb[0].mxu0 %v3577
        %v3648 = vpop.f32.mrb[0].mxu0
        %v3649 = vadd.f32 %v3574, %v3648
        %v3650 = vpop.f32.mrb[0].mxu0
        %3651 = vdwg.mxu0
        %vm3652 = vcmask 73728
        %3653 = vst.msk [vmem:[%s403] sm:$0x1] %vm3652, %v3649
        %s3654 = sand.u32 %s291, 1
        %s3655 = scalar_lea.sflag [#allocation3], %s3654
        %s3656 = sand.u32 %s291, 1
        %s3657 = scalar_lea.vmem [#allocation2], %s3656
        // Predicated region
        $region69: #{net_forward.1} parent=67 // pred_check
          %p3658 = pneg %p301
        $region70: #{net_forward.1} parent=67 // pred_check_branch
          %3660 = sbr.rel (%p3658) target = $region72
        $region71: #{net_forward.1} parent=67 // pred_region
          %s3662 = ssub.s32 16, 16
          %3663 = vsyncadd %s3655, %s3662
          %s3664 = smul.addr %s26, 16
          %s3665 = scalar_lea.hbm %s12, %s3664
          %s3667 = sshll.u32 %s3657, 4
          %s3668 = int_to_ptr.vmem [resolvable:$true] %s3667
          %3670 = dma.vmem_to_hbm [thread:$0]  %s3668, 16, %s3665, %s3655
        $region72: #{net_forward.1} parent=67 // pred_fallthru
          _
      $region68: #{net_forward.1} parent=5 // pred_fallthru
        _
      %p3671 = scmp.le.s32.totalorder 2, %s21
      // Predicated region
      $region73: #{net_forward.1} parent=5 // pred_check
        %p3672 = pneg %p3671
      $region74: #{net_forward.1} parent=5 // pred_check_branch
        %3674 = sbr.rel (%p3672) target = $region76
      $region75: #{net_forward.1} parent=5 // pred_region
        %s3675 = ssub.s32 %s21, 2
        // Predicated region
        $region77: #{net_forward.1} parent=75 // pred_check
          %p3676 = pneg %p307
        $region78: #{net_forward.1} parent=75 // pred_check_branch
          %3678 = sbr.rel (%p3676) target = $region80
        $region79: #{net_forward.1} parent=75 // pred_region
          %s3679 = sand.u32 %s292, 1
          %s3680 = scalar_lea.sflag [#allocation3], %s3679
          %s3681 = sand.u32 %s292, 1
          %s3682 = scalar_lea.vmem [#allocation2], %s3681
          %3683 = dma.done %s3680, 16
        $region80: #{net_forward.1} parent=75 // pred_fallthru
          _
      $region76: #{net_forward.1} parent=5 // pred_fallthru
        _
    $region6: #{net_forward.1} parent=1 // loop_footer
      %s25 = sadd.s32 1, %s21
    $region7: #{net_forward.1} parent=1 // loop_footer_branch
      %20 = sbr.rel target = $region3
    $region8: #{net_forward.1} parent=1 // loop_exit
      _
    %3684 = vsyncpa [#allocation3], 1
    %s3685 = scalar_lea.sflag [#allocation3], 1
    %3686 = vsyncpa %s3685, 1

</llo_original>
